<compile_context>
chip_gen: v7x
topology: tpu7x:2x2x1
jax: 0.10.0
libtpu: 0.0.40
codegen_flags: <defaults>
</compile_context>

<pallas_src>
import math
import functools

import jax
import jax.numpy as jnp
from jax.experimental import pallas as pl
from jax.experimental.pallas import tpu as pltpu


# ----------------------------- small helpers ------------------------------

@functools.lru_cache(maxsize=None)
def _vmem_limit_bytes():
    """Per-generation VMEM limit: ~3/4 of physical, capped at 100 MiB, floor 32 MiB."""
    try:
        cap = int(pltpu.get_tpu_info().vmem_capacity_bytes)
    except Exception:
        cap = 64 * 1024 * 1024  # conservative (v7x) if the query is unavailable
    return int(max(32 * 1024 * 1024, min(cap * 3 // 4, 100 * 1024 * 1024)))


def _nbytes(*arrays):
    return sum(int(a.size) * jnp.dtype(a.dtype).itemsize for a in arrays)


def _seq_tile(s, target=256):
    """Largest multiple-of-8 divisor of s that is <= target (or s itself)."""
    if s <= target:
        return s
    for t in range(target - (target % 8), 7, -8):
        if s % t == 0:
            return t
    return s


def _wspec(shape):
    """Weight/bias spec: full block, constant over the (batch, q-tile) grid."""
    return pl.BlockSpec(shape, lambda b, q: (0,) * len(shape))


def _activate(x, activation):
    if activation == "relu":
        return jnp.maximum(x, 0.0)
    if activation == "gelu":
        return 0.5 * x * (1.0 + jax.lax.erf(x * (1.0 / math.sqrt(2.0))))
    raise ValueError(f"unsupported activation: {activation}")


def _layer_norm(x, gamma, beta, eps=1e-5):
    """x: (S, D) f32; gamma/beta: (1, D).  torch.nn.LayerNorm semantics."""
    mean = jnp.mean(x, axis=-1, keepdims=True)
    xc = x - mean
    var = jnp.mean(xc * xc, axis=-1, keepdims=True)
    return xc * jax.lax.rsqrt(var + eps) * gamma + beta


def _mha(q, k, v, wo_ref, bo_ref, bias, num_heads):
    """Multi-head attention + output projection, all in VMEM.

    q: (Sq, D) f32 (already has in-proj bias), k/v: (Sk, D) f32, bias: (1, Sk) additive key bias.
    One batched K transpose (not per head); per-head scores/softmax/PV; head outputs are
    concatenated and hit Wo with a single D-wide matmul (bf16 MXU inputs, f32 accumulation).
    """
    sq, d = q.shape
    dh = d // num_heads
    scale = 1.0 / math.sqrt(dh)
    kt = jnp.transpose(k).astype(jnp.bfloat16)          # (D, Sk): one XLU transpose for all heads
    q_bf = (q * scale).astype(jnp.bfloat16)
    v_bf = v.astype(jnp.bfloat16)
    heads = []
    for h in range(num_heads):                           # static unroll; H is small
        sl = slice(h * dh, (h + 1) * dh)
        s = jnp.dot(q_bf[:, sl], kt[sl, :], preferred_element_type=jnp.float32)   # (Sq, Sk)
        s = s + bias                                     # broadcast over query rows
        m = jnp.max(s, axis=-1, keepdims=True)
        p = jnp.exp(s - m)
        denom = jnp.sum(p, axis=-1, keepdims=True)
        oh = jnp.dot(p.astype(jnp.bfloat16), v_bf[:, sl], preferred_element_type=jnp.float32)
        heads.append(oh * pl.reciprocal(denom, approx=True))   # EUP reciprocal, off the VALU slot
    ctx = jnp.concatenate(heads, axis=-1).astype(jnp.bfloat16)  # (Sq, D)
    return jnp.dot(ctx, wo_ref[...], preferred_element_type=jnp.float32) + bo_ref[...]


# ----------------------------- fused layer kernels ------------------------------

def _encoder_layer_kernel(x_ref, bias_ref,
                          wq_ref, bq_ref, wkv_ref, bkv_ref, wo_ref, bo_ref,
                          ln1_g_ref, ln1_b_ref,
                          w1_ref, b1_ref, w2_ref, b2_ref,
                          ln2_g_ref, ln2_b_ref,
                          o_ref, *, num_heads, activation, tq):
    d = x_ref.shape[-1]
    row = pl.multiple_of(pl.program_id(1) * tq, tq)
    x_full = x_ref[0].astype(jnp.bfloat16)                       # (S, D) for K/V projection
    xq = x_ref[0, pl.ds(row, tq), :].astype(jnp.float32)         # (TQ, D) query tile / residual
    bias = bias_ref[0].astype(jnp.float32)                       # (1, S)

    # self-attention (K/V over full sequence, Q only for this tile)
    kv = jnp.dot(x_full, wkv_ref[...], preferred_element_type=jnp.float32) + bkv_ref[...]
    q = jnp.dot(xq.astype(jnp.bfloat16), wq_ref[...], preferred_element_type=jnp.float32) + bq_ref[...]
    a = _mha(q, kv[:, :d], kv[:, d:], wo_ref, bo_ref, bias, num_heads)
    x1 = _layer_norm(xq + a, ln1_g_ref[...], ln1_b_ref[...])

    # feed-forward (d_ff intermediate never leaves VMEM)
    h = _activate(jnp.dot(x1.astype(jnp.bfloat16), w1_ref[...],
                          preferred_element_type=jnp.float32) + b1_ref[...], activation)
    h = jnp.dot(h.astype(jnp.bfloat16), w2_ref[...], preferred_element_type=jnp.float32) + b2_ref[...]
    x2 = _layer_norm(x1 + h, ln2_g_ref[...], ln2_b_ref[...])

    o_ref[0] = x2.astype(o_ref.dtype)


def _decoder_layer_kernel(y_ref, mem_ref, tgt_bias_ref, mem_bias_ref,
                          sa_wq_ref, sa_bq_ref, sa_wkv_ref, sa_bkv_ref, sa_wo_ref, sa_bo_ref,
                          ln1_g_ref, ln1_b_ref,
                          ca_wq_ref, ca_bq_ref, ca_wkv_ref, ca_bkv_ref, ca_wo_ref, ca_bo_ref,
                          ln2_g_ref, ln2_b_ref,
                          w1_ref, b1_ref, w2_ref, b2_ref,
                          ln3_g_ref, ln3_b_ref,
                          o_ref, *, num_heads, activation, tq):
    d = y_ref.shape[-1]
    row = pl.multiple_of(pl.program_id(1) * tq, tq)
    y_full = y_ref[0].astype(jnp.bfloat16)                       # (T, D)
    yq = y_ref[0, pl.ds(row, tq), :].astype(jnp.float32)         # (TQ, D)
    mem = mem_ref[0].astype(jnp.bfloat16)                        # (S, D)
    tgt_bias = tgt_bias_ref[0].astype(jnp.float32)               # (1, T)
    mem_bias = mem_bias_ref[0].astype(jnp.float32)               # (1, S)

    # self-attention (no causal mask: the reference passes only key-padding masks, no tgt_mask)
    kv = jnp.dot(y_full, sa_wkv_ref[...], preferred_element_type=jnp.float32) + sa_bkv_ref[...]
    q = jnp.dot(yq.astype(jnp.bfloat16), sa_wq_ref[...], preferred_element_type=jnp.float32) + sa_bq_ref[...]
    a = _mha(q, kv[:, :d], kv[:, d:], sa_wo_ref, sa_bo_ref, tgt_bias, num_heads)
    y1 = _layer_norm(yq + a, ln1_g_ref[...], ln1_b_ref[...])

    # cross-attention (fused KV projection on the encoder memory)
    kv = jnp.dot(mem, ca_wkv_ref[...], preferred_element_type=jnp.float32) + ca_bkv_ref[...]
    q = jnp.dot(y1.astype(jnp.bfloat16), ca_wq_ref[...], preferred_element_type=jnp.float32) + ca_bq_ref[...]
    c = _mha(q, kv[:, :d], kv[:, d:], ca_wo_ref, ca_bo_ref, mem_bias, num_heads)
    y2 = _layer_norm(y1 + c, ln2_g_ref[...], ln2_b_ref[...])

    # feed-forward
    h = _activate(jnp.dot(y2.astype(jnp.bfloat16), w1_ref[...],
                          preferred_element_type=jnp.float32) + b1_ref[...], activation)
    h = jnp.dot(h.astype(jnp.bfloat16), w2_ref[...], preferred_element_type=jnp.float32) + b2_ref[...]
    y3 = _layer_norm(y2 + h, ln3_g_ref[...], ln3_b_ref[...])

    o_ref[0] = y3.astype(o_ref.dtype)


# ----------------------------- layer wrappers ------------------------------

def encoder_layer(p, x, bias, cfg):
    """One fused TransformerEncoderLayer (post-norm, dropout off).  x: (B,S,D), bias: (B,1,S)."""
    B, S, D = x.shape
    F = cfg["d_ff"]
    H = cfg["num_heads"]
    tq = _seq_tile(S)
    kernel = functools.partial(_encoder_layer_kernel, num_heads=H,
                               activation=cfg["activation"], tq=tq)
    operands = (x, bias,
                p["wq"], p["bq"], p["wkv"], p["bkv"], p["wo"], p["bo"],
                p["ln1_g"], p["ln1_b"],
                p["w1"], p["b1"], p["w2"], p["b2"],
                p["ln2_g"], p["ln2_b"])
    in_specs = [pl.BlockSpec((1, S, D), lambda b, q: (b, 0, 0)),
                pl.BlockSpec((1, 1, S), lambda b, q: (b, 0, 0))]
    in_specs += [_wspec(tuple(w.shape)) for w in operands[2:]]
    flops = B * (8 * S * D * D + 4 * S * S * D + 4 * S * D * F)
    cost = pl.CostEstimate(flops=int(flops),
                           transcendentals=int(B * (H * S * S + 4 * S)),
                           bytes_accessed=int(_nbytes(*operands) + B * S * D * 4))
    return pl.pallas_call(
        kernel,
        out_shape=jax.ShapeDtypeStruct((B, S, D), x.dtype),
        grid=(B, S // tq),
        in_specs=in_specs,
        out_specs=pl.BlockSpec((1, tq, D), lambda b, q: (b, q, 0)),
        compiler_params=pltpu.CompilerParams(
            dimension_semantics=("parallel", "parallel"),
            vmem_limit_bytes=_vmem_limit_bytes()),
        cost_estimate=cost,
    )(*operands)


def decoder_layer(p, y, mem, tgt_bias, mem_bias, cfg):
    """One fused TransformerDecoderLayer (post-norm, dropout off)."""
    B, T, D = y.shape
    S = mem.shape[1]
    F = cfg["d_ff"]
    H = cfg["num_heads"]
    tq = _seq_tile(T)
    kernel = functools.partial(_decoder_layer_kernel, num_heads=H,
                               activation=cfg["activation"], tq=tq)
    operands = (y, mem, tgt_bias, mem_bias,
                p["sa_wq"], p["sa_bq"], p["sa_wkv"], p["sa_bkv"], p["sa_wo"], p["sa_bo"],
                p["ln1_g"], p["ln1_b"],
                p["ca_wq"], p["ca_bq"], p["ca_wkv"], p["ca_bkv"], p["ca_wo"], p["ca_bo"],
                p["ln2_g"], p["ln2_b"],
                p["w1"], p["b1"], p["w2"], p["b2"],
                p["ln3_g"], p["ln3_b"])
    in_specs = [pl.BlockSpec((1, T, D), lambda b, q: (b, 0, 0)),
                pl.BlockSpec((1, S, D), lambda b, q: (b, 0, 0)),
                pl.BlockSpec((1, 1, T), lambda b, q: (b, 0, 0)),
                pl.BlockSpec((1, 1, S), lambda b, q: (b, 0, 0))]
    in_specs += [_wspec(tuple(w.shape)) for w in operands[4:]]
    flops = B * (8 * T * D * D + 4 * T * T * D        # self-attention
                 + 4 * S * D * D + 4 * T * D * D + 4 * T * S * D   # cross-attention
                 + 4 * T * D * F)                      # FFN
    cost = pl.CostEstimate(flops=int(flops),
                           transcendentals=int(B * (H * T * (T + S) + 6 * T)),
                           bytes_accessed=int(_nbytes(*operands) + B * T * D * 4))
    return pl.pallas_call(
        kernel,
        out_shape=jax.ShapeDtypeStruct((B, T, D), y.dtype),
        grid=(B, T // tq),
        in_specs=in_specs,
        out_specs=pl.BlockSpec((1, tq, D), lambda b, q: (b, q, 0)),
        compiler_params=pltpu.CompilerParams(
            dimension_semantics=("parallel", "parallel"),
            vmem_limit_bytes=_vmem_limit_bytes()),
        cost_estimate=cost,
    )(*operands)


# ----------------------------- tiled output head ------------------------------

def _head_kernel(x_ref, w_ref, b_ref, o_ref):
    y = jnp.dot(x_ref[...].astype(jnp.bfloat16), w_ref[...],
                preferred_element_type=jnp.float32) + b_ref[...]
    o_ref[...] = y.astype(o_ref.dtype)


def output_head(x, w, b, *, tm=256, tn=1024):
    """x: (M, K) f32, w: (K, N) bf16, b: (1, N) f32 -> logits (M, N) f32, tiled over (N, M).

    M is the innermost (fastest) grid axis so each (K, tn) vocab weight tile is streamed from
    HBM exactly once.  pl.cdiv grids + masked edge blocks keep every tile (tn multiple of 128)
    within the VMEM limit regardless of vocab size — no full-(K, N) fallback block.
    """
    M, K = x.shape
    N = w.shape[1]
    tm = M if M <= tm else tm
    tn = N if N <= tn else tn
    # TODO(synk): add a K-reduction grid axis + f32 VMEM accumulator if d_model grows very large;
    # K = d_model comfortably fits a single contraction block here.
    flops = 2 * M * K * N
    cost = pl.CostEstimate(flops=int(flops), transcendentals=0,
                           bytes_accessed=int(_nbytes(x, w, b) + M * N * 4))
    return pl.pallas_call(
        _head_kernel,
        out_shape=jax.ShapeDtypeStruct((M, N), x.dtype),
        grid=(pl.cdiv(N, tn), pl.cdiv(M, tm)),       # M innermost: weight tile read once
        in_specs=[
            pl.BlockSpec((tm, K), lambda j, i: (i, 0)),
            pl.BlockSpec((K, tn), lambda j, i: (0, j)),
            pl.BlockSpec((1, tn), lambda j, i: (0, j)),
        ],
        out_specs=pl.BlockSpec((tm, tn), lambda j, i: (i, j)),
        compiler_params=pltpu.CompilerParams(
            dimension_semantics=("parallel", "parallel"),
            vmem_limit_bytes=_vmem_limit_bytes()),
        cost_estimate=cost,
    )(x, w, b)


# ----------------------------- model forward ------------------------------

def t5_forward(params, cfg, input_ids, attention_mask, decoder_input_ids, decoder_attention_mask):
    D = cfg["d_model"]
    V = cfg["vocab_size"]
    scale = math.sqrt(D)

    enc_in = params["embedding"][input_ids] * scale            # embedding gather stays in XLA
    dec_in = params["embedding"][decoder_input_ids] * scale
    # TODO(synk): relative-position bias is computed-but-unused in the reference forward; skipped.

    B, S_enc = input_ids.shape
    _, S_dec = decoder_input_ids.shape
    # Additive key-padding biases, computed ONCE and reused by every layer.
    enc_bias = jnp.where(attention_mask.astype(bool), 0.0, -1e9).astype(jnp.float32).reshape(B, 1, S_enc)
    dec_bias = jnp.where(decoder_attention_mask.astype(bool), 0.0, -1e9).astype(jnp.float32).reshape(B, 1, S_dec)

    x = enc_in
    for lp in params["encoder"]:
        x = encoder_layer(lp, x, enc_bias, cfg)
    memory = x

    y = dec_in
    for lp in params["decoder"]:
        y = decoder_layer(lp, y, memory, dec_bias, enc_bias, cfg)

    logits = output_head(y.reshape(B * S_dec, D), params["out_w"], params["out_b"])
    return logits.reshape(B, S_dec, V)


# ----------------------------- deterministic parameter init ------------------------------

def _xavier(key, shape, dtype=jnp.bfloat16):
    fan_in, fan_out = shape
    bound = math.sqrt(6.0 / (fan_in + fan_out))
    return jax.random.uniform(key, shape, jnp.float32, -bound, bound).astype(dtype)


def _init_enc_layer(key, cfg):
    D, F = cfg["d_model"], cfg["d_ff"]
    ks = jax.random.split(key, 5)
    zD = jnp.zeros((1, D), jnp.float32)
    return {
        "wq": _xavier(ks[0], (D, D)), "bq": zD,
        "wkv": _xavier(ks[1], (D, 2 * D)), "bkv": jnp.zeros((1, 2 * D), jnp.float32),
        "wo": _xavier(ks[2], (D, D)), "bo": zD,
        "w1": _xavier(ks[3], (D, F)), "b1": jnp.zeros((1, F), jnp.float32),
        "w2": _xavier(ks[4], (F, D)), "b2": zD,
        "ln1_g": jnp.ones((1, D), jnp.float32), "ln1_b": zD,
        "ln2_g": jnp.ones((1, D), jnp.float32), "ln2_b": zD,
    }


def _init_dec_layer(key, cfg):
    D, F = cfg["d_model"], cfg["d_ff"]
    ks = jax.random.split(key, 8)
    zD = jnp.zeros((1, D), jnp.float32)
    return {
        "sa_wq": _xavier(ks[0], (D, D)), "sa_bq": zD,
        "sa_wkv": _xavier(ks[1], (D, 2 * D)), "sa_bkv": jnp.zeros((1, 2 * D), jnp.float32),
        "sa_wo": _xavier(ks[2], (D, D)), "sa_bo": zD,
        "ca_wq": _xavier(ks[3], (D, D)), "ca_bq": zD,
        "ca_wkv": _xavier(ks[4], (D, 2 * D)), "ca_bkv": jnp.zeros((1, 2 * D), jnp.float32),
        "ca_wo": _xavier(ks[5], (D, D)), "ca_bo": zD,
        "w1": _xavier(ks[6], (D, F)), "b1": jnp.zeros((1, F), jnp.float32),
        "w2": _xavier(ks[7], (F, D)), "b2": zD,
        "ln1_g": jnp.ones((1, D), jnp.float32), "ln1_b": zD,
        "ln2_g": jnp.ones((1, D), jnp.float32), "ln2_b": zD,
        "ln3_g": jnp.ones((1, D), jnp.float32), "ln3_b": zD,
    }


def init_params(key, cfg):
    V, D, L = cfg["vocab_size"], cfg["d_model"], cfg["num_layers"]
    keys = jax.random.split(key, 2 * L + 2)
    return {
        "embedding": _xavier(keys[0], (V, D), jnp.float32),
        "encoder": [_init_enc_layer(keys[1 + i], cfg) for i in range(L)],
        "decoder": [_init_dec_layer(keys[1 + L + i], cfg) for i in range(L)],
        "out_w": _xavier(keys[1 + 2 * L], (D, V)),               # bf16 MXU weight
        "out_b": jnp.zeros((1, V), jnp.float32),
    }


# ----------------------------- main ------------------------------

if __name__ == "__main__":
    cfg = dict(vocab_size=64, d_model=32, num_heads=4, d_ff=64, num_layers=2,
               dropout=0.0, activation="relu", relative_attention=False)

    root = jax.random.PRNGKey(0)
    pkey, k1, k2 = jax.random.split(root, 3)
    params = init_params(pkey, cfg)

    B, S_ENC, S_DEC = 2, 8, 8
    input_ids = jax.random.randint(k1, (B, S_ENC), 0, cfg["vocab_size"], dtype=jnp.int32)
    decoder_input_ids = jax.random.randint(k2, (B, S_DEC), 0, cfg["vocab_size"], dtype=jnp.int32)
    attention_mask = jnp.array([[1] * 8, [1] * 6 + [0] * 2], dtype=jnp.int32)
    decoder_attention_mask = jnp.array([[1] * 8, [1] * 7 + [0]], dtype=jnp.int32)

    fwd = jax.jit(functools.partial(t5_forward, params, cfg))
    logits = fwd(input_ids, attention_mask, decoder_input_ids, decoder_attention_mask)
    jax.block_until_ready(logits)

    assert logits.shape == (B, S_DEC, cfg["vocab_size"]), logits.shape
    assert bool(jnp.isfinite(logits).all())
    print("KERNEL_OK")
</pallas_src>

<mosaic_0001>
module attributes {stable_mosaic.version = 11 : i64} {
  func.func @_head_kernel(%arg0: i32, %arg1: i32, %arg2: memref<16x32xf32, #tpu.memory_space<vmem>>, %arg3: memref<32x64xbf16, #tpu.memory_space<vmem>>, %arg4: memref<1x64xf32, #tpu.memory_space<vmem>>, %arg5: memref<16x64xf32, #tpu.memory_space<vmem>>) attributes {dimension_semantics = [#tpu.dimension_semantics<parallel>, #tpu.dimension_semantics<parallel>], iteration_bounds = array<i64: 1, 1>, scalar_prefetch = 0 : i64, scratch_operands = 0 : i64, tpu.core_type = #tpu.core_type<tc>, window_params = [{transform_indices = @transform_0, window_bounds = array<i64: 16, 32>}, {transform_indices = @transform_1, window_bounds = array<i64: 32, 64>}, {transform_indices = @transform_2, window_bounds = array<i64: 1, 64>}, {transform_indices = @transform_3, window_bounds = array<i64: 16, 64>}]} {
    %c0 = arith.constant 0 : index
    %c0_0 = arith.constant 0 : index
    %0 = vector.load %arg2[%c0, %c0_0] : memref<16x32xf32, #tpu.memory_space<vmem>>, vector<16x32xf32>
    %1 = arith.truncf %0 : vector<16x32xf32> to vector<16x32xbf16>
    %c0_1 = arith.constant 0 : index
    %c0_2 = arith.constant 0 : index
    %2 = vector.load %arg3[%c0_1, %c0_2] : memref<32x64xbf16, #tpu.memory_space<vmem>>, vector<32x64xbf16>
    %cst = arith.constant dense<0.000000e+00> : vector<16x64xf32>
    %3 = tpu.matmul %1, %2, %cst {dimension_numbers = #tpu.dot_dimension_numbers<[1], [0], [0], [1], [0, 0, 1, 1], [], []>} : vector<16x32xbf16>, vector<32x64xbf16>, vector<16x64xf32> -> vector<16x64xf32>
    %c0_3 = arith.constant 0 : index
    %c0_4 = arith.constant 0 : index
    %4 = vector.load %arg4[%c0_3, %c0_4] : memref<1x64xf32, #tpu.memory_space<vmem>>, vector<1x64xf32>
    %5 = vector.broadcast %4 : vector<1x64xf32> to vector<16x64xf32>
    %6 = arith.addf %3, %5 : vector<16x64xf32>
    %c0_5 = arith.constant 0 : index
    %c0_6 = arith.constant 0 : index
    %7 = vector.load %arg5[%c0_5, %c0_6] : memref<16x64xf32, #tpu.memory_space<vmem>>, vector<16x64xf32>
    tpu.vector_store %arg5[%c0_5, %c0_6], %6 {strides = array<i32>} : memref<16x64xf32, #tpu.memory_space<vmem>>, vector<16x64xf32>,
    return
  }
  func.func @transform_0(%arg0: i32, %arg1: i32) -> (i32, i32) {
    %c0_i32 = arith.constant 0 : i32
    %c0_i32_0 = arith.constant 0 : i32
    return %arg1, %c0_i32 : i32, i32
  }
  func.func @transform_1(%arg0: i32, %arg1: i32) -> (i32, i32) {
    %c0_i32 = arith.constant 0 : i32
    %c0_i32_0 = arith.constant 0 : i32
    return %c0_i32, %arg0 : i32, i32
  }
  func.func @transform_2(%arg0: i32, %arg1: i32) -> (i32, i32) {
    %c0_i32 = arith.constant 0 : i32
    %c0_i32_0 = arith.constant 0 : i32
    return %c0_i32, %arg0 : i32, i32
  }
  func.func @transform_3(%arg0: i32, %arg1: i32) -> (i32, i32) {
    %c0_i32 = arith.constant 0 : i32
    return %arg1, %arg0 : i32, i32
  }
}

module attributes {stable_mosaic.version = 11 : i64} {
  func.func @_encoder_layer_kernel(%arg0: i32, %arg1: i32, %arg2: memref<1x8x32xf32, #tpu.memory_space<vmem>>, %arg3: memref<1x1x8xf32, #tpu.memory_space<vmem>>, %arg4: memref<32x32xbf16, #tpu.memory_space<vmem>>, %arg5: memref<1x32xf32, #tpu.memory_space<vmem>>, %arg6: memref<32x64xbf16, #tpu.memory_space<vmem>>, %arg7: memref<1x64xf32, #tpu.memory_space<vmem>>, %arg8: memref<32x32xbf16, #tpu.memory_space<vmem>>, %arg9: memref<1x32xf32, #tpu.memory_space<vmem>>, %arg10: memref<1x32xf32, #tpu.memory_space<vmem>>, %arg11: memref<1x32xf32, #tpu.memory_space<vmem>>, %arg12: memref<32x64xbf16, #tpu.memory_space<vmem>>, %arg13: memref<1x64xf32, #tpu.memory_space<vmem>>, %arg14: memref<64x32xbf16, #tpu.memory_space<vmem>>, %arg15: memref<1x32xf32, #tpu.memory_space<vmem>>, %arg16: memref<1x32xf32, #tpu.memory_space<vmem>>, %arg17: memref<1x32xf32, #tpu.memory_space<vmem>>, %arg18: memref<1x8x32xf32, #tpu.memory_space<vmem>>) attributes {dimension_semantics = [#tpu.dimension_semantics<parallel>, #tpu.dimension_semantics<parallel>], iteration_bounds = array<i64: 2, 1>, scalar_prefetch = 0 : i64, scratch_operands = 0 : i64, tpu.core_type = #tpu.core_type<tc>, window_params = [{transform_indices = @transform_0, window_bounds = array<i64: 1, 8, 32>}, {transform_indices = @transform_1, window_bounds = array<i64: 1, 1, 8>}, {pipeline_mode = #tpu.pipeline_mode<synchronous>, transform_indices = @transform_2, window_bounds = array<i64: 32, 32>}, {pipeline_mode = #tpu.pipeline_mode<synchronous>, transform_indices = @transform_3, window_bounds = array<i64: 1, 32>}, {pipeline_mode = #tpu.pipeline_mode<synchronous>, transform_indices = @transform_4, window_bounds = array<i64: 32, 64>}, {pipeline_mode = #tpu.pipeline_mode<synchronous>, transform_indices = @transform_5, window_bounds = array<i64: 1, 64>}, {pipeline_mode = #tpu.pipeline_mode<synchronous>, transform_indices = @transform_6, window_bounds = array<i64: 32, 32>}, {pipeline_mode = #tpu.pipeline_mode<synchronous>, transform_indices = @transform_7, window_bounds = array<i64: 1, 32>}, {pipeline_mode = #tpu.pipeline_mode<synchronous>, transform_indices = @transform_8, window_bounds = array<i64: 1, 32>}, {pipeline_mode = #tpu.pipeline_mode<synchronous>, transform_indices = @transform_9, window_bounds = array<i64: 1, 32>}, {pipeline_mode = #tpu.pipeline_mode<synchronous>, transform_indices = @transform_10, window_bounds = array<i64: 32, 64>}, {pipeline_mode = #tpu.pipeline_mode<synchronous>, transform_indices = @transform_11, window_bounds = array<i64: 1, 64>}, {pipeline_mode = #tpu.pipeline_mode<synchronous>, transform_indices = @transform_12, window_bounds = array<i64: 64, 32>}, {pipeline_mode = #tpu.pipeline_mode<synchronous>, transform_indices = @transform_13, window_bounds = array<i64: 1, 32>}, {pipeline_mode = #tpu.pipeline_mode<synchronous>, transform_indices = @transform_14, window_bounds = array<i64: 1, 32>}, {pipeline_mode = #tpu.pipeline_mode<synchronous>, transform_indices = @transform_15, window_bounds = array<i64: 1, 32>}, {transform_indices = @transform_16, window_bounds = array<i64: 1, 8, 32>}]} {
    %c8_i32 = arith.constant 8 : i32
    %0 = arith.muli %arg1, %c8_i32 : i32
    %1 = tpu.assume_multiple %0, 8 : i32
    %c0 = arith.constant 0 : index
    %c0_0 = arith.constant 0 : index
    %c0_1 = arith.constant 0 : index
    %2 = vector.load %arg2[%c0, %c0_0, %c0_1] : memref<1x8x32xf32, #tpu.memory_space<vmem>>, vector<1x8x32xf32>
    %3 = vector.shape_cast %2 : vector<1x8x32xf32> to vector<8x32xf32>
    %4 = arith.truncf %3 : vector<8x32xf32> to vector<8x32xbf16>
    %c0_2 = arith.constant 0 : index
    %5 = arith.index_cast %1 : i32 to index
    %c0_3 = arith.constant 0 : index
    %6 = vector.load %arg2[%c0_2, %5, %c0_3] : memref<1x8x32xf32, #tpu.memory_space<vmem>>, vector<1x8x32xf32>
    %7 = vector.shape_cast %6 : vector<1x8x32xf32> to vector<8x32xf32>
    %c0_4 = arith.constant 0 : index
    %c0_5 = arith.constant 0 : index
    %c0_6 = arith.constant 0 : index
    %8 = vector.load %arg3[%c0_4, %c0_5, %c0_6] : memref<1x1x8xf32, #tpu.memory_space<vmem>>, vector<1x1x8xf32>
    %9 = vector.shape_cast %8 : vector<1x1x8xf32> to vector<1x8xf32>
    %c0_7 = arith.constant 0 : index
    %c0_8 = arith.constant 0 : index
    %10 = vector.load %arg6[%c0_7, %c0_8] : memref<32x64xbf16, #tpu.memory_space<vmem>>, vector<32x64xbf16>
    %cst = arith.constant dense<0.000000e+00> : vector<8x64xf32>
    %11 = tpu.matmul %4, %10, %cst {dimension_numbers = #tpu.dot_dimension_numbers<[1], [0], [0], [1], [0, 0, 1, 1], [], []>} : vector<8x32xbf16>, vector<32x64xbf16>, vector<8x64xf32> -> vector<8x64xf32>
    %c0_9 = arith.constant 0 : index
    %c0_10 = arith.constant 0 : index
    %12 = vector.load %arg7[%c0_9, %c0_10] : memref<1x64xf32, #tpu.memory_space<vmem>>, vector<1x64xf32>
    %13 = vector.broadcast %12 : vector<1x64xf32> to vector<8x64xf32>
    %14 = arith.addf %11, %13 : vector<8x64xf32>
    %15 = arith.truncf %7 : vector<8x32xf32> to vector<8x32xbf16>
    %c0_11 = arith.constant 0 : index
    %c0_12 = arith.constant 0 : index
    %16 = vector.load %arg4[%c0_11, %c0_12] : memref<32x32xbf16, #tpu.memory_space<vmem>>, vector<32x32xbf16>
    %cst_13 = arith.constant dense<0.000000e+00> : vector<8x32xf32>
    %17 = tpu.matmul %15, %16, %cst_13 {dimension_numbers = #tpu.dot_dimension_numbers<[1], [0], [0], [1], [0, 0, 1, 1], [], []>} : vector<8x32xbf16>, vector<32x32xbf16>, vector<8x32xf32> -> vector<8x32xf32>
    %c0_14 = arith.constant 0 : index
    %c0_15 = arith.constant 0 : index
    %18 = vector.load %arg5[%c0_14, %c0_15] : memref<1x32xf32, #tpu.memory_space<vmem>>, vector<1x32xf32>
    %19 = vector.broadcast %18 : vector<1x32xf32> to vector<8x32xf32>
    %20 = arith.addf %17, %19 : vector<8x32xf32>
    %21 = vector.extract_strided_slice %14 {offsets = [0, 0], sizes = [8, 32], strides = [1, 1]} : vector<8x64xf32> to vector<8x32xf32>
    %22 = vector.extract_strided_slice %14 {offsets = [0, 32], sizes = [8, 32], strides = [1, 1]} : vector<8x64xf32> to vector<8x32xf32>
    %23 = tpu.transpose %21, [1, 0] : vector<8x32xf32> -> vector<32x8xf32>
    %24 = arith.truncf %23 : vector<32x8xf32> to vector<32x8xbf16>
    %cst_16 = arith.constant 0.353553385 : f32
    %25 = vector.broadcast %cst_16 : f32 to vector<8x32xf32>
    %26 = arith.mulf %20, %25 : vector<8x32xf32>
    %27 = arith.truncf %26 : vector<8x32xf32> to vector<8x32xbf16>
    %28 = arith.truncf %22 : vector<8x32xf32> to vector<8x32xbf16>
    %29 = vector.extract_strided_slice %27 {offsets = [0, 0], sizes = [8, 8], strides = [1, 1]} : vector<8x32xbf16> to vector<8x8xbf16>
    %30 = vector.extract_strided_slice %24 {offsets = [0, 0], sizes = [8, 8], strides = [1, 1]} : vector<32x8xbf16> to vector<8x8xbf16>
    %cst_17 = arith.constant dense<0.000000e+00> : vector<8x8xf32>
    %31 = tpu.matmul %29, %30, %cst_17 {dimension_numbers = #tpu.dot_dimension_numbers<[1], [0], [0], [1], [0, 0, 1, 1], [], []>} : vector<8x8xbf16>, vector<8x8xbf16>, vector<8x8xf32> -> vector<8x8xf32>
    %32 = vector.broadcast %9 : vector<1x8xf32> to vector<8x8xf32>
    %33 = arith.addf %31, %32 : vector<8x8xf32>
    %cst_18 = arith.constant dense<0xFF800000> : vector<8xf32>
    %34 = vector.multi_reduction <maximumf>, %33, %cst_18 [1] : vector<8x8xf32> to vector<8xf32>
    %35 = vector.shape_cast %34 : vector<8xf32> to vector<8x1xf32>
    %36 = vector.broadcast %35 : vector<8x1xf32> to vector<8x8xf32>
    %37 = arith.subf %33, %36 : vector<8x8xf32>
    %38 = math.exp %37 : vector<8x8xf32>
    %cst_19 = arith.constant dense<0.000000e+00> : vector<8xf32>
    %39 = vector.multi_reduction <add>, %38, %cst_19 [1] : vector<8x8xf32> to vector<8xf32>
    %40 = vector.shape_cast %39 : vector<8xf32> to vector<8x1xf32>
    %41 = arith.truncf %38 : vector<8x8xf32> to vector<8x8xbf16>
    %42 = vector.extract_strided_slice %28 {offsets = [0, 0], sizes = [8, 8], strides = [1, 1]} : vector<8x32xbf16> to vector<8x8xbf16>
    %cst_20 = arith.constant dense<0.000000e+00> : vector<8x8xf32>
    %43 = tpu.matmul %41, %42, %cst_20 {dimension_numbers = #tpu.dot_dimension_numbers<[1], [0], [0], [1], [0, 0, 1, 1], [], []>} : vector<8x8xbf16>, vector<8x8xbf16>, vector<8x8xf32> -> vector<8x8xf32>
    %44 = tpu.reciprocal %40 {approx = true} : vector<8x1xf32> -> vector<8x1xf32>
    %45 = vector.broadcast %44 : vector<8x1xf32> to vector<8x8xf32>
    %46 = arith.mulf %43, %45 : vector<8x8xf32>
    %47 = vector.extract_strided_slice %27 {offsets = [0, 8], sizes = [8, 8], strides = [1, 1]} : vector<8x32xbf16> to vector<8x8xbf16>
    %48 = vector.extract_strided_slice %24 {offsets = [8, 0], sizes = [8, 8], strides = [1, 1]} : vector<32x8xbf16> to vector<8x8xbf16>
    %cst_21 = arith.constant dense<0.000000e+00> : vector<8x8xf32>
    %49 = tpu.matmul %47, %48, %cst_21 {dimension_numbers = #tpu.dot_dimension_numbers<[1], [0], [0], [1], [0, 0, 1, 1], [], []>} : vector<8x8xbf16>, vector<8x8xbf16>, vector<8x8xf32> -> vector<8x8xf32>
    %50 = vector.broadcast %9 : vector<1x8xf32> to vector<8x8xf32>
    %51 = arith.addf %49, %50 : vector<8x8xf32>
    %cst_22 = arith.constant dense<0xFF800000> : vector<8xf32>
    %52 = vector.multi_reduction <maximumf>, %51, %cst_22 [1] : vector<8x8xf32> to vector<8xf32>
    %53 = vector.shape_cast %52 : vector<8xf32> to vector<8x1xf32>
    %54 = vector.broadcast %53 : vector<8x1xf32> to vector<8x8xf32>
    %55 = arith.subf %51, %54 : vector<8x8xf32>
    %56 = math.exp %55 : vector<8x8xf32>
    %cst_23 = arith.constant dense<0.000000e+00> : vector<8xf32>
    %57 = vector.multi_reduction <add>, %56, %cst_23 [1] : vector<8x8xf32> to vector<8xf32>
    %58 = vector.shape_cast %57 : vector<8xf32> to vector<8x1xf32>
    %59 = arith.truncf %56 : vector<8x8xf32> to vector<8x8xbf16>
    %60 = vector.extract_strided_slice %28 {offsets = [0, 8], sizes = [8, 8], strides = [1, 1]} : vector<8x32xbf16> to vector<8x8xbf16>
    %cst_24 = arith.constant dense<0.000000e+00> : vector<8x8xf32>
    %61 = tpu.matmul %59, %60, %cst_24 {dimension_numbers = #tpu.dot_dimension_numbers<[1], [0], [0], [1], [0, 0, 1, 1], [], []>} : vector<8x8xbf16>, vector<8x8xbf16>, vector<8x8xf32> -> vector<8x8xf32>
    %62 = tpu.reciprocal %58 {approx = true} : vector<8x1xf32> -> vector<8x1xf32>
    %63 = vector.broadcast %62 : vector<8x1xf32> to vector<8x8xf32>
    %64 = arith.mulf %61, %63 : vector<8x8xf32>
    %65 = vector.extract_strided_slice %27 {offsets = [0, 16], sizes = [8, 8], strides = [1, 1]} : vector<8x32xbf16> to vector<8x8xbf16>
    %66 = vector.extract_strided_slice %24 {offsets = [16, 0], sizes = [8, 8], strides = [1, 1]} : vector<32x8xbf16> to vector<8x8xbf16>
    %cst_25 = arith.constant dense<0.000000e+00> : vector<8x8xf32>
    %67 = tpu.matmul %65, %66, %cst_25 {dimension_numbers = #tpu.dot_dimension_numbers<[1], [0], [0], [1], [0, 0, 1, 1], [], []>} : vector<8x8xbf16>, vector<8x8xbf16>, vector<8x8xf32> -> vector<8x8xf32>
    %68 = vector.broadcast %9 : vector<1x8xf32> to vector<8x8xf32>
    %69 = arith.addf %67, %68 : vector<8x8xf32>
    %cst_26 = arith.constant dense<0xFF800000> : vector<8xf32>
    %70 = vector.multi_reduction <maximumf>, %69, %cst_26 [1] : vector<8x8xf32> to vector<8xf32>
    %71 = vector.shape_cast %70 : vector<8xf32> to vector<8x1xf32>
    %72 = vector.broadcast %71 : vector<8x1xf32> to vector<8x8xf32>
    %73 = arith.subf %69, %72 : vector<8x8xf32>
    %74 = math.exp %73 : vector<8x8xf32>
    %cst_27 = arith.constant dense<0.000000e+00> : vector<8xf32>
    %75 = vector.multi_reduction <add>, %74, %cst_27 [1] : vector<8x8xf32> to vector<8xf32>
    %76 = vector.shape_cast %75 : vector<8xf32> to vector<8x1xf32>
    %77 = arith.truncf %74 : vector<8x8xf32> to vector<8x8xbf16>
    %78 = vector.extract_strided_slice %28 {offsets = [0, 16], sizes = [8, 8], strides = [1, 1]} : vector<8x32xbf16> to vector<8x8xbf16>
    %cst_28 = arith.constant dense<0.000000e+00> : vector<8x8xf32>
    %79 = tpu.matmul %77, %78, %cst_28 {dimension_numbers = #tpu.dot_dimension_numbers<[1], [0], [0], [1], [0, 0, 1, 1], [], []>} : vector<8x8xbf16>, vector<8x8xbf16>, vector<8x8xf32> -> vector<8x8xf32>
    %80 = tpu.reciprocal %76 {approx = true} : vector<8x1xf32> -> vector<8x1xf32>
    %81 = vector.broadcast %80 : vector<8x1xf32> to vector<8x8xf32>
    %82 = arith.mulf %79, %81 : vector<8x8xf32>
    %83 = vector.extract_strided_slice %27 {offsets = [0, 24], sizes = [8, 8], strides = [1, 1]} : vector<8x32xbf16> to vector<8x8xbf16>
    %84 = vector.extract_strided_slice %24 {offsets = [24, 0], sizes = [8, 8], strides = [1, 1]} : vector<32x8xbf16> to vector<8x8xbf16>
    %cst_29 = arith.constant dense<0.000000e+00> : vector<8x8xf32>
    %85 = tpu.matmul %83, %84, %cst_29 {dimension_numbers = #tpu.dot_dimension_numbers<[1], [0], [0], [1], [0, 0, 1, 1], [], []>} : vector<8x8xbf16>, vector<8x8xbf16>, vector<8x8xf32> -> vector<8x8xf32>
    %86 = vector.broadcast %9 : vector<1x8xf32> to vector<8x8xf32>
    %87 = arith.addf %85, %86 : vector<8x8xf32>
    %cst_30 = arith.constant dense<0xFF800000> : vector<8xf32>
    %88 = vector.multi_reduction <maximumf>, %87, %cst_30 [1] : vector<8x8xf32> to vector<8xf32>
    %89 = vector.shape_cast %88 : vector<8xf32> to vector<8x1xf32>
    %90 = vector.broadcast %89 : vector<8x1xf32> to vector<8x8xf32>
    %91 = arith.subf %87, %90 : vector<8x8xf32>
    %92 = math.exp %91 : vector<8x8xf32>
    %cst_31 = arith.constant dense<0.000000e+00> : vector<8xf32>
    %93 = vector.multi_reduction <add>, %92, %cst_31 [1] : vector<8x8xf32> to vector<8xf32>
    %94 = vector.shape_cast %93 : vector<8xf32> to vector<8x1xf32>
    %95 = arith.truncf %92 : vector<8x8xf32> to vector<8x8xbf16>
    %96 = vector.extract_strided_slice %28 {offsets = [0, 24], sizes = [8, 8], strides = [1, 1]} : vector<8x32xbf16> to vector<8x8xbf16>
    %cst_32 = arith.constant dense<0.000000e+00> : vector<8x8xf32>
    %97 = tpu.matmul %95, %96, %cst_32 {dimension_numbers = #tpu.dot_dimension_numbers<[1], [0], [0], [1], [0, 0, 1, 1], [], []>} : vector<8x8xbf16>, vector<8x8xbf16>, vector<8x8xf32> -> vector<8x8xf32>
    %98 = tpu.reciprocal %94 {approx = true} : vector<8x1xf32> -> vector<8x1xf32>
    %99 = vector.broadcast %98 : vector<8x1xf32> to vector<8x8xf32>
    %100 = arith.mulf %97, %99 : vector<8x8xf32>
    %101 = tpu.concatenate %46, %64, %82, %100 in 1 : vector<8x8xf32>, vector<8x8xf32>, vector<8x8xf32>, vector<8x8xf32> -> vector<8x32xf32>
    %102 = arith.truncf %101 : vector<8x32xf32> to vector<8x32xbf16>
    %c0_33 = arith.constant 0 : index
    %c0_34 = arith.constant 0 : index
    %103 = vector.load %arg8[%c0_33, %c0_34] : memref<32x32xbf16, #tpu.memory_space<vmem>>, vector<32x32xbf16>
    %cst_35 = arith.constant dense<0.000000e+00> : vector<8x32xf32>
    %104 = tpu.matmul %102, %103, %cst_35 {dimension_numbers = #tpu.dot_dimension_numbers<[1], [0], [0], [1], [0, 0, 1, 1], [], []>} : vector<8x32xbf16>, vector<32x32xbf16>, vector<8x32xf32> -> vector<8x32xf32>
    %c0_36 = arith.constant 0 : index
    %c0_37 = arith.constant 0 : index
    %105 = vector.load %arg9[%c0_36, %c0_37] : memref<1x32xf32, #tpu.memory_space<vmem>>, vector<1x32xf32>
    %106 = vector.broadcast %105 : vector<1x32xf32> to vector<8x32xf32>
    %107 = arith.addf %104, %106 : vector<8x32xf32>
    %108 = arith.addf %7, %107 : vector<8x32xf32>
    %c0_38 = arith.constant 0 : index
    %c0_39 = arith.constant 0 : index
    %109 = vector.load %arg10[%c0_38, %c0_39] : memref<1x32xf32, #tpu.memory_space<vmem>>, vector<1x32xf32>
    %c0_40 = arith.constant 0 : index
    %c0_41 = arith.constant 0 : index
    %110 = vector.load %arg11[%c0_40, %c0_41] : memref<1x32xf32, #tpu.memory_space<vmem>>, vector<1x32xf32>
    %cst_42 = arith.constant dense<0.000000e+00> : vector<8xf32>
    %111 = vector.multi_reduction <add>, %108, %cst_42 [1] : vector<8x32xf32> to vector<8xf32>
    %112 = vector.shape_cast %111 : vector<8xf32> to vector<8x1xf32>
    %cst_43 = arith.constant 3.200000e+01 : f32
    %113 = vector.broadcast %cst_43 : f32 to vector<8x1xf32>
    %114 = arith.divf %112, %113 : vector<8x1xf32>
    %115 = vector.broadcast %114 : vector<8x1xf32> to vector<8x32xf32>
    %116 = arith.subf %108, %115 : vector<8x32xf32>
    %117 = arith.mulf %116, %116 : vector<8x32xf32>
    %cst_44 = arith.constant dense<0.000000e+00> : vector<8xf32>
    %118 = vector.multi_reduction <add>, %117, %cst_44 [1] : vector<8x32xf32> to vector<8xf32>
    %119 = vector.shape_cast %118 : vector<8xf32> to vector<8x1xf32>
    %cst_45 = arith.constant 3.200000e+01 : f32
    %120 = vector.broadcast %cst_45 : f32 to vector<8x1xf32>
    %121 = arith.divf %119, %120 : vector<8x1xf32>
    %cst_46 = arith.constant 9.99999974E-6 : f32
    %122 = vector.broadcast %cst_46 : f32 to vector<8x1xf32>
    %123 = arith.addf %121, %122 : vector<8x1xf32>
    %124 = math.rsqrt %123 : vector<8x1xf32>
    %125 = vector.broadcast %124 : vector<8x1xf32> to vector<8x32xf32>
    %126 = arith.mulf %116, %125 : vector<8x32xf32>
    %127 = vector.broadcast %109 : vector<1x32xf32> to vector<8x32xf32>
    %128 = arith.mulf %126, %127 : vector<8x32xf32>
    %129 = vector.broadcast %110 : vector<1x32xf32> to vector<8x32xf32>
    %130 = arith.addf %128, %129 : vector<8x32xf32>
    %131 = arith.truncf %130 : vector<8x32xf32> to vector<8x32xbf16>
    %c0_47 = arith.constant 0 : index
    %c0_48 = arith.constant 0 : index
    %132 = vector.load %arg12[%c0_47, %c0_48] : memref<32x64xbf16, #tpu.memory_space<vmem>>, vector<32x64xbf16>
    %cst_49 = arith.constant dense<0.000000e+00> : vector<8x64xf32>
    %133 = tpu.matmul %131, %132, %cst_49 {dimension_numbers = #tpu.dot_dimension_numbers<[1], [0], [0], [1], [0, 0, 1, 1], [], []>} : vector<8x32xbf16>, vector<32x64xbf16>, vector<8x64xf32> -> vector<8x64xf32>
    %c0_50 = arith.constant 0 : index
    %c0_51 = arith.constant 0 : index
    %134 = vector.load %arg13[%c0_50, %c0_51] : memref<1x64xf32, #tpu.memory_space<vmem>>, vector<1x64xf32>
    %135 = vector.broadcast %134 : vector<1x64xf32> to vector<8x64xf32>
    %136 = arith.addf %133, %135 : vector<8x64xf32>
    %cst_52 = arith.constant 0.000000e+00 : f32
    %137 = vector.broadcast %cst_52 : f32 to vector<8x64xf32>
    %138 = arith.maximumf %136, %137 : vector<8x64xf32>
    %139 = arith.truncf %138 : vector<8x64xf32> to vector<8x64xbf16>
    %c0_53 = arith.constant 0 : index
    %c0_54 = arith.constant 0 : index
    %140 = vector.load %arg14[%c0_53, %c0_54] : memref<64x32xbf16, #tpu.memory_space<vmem>>, vector<64x32xbf16>
    %cst_55 = arith.constant dense<0.000000e+00> : vector<8x32xf32>
    %141 = tpu.matmul %139, %140, %cst_55 {dimension_numbers = #tpu.dot_dimension_numbers<[1], [0], [0], [1], [0, 0, 1, 1], [], []>} : vector<8x64xbf16>, vector<64x32xbf16>, vector<8x32xf32> -> vector<8x32xf32>
    %c0_56 = arith.constant 0 : index
    %c0_57 = arith.constant 0 : index
    %142 = vector.load %arg15[%c0_56, %c0_57] : memref<1x32xf32, #tpu.memory_space<vmem>>, vector<1x32xf32>
    %143 = vector.broadcast %142 : vector<1x32xf32> to vector<8x32xf32>
    %144 = arith.addf %141, %143 : vector<8x32xf32>
    %145 = arith.addf %130, %144 : vector<8x32xf32>
    %c0_58 = arith.constant 0 : index
    %c0_59 = arith.constant 0 : index
    %146 = vector.load %arg16[%c0_58, %c0_59] : memref<1x32xf32, #tpu.memory_space<vmem>>, vector<1x32xf32>
    %c0_60 = arith.constant 0 : index
    %c0_61 = arith.constant 0 : index
    %147 = vector.load %arg17[%c0_60, %c0_61] : memref<1x32xf32, #tpu.memory_space<vmem>>, vector<1x32xf32>
    %cst_62 = arith.constant dense<0.000000e+00> : vector<8xf32>
    %148 = vector.multi_reduction <add>, %145, %cst_62 [1] : vector<8x32xf32> to vector<8xf32>
    %149 = vector.shape_cast %148 : vector<8xf32> to vector<8x1xf32>
    %cst_63 = arith.constant 3.200000e+01 : f32
    %150 = vector.broadcast %cst_63 : f32 to vector<8x1xf32>
    %151 = arith.divf %149, %150 : vector<8x1xf32>
    %152 = vector.broadcast %151 : vector<8x1xf32> to vector<8x32xf32>
    %153 = arith.subf %145, %152 : vector<8x32xf32>
    %154 = arith.mulf %153, %153 : vector<8x32xf32>
    %cst_64 = arith.constant dense<0.000000e+00> : vector<8xf32>
    %155 = vector.multi_reduction <add>, %154, %cst_64 [1] : vector<8x32xf32> to vector<8xf32>
    %156 = vector.shape_cast %155 : vector<8xf32> to vector<8x1xf32>
    %cst_65 = arith.constant 3.200000e+01 : f32
    %157 = vector.broadcast %cst_65 : f32 to vector<8x1xf32>
    %158 = arith.divf %156, %157 : vector<8x1xf32>
    %cst_66 = arith.constant 9.99999974E-6 : f32
    %159 = vector.broadcast %cst_66 : f32 to vector<8x1xf32>
    %160 = arith.addf %158, %159 : vector<8x1xf32>
    %161 = math.rsqrt %160 : vector<8x1xf32>
    %162 = vector.broadcast %161 : vector<8x1xf32> to vector<8x32xf32>
    %163 = arith.mulf %153, %162 : vector<8x32xf32>
    %164 = vector.broadcast %146 : vector<1x32xf32> to vector<8x32xf32>
    %165 = arith.mulf %163, %164 : vector<8x32xf32>
    %166 = vector.broadcast %147 : vector<1x32xf32> to vector<8x32xf32>
    %167 = arith.addf %165, %166 : vector<8x32xf32>
    %c0_67 = arith.constant 0 : index
    %c0_68 = arith.constant 0 : index
    %c0_69 = arith.constant 0 : index
    %168 = vector.load %arg18[%c0_67, %c0_68, %c0_69] : memref<1x8x32xf32, #tpu.memory_space<vmem>>, vector<1x8x32xf32>
    %169 = vector.shape_cast %168 : vector<1x8x32xf32> to vector<8x32xf32>
    %170 = vector.shape_cast %167 : vector<8x32xf32> to vector<1x8x32xf32>
    tpu.vector_store %arg18[%c0_67, %c0_68, %c0_69], %170 {strides = array<i32>} : memref<1x8x32xf32, #tpu.memory_space<vmem>>, vector<1x8x32xf32>,
    return
  }
  func.func @transform_0(%arg0: i32, %arg1: i32) -> (i32, i32, i32) {
    %c0_i32 = arith.constant 0 : i32
    %c0_i32_0 = arith.constant 0 : i32
    %c0_i32_1 = arith.constant 0 : i32
    return %arg0, %c0_i32, %c0_i32_0 : i32, i32, i32
  }
  func.func @transform_1(%arg0: i32, %arg1: i32) -> (i32, i32, i32) {
    %c0_i32 = arith.constant 0 : i32
    %c0_i32_0 = arith.constant 0 : i32
    %c0_i32_1 = arith.constant 0 : i32
    return %arg0, %c0_i32, %c0_i32_0 : i32, i32, i32
  }
  func.func @transform_2(%arg0: i32, %arg1: i32) -> (i32, i32) {
    %c0_i32 = arith.constant 0 : i32
    %c0_i32_0 = arith.constant 0 : i32
    %c0_i32_1 = arith.constant 0 : i32
    return %c0_i32, %c0_i32_0 : i32, i32
  }
  func.func @transform_3(%arg0: i32, %arg1: i32) -> (i32, i32) {
    %c0_i32 = arith.constant 0 : i32
    %c0_i32_0 = arith.constant 0 : i32
    %c0_i32_1 = arith.constant 0 : i32
    return %c0_i32, %c0_i32_0 : i32, i32
  }
  func.func @transform_4(%arg0: i32, %arg1: i32) -> (i32, i32) {
    %c0_i32 = arith.constant 0 : i32
    %c0_i32_0 = arith.constant 0 : i32
    %c0_i32_1 = arith.constant 0 : i32
    return %c0_i32, %c0_i32_0 : i32, i32
  }
  func.func @transform_5(%arg0: i32, %arg1: i32) -> (i32, i32) {
    %c0_i32 = arith.constant 0 : i32
    %c0_i32_0 = arith.constant 0 : i32
    %c0_i32_1 = arith.constant 0 : i32
    return %c0_i32, %c0_i32_0 : i32, i32
  }
  func.func @transform_6(%arg0: i32, %arg1: i32) -> (i32, i32) {
    %c0_i32 = arith.constant 0 : i32
    %c0_i32_0 = arith.constant 0 : i32
    %c0_i32_1 = arith.constant 0 : i32
    return %c0_i32, %c0_i32_0 : i32, i32
  }
  func.func @transform_7(%arg0: i32, %arg1: i32) -> (i32, i32) {
    %c0_i32 = arith.constant 0 : i32
    %c0_i32_0 = arith.constant 0 : i32
    %c0_i32_1 = arith.constant 0 : i32
    return %c0_i32, %c0_i32_0 : i32, i32
  }
  func.func @transform_8(%arg0: i32, %arg1: i32) -> (i32, i32) {
    %c0_i32 = arith.constant 0 : i32
    %c0_i32_0 = arith.constant 0 : i32
    %c0_i32_1 = arith.constant 0 : i32
    return %c0_i32, %c0_i32_0 : i32, i32
  }
  func.func @transform_9(%arg0: i32, %arg1: i32) -> (i32, i32) {
    %c0_i32 = arith.constant 0 : i32
    %c0_i32_0 = arith.constant 0 : i32
    %c0_i32_1 = arith.constant 0 : i32
    return %c0_i32, %c0_i32_0 : i32, i32
  }
  func.func @transform_10(%arg0: i32, %arg1: i32) -> (i32, i32) {
    %c0_i32 = arith.constant 0 : i32
    %c0_i32_0 = arith.constant 0 : i32
    %c0_i32_1 = arith.constant 0 : i32
    return %c0_i32, %c0_i32_0 : i32, i32
  }
  func.func @transform_11(%arg0: i32, %arg1: i32) -> (i32, i32) {
    %c0_i32 = arith.constant 0 : i32
    %c0_i32_0 = arith.constant 0 : i32
    %c0_i32_1 = arith.constant 0 : i32
    return %c0_i32, %c0_i32_0 : i32, i32
  }
  func.func @transform_12(%arg0: i32, %arg1: i32) -> (i32, i32) {
    %c0_i32 = arith.constant 0 : i32
    %c0_i32_0 = arith.constant 0 : i32
    %c0_i32_1 = arith.constant 0 : i32
    return %c0_i32, %c0_i32_0 : i32, i32
  }
  func.func @transform_13(%arg0: i32, %arg1: i32) -> (i32, i32) {
    %c0_i32 = arith.constant 0 : i32
    %c0_i32_0 = arith.constant 0 : i32
    %c0_i32_1 = arith.constant 0 : i32
    return %c0_i32, %c0_i32_0 : i32, i32
  }
  func.func @transform_14(%arg0: i32, %arg1: i32) -> (i32, i32) {
    %c0_i32 = arith.constant 0 : i32
    %c0_i32_0 = arith.constant 0 : i32
    %c0_i32_1 = arith.constant 0 : i32
    return %c0_i32, %c0_i32_0 : i32, i32
  }
  func.func @transform_15(%arg0: i32, %arg1: i32) -> (i32, i32) {
    %c0_i32 = arith.constant 0 : i32
    %c0_i32_0 = arith.constant 0 : i32
    %c0_i32_1 = arith.constant 0 : i32
    return %c0_i32, %c0_i32_0 : i32, i32
  }
  func.func @transform_16(%arg0: i32, %arg1: i32) -> (i32, i32, i32) {
    %c0_i32 = arith.constant 0 : i32
    %c0_i32_0 = arith.constant 0 : i32
    return %arg0, %arg1, %c0_i32 : i32, i32, i32
  }
}

module attributes {stable_mosaic.version = 11 : i64} {
  func.func @_decoder_layer_kernel(%arg0: i32, %arg1: i32, %arg2: memref<1x8x32xf32, #tpu.memory_space<vmem>>, %arg3: memref<1x8x32xf32, #tpu.memory_space<vmem>>, %arg4: memref<1x1x8xf32, #tpu.memory_space<vmem>>, %arg5: memref<1x1x8xf32, #tpu.memory_space<vmem>>, %arg6: memref<32x32xbf16, #tpu.memory_space<vmem>>, %arg7: memref<1x32xf32, #tpu.memory_space<vmem>>, %arg8: memref<32x64xbf16, #tpu.memory_space<vmem>>, %arg9: memref<1x64xf32, #tpu.memory_space<vmem>>, %arg10: memref<32x32xbf16, #tpu.memory_space<vmem>>, %arg11: memref<1x32xf32, #tpu.memory_space<vmem>>, %arg12: memref<1x32xf32, #tpu.memory_space<vmem>>, %arg13: memref<1x32xf32, #tpu.memory_space<vmem>>, %arg14: memref<32x32xbf16, #tpu.memory_space<vmem>>, %arg15: memref<1x32xf32, #tpu.memory_space<vmem>>, %arg16: memref<32x64xbf16, #tpu.memory_space<vmem>>, %arg17: memref<1x64xf32, #tpu.memory_space<vmem>>, %arg18: memref<32x32xbf16, #tpu.memory_space<vmem>>, %arg19: memref<1x32xf32, #tpu.memory_space<vmem>>, %arg20: memref<1x32xf32, #tpu.memory_space<vmem>>, %arg21: memref<1x32xf32, #tpu.memory_space<vmem>>, %arg22: memref<32x64xbf16, #tpu.memory_space<vmem>>, %arg23: memref<1x64xf32, #tpu.memory_space<vmem>>, %arg24: memref<64x32xbf16, #tpu.memory_space<vmem>>, %arg25: memref<1x32xf32, #tpu.memory_space<vmem>>, %arg26: memref<1x32xf32, #tpu.memory_space<vmem>>, %arg27: memref<1x32xf32, #tpu.memory_space<vmem>>, %arg28: memref<1x8x32xf32, #tpu.memory_space<vmem>>) attributes {dimension_semantics = [#tpu.dimension_semantics<parallel>, #tpu.dimension_semantics<parallel>], iteration_bounds = array<i64: 2, 1>, scalar_prefetch = 0 : i64, scratch_operands = 0 : i64, tpu.core_type = #tpu.core_type<tc>, window_params = [{transform_indices = @transform_0, window_bounds = array<i64: 1, 8, 32>}, {transform_indices = @transform_1, window_bounds = array<i64: 1, 8, 32>}, {transform_indices = @transform_2, window_bounds = array<i64: 1, 1, 8>}, {transform_indices = @transform_3, window_bounds = array<i64: 1, 1, 8>}, {pipeline_mode = #tpu.pipeline_mode<synchronous>, transform_indices = @transform_4, window_bounds = array<i64: 32, 32>}, {pipeline_mode = #tpu.pipeline_mode<synchronous>, transform_indices = @transform_5, window_bounds = array<i64: 1, 32>}, {pipeline_mode = #tpu.pipeline_mode<synchronous>, transform_indices = @transform_6, window_bounds = array<i64: 32, 64>}, {pipeline_mode = #tpu.pipeline_mode<synchronous>, transform_indices = @transform_7, window_bounds = array<i64: 1, 64>}, {pipeline_mode = #tpu.pipeline_mode<synchronous>, transform_indices = @transform_8, window_bounds = array<i64: 32, 32>}, {pipeline_mode = #tpu.pipeline_mode<synchronous>, transform_indices = @transform_9, window_bounds = array<i64: 1, 32>}, {pipeline_mode = #tpu.pipeline_mode<synchronous>, transform_indices = @transform_10, window_bounds = array<i64: 1, 32>}, {pipeline_mode = #tpu.pipeline_mode<synchronous>, transform_indices = @transform_11, window_bounds = array<i64: 1, 32>}, {pipeline_mode = #tpu.pipeline_mode<synchronous>, transform_indices = @transform_12, window_bounds = array<i64: 32, 32>}, {pipeline_mode = #tpu.pipeline_mode<synchronous>, transform_indices = @transform_13, window_bounds = array<i64: 1, 32>}, {pipeline_mode = #tpu.pipeline_mode<synchronous>, transform_indices = @transform_14, window_bounds = array<i64: 32, 64>}, {pipeline_mode = #tpu.pipeline_mode<synchronous>, transform_indices = @transform_15, window_bounds = array<i64: 1, 64>}, {pipeline_mode = #tpu.pipeline_mode<synchronous>, transform_indices = @transform_16, window_bounds = array<i64: 32, 32>}, {pipeline_mode = #tpu.pipeline_mode<synchronous>, transform_indices = @transform_17, window_bounds = array<i64: 1, 32>}, {pipeline_mode = #tpu.pipeline_mode<synchronous>, transform_indices = @transform_18, window_bounds = array<i64: 1, 32>}, {pipeline_mode = #tpu.pipeline_mode<synchronous>, transform_indices = @transform_19, window_bounds = array<i64: 1, 32>}, {pipeline_mode = #tpu.pipeline_mode<synchronous>, transform_indices = @transform_20, window_bounds = array<i64: 32, 64>}, {pipeline_mode = #tpu.pipeline_mode<synchronous>, transform_indices = @transform_21, window_bounds = array<i64: 1, 64>}, {pipeline_mode = #tpu.pipeline_mode<synchronous>, transform_indices = @transform_22, window_bounds = array<i64: 64, 32>}, {pipeline_mode = #tpu.pipeline_mode<synchronous>, transform_indices = @transform_23, window_bounds = array<i64: 1, 32>}, {pipeline_mode = #tpu.pipeline_mode<synchronous>, transform_indices = @transform_24, window_bounds = array<i64: 1, 32>}, {pipeline_mode = #tpu.pipeline_mode<synchronous>, transform_indices = @transform_25, window_bounds = array<i64: 1, 32>}, {transform_indices = @transform_26, window_bounds = array<i64: 1, 8, 32>}]} {
    %c8_i32 = arith.constant 8 : i32
    %0 = arith.muli %arg1, %c8_i32 : i32
    %1 = tpu.assume_multiple %0, 8 : i32
    %c0 = arith.constant 0 : index
    %c0_0 = arith.constant 0 : index
    %c0_1 = arith.constant 0 : index
    %2 = vector.load %arg2[%c0, %c0_0, %c0_1] : memref<1x8x32xf32, #tpu.memory_space<vmem>>, vector<1x8x32xf32>
    %3 = vector.shape_cast %2 : vector<1x8x32xf32> to vector<8x32xf32>
    %4 = arith.truncf %3 : vector<8x32xf32> to vector<8x32xbf16>
    %c0_2 = arith.constant 0 : index
    %5 = arith.index_cast %1 : i32 to index
    %c0_3 = arith.constant 0 : index
    %6 = vector.load %arg2[%c0_2, %5, %c0_3] : memref<1x8x32xf32, #tpu.memory_space<vmem>>, vector<1x8x32xf32>
    %7 = vector.shape_cast %6 : vector<1x8x32xf32> to vector<8x32xf32>
    %c0_4 = arith.constant 0 : index
    %c0_5 = arith.constant 0 : index
    %c0_6 = arith.constant 0 : index
    %8 = vector.load %arg3[%c0_4, %c0_5, %c0_6] : memref<1x8x32xf32, #tpu.memory_space<vmem>>, vector<1x8x32xf32>
    %9 = vector.shape_cast %8 : vector<1x8x32xf32> to vector<8x32xf32>
    %10 = arith.truncf %9 : vector<8x32xf32> to vector<8x32xbf16>
    %c0_7 = arith.constant 0 : index
    %c0_8 = arith.constant 0 : index
    %c0_9 = arith.constant 0 : index
    %11 = vector.load %arg4[%c0_7, %c0_8, %c0_9] : memref<1x1x8xf32, #tpu.memory_space<vmem>>, vector<1x1x8xf32>
    %12 = vector.shape_cast %11 : vector<1x1x8xf32> to vector<1x8xf32>
    %c0_10 = arith.constant 0 : index
    %c0_11 = arith.constant 0 : index
    %c0_12 = arith.constant 0 : index
    %13 = vector.load %arg5[%c0_10, %c0_11, %c0_12] : memref<1x1x8xf32, #tpu.memory_space<vmem>>, vector<1x1x8xf32>
    %14 = vector.shape_cast %13 : vector<1x1x8xf32> to vector<1x8xf32>
    %c0_13 = arith.constant 0 : index
    %c0_14 = arith.constant 0 : index
    %15 = vector.load %arg8[%c0_13, %c0_14] : memref<32x64xbf16, #tpu.memory_space<vmem>>, vector<32x64xbf16>
    %cst = arith.constant dense<0.000000e+00> : vector<8x64xf32>
    %16 = tpu.matmul %4, %15, %cst {dimension_numbers = #tpu.dot_dimension_numbers<[1], [0], [0], [1], [0, 0, 1, 1], [], []>} : vector<8x32xbf16>, vector<32x64xbf16>, vector<8x64xf32> -> vector<8x64xf32>
    %c0_15 = arith.constant 0 : index
    %c0_16 = arith.constant 0 : index
    %17 = vector.load %arg9[%c0_15, %c0_16] : memref<1x64xf32, #tpu.memory_space<vmem>>, vector<1x64xf32>
    %18 = vector.broadcast %17 : vector<1x64xf32> to vector<8x64xf32>
    %19 = arith.addf %16, %18 : vector<8x64xf32>
    %20 = arith.truncf %7 : vector<8x32xf32> to vector<8x32xbf16>
    %c0_17 = arith.constant 0 : index
    %c0_18 = arith.constant 0 : index
    %21 = vector.load %arg6[%c0_17, %c0_18] : memref<32x32xbf16, #tpu.memory_space<vmem>>, vector<32x32xbf16>
    %cst_19 = arith.constant dense<0.000000e+00> : vector<8x32xf32>
    %22 = tpu.matmul %20, %21, %cst_19 {dimension_numbers = #tpu.dot_dimension_numbers<[1], [0], [0], [1], [0, 0, 1, 1], [], []>} : vector<8x32xbf16>, vector<32x32xbf16>, vector<8x32xf32> -> vector<8x32xf32>
    %c0_20 = arith.constant 0 : index
    %c0_21 = arith.constant 0 : index
    %23 = vector.load %arg7[%c0_20, %c0_21] : memref<1x32xf32, #tpu.memory_space<vmem>>, vector<1x32xf32>
    %24 = vector.broadcast %23 : vector<1x32xf32> to vector<8x32xf32>
    %25 = arith.addf %22, %24 : vector<8x32xf32>
    %26 = vector.extract_strided_slice %19 {offsets = [0, 0], sizes = [8, 32], strides = [1, 1]} : vector<8x64xf32> to vector<8x32xf32>
    %27 = vector.extract_strided_slice %19 {offsets = [0, 32], sizes = [8, 32], strides = [1, 1]} : vector<8x64xf32> to vector<8x32xf32>
    %28 = tpu.transpose %26, [1, 0] : vector<8x32xf32> -> vector<32x8xf32>
    %29 = arith.truncf %28 : vector<32x8xf32> to vector<32x8xbf16>
    %cst_22 = arith.constant 0.353553385 : f32
    %30 = vector.broadcast %cst_22 : f32 to vector<8x32xf32>
    %31 = arith.mulf %25, %30 : vector<8x32xf32>
    %32 = arith.truncf %31 : vector<8x32xf32> to vector<8x32xbf16>
    %33 = arith.truncf %27 : vector<8x32xf32> to vector<8x32xbf16>
    %34 = vector.extract_strided_slice %32 {offsets = [0, 0], sizes = [8, 8], strides = [1, 1]} : vector<8x32xbf16> to vector<8x8xbf16>
    %35 = vector.extract_strided_slice %29 {offsets = [0, 0], sizes = [8, 8], strides = [1, 1]} : vector<32x8xbf16> to vector<8x8xbf16>
    %cst_23 = arith.constant dense<0.000000e+00> : vector<8x8xf32>
    %36 = tpu.matmul %34, %35, %cst_23 {dimension_numbers = #tpu.dot_dimension_numbers<[1], [0], [0], [1], [0, 0, 1, 1], [], []>} : vector<8x8xbf16>, vector<8x8xbf16>, vector<8x8xf32> -> vector<8x8xf32>
    %37 = vector.broadcast %12 : vector<1x8xf32> to vector<8x8xf32>
    %38 = arith.addf %36, %37 : vector<8x8xf32>
    %cst_24 = arith.constant dense<0xFF800000> : vector<8xf32>
    %39 = vector.multi_reduction <maximumf>, %38, %cst_24 [1] : vector<8x8xf32> to vector<8xf32>
    %40 = vector.shape_cast %39 : vector<8xf32> to vector<8x1xf32>
    %41 = vector.broadcast %40 : vector<8x1xf32> to vector<8x8xf32>
    %42 = arith.subf %38, %41 : vector<8x8xf32>
    %43 = math.exp %42 : vector<8x8xf32>
    %cst_25 = arith.constant dense<0.000000e+00> : vector<8xf32>
    %44 = vector.multi_reduction <add>, %43, %cst_25 [1] : vector<8x8xf32> to vector<8xf32>
    %45 = vector.shape_cast %44 : vector<8xf32> to vector<8x1xf32>
    %46 = arith.truncf %43 : vector<8x8xf32> to vector<8x8xbf16>
    %47 = vector.extract_strided_slice %33 {offsets = [0, 0], sizes = [8, 8], strides = [1, 1]} : vector<8x32xbf16> to vector<8x8xbf16>
    %cst_26 = arith.constant dense<0.000000e+00> : vector<8x8xf32>
    %48 = tpu.matmul %46, %47, %cst_26 {dimension_numbers = #tpu.dot_dimension_numbers<[1], [0], [0], [1], [0, 0, 1, 1], [], []>} : vector<8x8xbf16>, vector<8x8xbf16>, vector<8x8xf32> -> vector<8x8xf32>
    %49 = tpu.reciprocal %45 {approx = true} : vector<8x1xf32> -> vector<8x1xf32>
    %50 = vector.broadcast %49 : vector<8x1xf32> to vector<8x8xf32>
    %51 = arith.mulf %48, %50 : vector<8x8xf32>
    %52 = vector.extract_strided_slice %32 {offsets = [0, 8], sizes = [8, 8], strides = [1, 1]} : vector<8x32xbf16> to vector<8x8xbf16>
    %53 = vector.extract_strided_slice %29 {offsets = [8, 0], sizes = [8, 8], strides = [1, 1]} : vector<32x8xbf16> to vector<8x8xbf16>
    %cst_27 = arith.constant dense<0.000000e+00> : vector<8x8xf32>
    %54 = tpu.matmul %52, %53, %cst_27 {dimension_numbers = #tpu.dot_dimension_numbers<[1], [0], [0], [1], [0, 0, 1, 1], [], []>} : vector<8x8xbf16>, vector<8x8xbf16>, vector<8x8xf32> -> vector<8x8xf32>
    %55 = vector.broadcast %12 : vector<1x8xf32> to vector<8x8xf32>
    %56 = arith.addf %54, %55 : vector<8x8xf32>
    %cst_28 = arith.constant dense<0xFF800000> : vector<8xf32>
    %57 = vector.multi_reduction <maximumf>, %56, %cst_28 [1] : vector<8x8xf32> to vector<8xf32>
    %58 = vector.shape_cast %57 : vector<8xf32> to vector<8x1xf32>
    %59 = vector.broadcast %58 : vector<8x1xf32> to vector<8x8xf32>
    %60 = arith.subf %56, %59 : vector<8x8xf32>
    %61 = math.exp %60 : vector<8x8xf32>
    %cst_29 = arith.constant dense<0.000000e+00> : vector<8xf32>
    %62 = vector.multi_reduction <add>, %61, %cst_29 [1] : vector<8x8xf32> to vector<8xf32>
    %63 = vector.shape_cast %62 : vector<8xf32> to vector<8x1xf32>
    %64 = arith.truncf %61 : vector<8x8xf32> to vector<8x8xbf16>
    %65 = vector.extract_strided_slice %33 {offsets = [0, 8], sizes = [8, 8], strides = [1, 1]} : vector<8x32xbf16> to vector<8x8xbf16>
    %cst_30 = arith.constant dense<0.000000e+00> : vector<8x8xf32>
    %66 = tpu.matmul %64, %65, %cst_30 {dimension_numbers = #tpu.dot_dimension_numbers<[1], [0], [0], [1], [0, 0, 1, 1], [], []>} : vector<8x8xbf16>, vector<8x8xbf16>, vector<8x8xf32> -> vector<8x8xf32>
    %67 = tpu.reciprocal %63 {approx = true} : vector<8x1xf32> -> vector<8x1xf32>
    %68 = vector.broadcast %67 : vector<8x1xf32> to vector<8x8xf32>
    %69 = arith.mulf %66, %68 : vector<8x8xf32>
    %70 = vector.extract_strided_slice %32 {offsets = [0, 16], sizes = [8, 8], strides = [1, 1]} : vector<8x32xbf16> to vector<8x8xbf16>
    %71 = vector.extract_strided_slice %29 {offsets = [16, 0], sizes = [8, 8], strides = [1, 1]} : vector<32x8xbf16> to vector<8x8xbf16>
    %cst_31 = arith.constant dense<0.000000e+00> : vector<8x8xf32>
    %72 = tpu.matmul %70, %71, %cst_31 {dimension_numbers = #tpu.dot_dimension_numbers<[1], [0], [0], [1], [0, 0, 1, 1], [], []>} : vector<8x8xbf16>, vector<8x8xbf16>, vector<8x8xf32> -> vector<8x8xf32>
    %73 = vector.broadcast %12 : vector<1x8xf32> to vector<8x8xf32>
    %74 = arith.addf %72, %73 : vector<8x8xf32>
    %cst_32 = arith.constant dense<0xFF800000> : vector<8xf32>
    %75 = vector.multi_reduction <maximumf>, %74, %cst_32 [1] : vector<8x8xf32> to vector<8xf32>
    %76 = vector.shape_cast %75 : vector<8xf32> to vector<8x1xf32>
    %77 = vector.broadcast %76 : vector<8x1xf32> to vector<8x8xf32>
    %78 = arith.subf %74, %77 : vector<8x8xf32>
    %79 = math.exp %78 : vector<8x8xf32>
    %cst_33 = arith.constant dense<0.000000e+00> : vector<8xf32>
    %80 = vector.multi_reduction <add>, %79, %cst_33 [1] : vector<8x8xf32> to vector<8xf32>
    %81 = vector.shape_cast %80 : vector<8xf32> to vector<8x1xf32>
    %82 = arith.truncf %79 : vector<8x8xf32> to vector<8x8xbf16>
    %83 = vector.extract_strided_slice %33 {offsets = [0, 16], sizes = [8, 8], strides = [1, 1]} : vector<8x32xbf16> to vector<8x8xbf16>
    %cst_34 = arith.constant dense<0.000000e+00> : vector<8x8xf32>
    %84 = tpu.matmul %82, %83, %cst_34 {dimension_numbers = #tpu.dot_dimension_numbers<[1], [0], [0], [1], [0, 0, 1, 1], [], []>} : vector<8x8xbf16>, vector<8x8xbf16>, vector<8x8xf32> -> vector<8x8xf32>
    %85 = tpu.reciprocal %81 {approx = true} : vector<8x1xf32> -> vector<8x1xf32>
    %86 = vector.broadcast %85 : vector<8x1xf32> to vector<8x8xf32>
    %87 = arith.mulf %84, %86 : vector<8x8xf32>
    %88 = vector.extract_strided_slice %32 {offsets = [0, 24], sizes = [8, 8], strides = [1, 1]} : vector<8x32xbf16> to vector<8x8xbf16>
    %89 = vector.extract_strided_slice %29 {offsets = [24, 0], sizes = [8, 8], strides = [1, 1]} : vector<32x8xbf16> to vector<8x8xbf16>
    %cst_35 = arith.constant dense<0.000000e+00> : vector<8x8xf32>
    %90 = tpu.matmul %88, %89, %cst_35 {dimension_numbers = #tpu.dot_dimension_numbers<[1], [0], [0], [1], [0, 0, 1, 1], [], []>} : vector<8x8xbf16>, vector<8x8xbf16>, vector<8x8xf32> -> vector<8x8xf32>
    %91 = vector.broadcast %12 : vector<1x8xf32> to vector<8x8xf32>
    %92 = arith.addf %90, %91 : vector<8x8xf32>
    %cst_36 = arith.constant dense<0xFF800000> : vector<8xf32>
    %93 = vector.multi_reduction <maximumf>, %92, %cst_36 [1] : vector<8x8xf32> to vector<8xf32>
    %94 = vector.shape_cast %93 : vector<8xf32> to vector<8x1xf32>
    %95 = vector.broadcast %94 : vector<8x1xf32> to vector<8x8xf32>
    %96 = arith.subf %92, %95 : vector<8x8xf32>
    %97 = math.exp %96 : vector<8x8xf32>
    %cst_37 = arith.constant dense<0.000000e+00> : vector<8xf32>
    %98 = vector.multi_reduction <add>, %97, %cst_37 [1] : vector<8x8xf32> to vector<8xf32>
    %99 = vector.shape_cast %98 : vector<8xf32> to vector<8x1xf32>
    %100 = arith.truncf %97 : vector<8x8xf32> to vector<8x8xbf16>
    %101 = vector.extract_strided_slice %33 {offsets = [0, 24], sizes = [8, 8], strides = [1, 1]} : vector<8x32xbf16> to vector<8x8xbf16>
    %cst_38 = arith.constant dense<0.000000e+00> : vector<8x8xf32>
    %102 = tpu.matmul %100, %101, %cst_38 {dimension_numbers = #tpu.dot_dimension_numbers<[1], [0], [0], [1], [0, 0, 1, 1], [], []>} : vector<8x8xbf16>, vector<8x8xbf16>, vector<8x8xf32> -> vector<8x8xf32>
    %103 = tpu.reciprocal %99 {approx = true} : vector<8x1xf32> -> vector<8x1xf32>
    %104 = vector.broadcast %103 : vector<8x1xf32> to vector<8x8xf32>
    %105 = arith.mulf %102, %104 : vector<8x8xf32>
    %106 = tpu.concatenate %51, %69, %87, %105 in 1 : vector<8x8xf32>, vector<8x8xf32>, vector<8x8xf32>, vector<8x8xf32> -> vector<8x32xf32>
    %107 = arith.truncf %106 : vector<8x32xf32> to vector<8x32xbf16>
    %c0_39 = arith.constant 0 : index
    %c0_40 = arith.constant 0 : index
    %108 = vector.load %arg10[%c0_39, %c0_40] : memref<32x32xbf16, #tpu.memory_space<vmem>>, vector<32x32xbf16>
    %cst_41 = arith.constant dense<0.000000e+00> : vector<8x32xf32>
    %109 = tpu.matmul %107, %108, %cst_41 {dimension_numbers = #tpu.dot_dimension_numbers<[1], [0], [0], [1], [0, 0, 1, 1], [], []>} : vector<8x32xbf16>, vector<32x32xbf16>, vector<8x32xf32> -> vector<8x32xf32>
    %c0_42 = arith.constant 0 : index
    %c0_43 = arith.constant 0 : index
    %110 = vector.load %arg11[%c0_42, %c0_43] : memref<1x32xf32, #tpu.memory_space<vmem>>, vector<1x32xf32>
    %111 = vector.broadcast %110 : vector<1x32xf32> to vector<8x32xf32>
    %112 = arith.addf %109, %111 : vector<8x32xf32>
    %113 = arith.addf %7, %112 : vector<8x32xf32>
    %c0_44 = arith.constant 0 : index
    %c0_45 = arith.constant 0 : index
    %114 = vector.load %arg12[%c0_44, %c0_45] : memref<1x32xf32, #tpu.memory_space<vmem>>, vector<1x32xf32>
    %c0_46 = arith.constant 0 : index
    %c0_47 = arith.constant 0 : index
    %115 = vector.load %arg13[%c0_46, %c0_47] : memref<1x32xf32, #tpu.memory_space<vmem>>, vector<1x32xf32>
    %cst_48 = arith.constant dense<0.000000e+00> : vector<8xf32>
    %116 = vector.multi_reduction <add>, %113, %cst_48 [1] : vector<8x32xf32> to vector<8xf32>
    %117 = vector.shape_cast %116 : vector<8xf32> to vector<8x1xf32>
    %cst_49 = arith.constant 3.200000e+01 : f32
    %118 = vector.broadcast %cst_49 : f32 to vector<8x1xf32>
    %119 = arith.divf %117, %118 : vector<8x1xf32>
    %120 = vector.broadcast %119 : vector<8x1xf32> to vector<8x32xf32>
    %121 = arith.subf %113, %120 : vector<8x32xf32>
    %122 = arith.mulf %121, %121 : vector<8x32xf32>
    %cst_50 = arith.constant dense<0.000000e+00> : vector<8xf32>
    %123 = vector.multi_reduction <add>, %122, %cst_50 [1] : vector<8x32xf32> to vector<8xf32>
    %124 = vector.shape_cast %123 : vector<8xf32> to vector<8x1xf32>
    %cst_51 = arith.constant 3.200000e+01 : f32
    %125 = vector.broadcast %cst_51 : f32 to vector<8x1xf32>
    %126 = arith.divf %124, %125 : vector<8x1xf32>
    %cst_52 = arith.constant 9.99999974E-6 : f32
    %127 = vector.broadcast %cst_52 : f32 to vector<8x1xf32>
    %128 = arith.addf %126, %127 : vector<8x1xf32>
    %129 = math.rsqrt %128 : vector<8x1xf32>
    %130 = vector.broadcast %129 : vector<8x1xf32> to vector<8x32xf32>
    %131 = arith.mulf %121, %130 : vector<8x32xf32>
    %132 = vector.broadcast %114 : vector<1x32xf32> to vector<8x32xf32>
    %133 = arith.mulf %131, %132 : vector<8x32xf32>
    %134 = vector.broadcast %115 : vector<1x32xf32> to vector<8x32xf32>
    %135 = arith.addf %133, %134 : vector<8x32xf32>
    %c0_53 = arith.constant 0 : index
    %c0_54 = arith.constant 0 : index
    %136 = vector.load %arg16[%c0_53, %c0_54] : memref<32x64xbf16, #tpu.memory_space<vmem>>, vector<32x64xbf16>
    %cst_55 = arith.constant dense<0.000000e+00> : vector<8x64xf32>
    %137 = tpu.matmul %10, %136, %cst_55 {dimension_numbers = #tpu.dot_dimension_numbers<[1], [0], [0], [1], [0, 0, 1, 1], [], []>} : vector<8x32xbf16>, vector<32x64xbf16>, vector<8x64xf32> -> vector<8x64xf32>
    %c0_56 = arith.constant 0 : index
    %c0_57 = arith.constant 0 : index
    %138 = vector.load %arg17[%c0_56, %c0_57] : memref<1x64xf32, #tpu.memory_space<vmem>>, vector<1x64xf32>
    %139 = vector.broadcast %138 : vector<1x64xf32> to vector<8x64xf32>
    %140 = arith.addf %137, %139 : vector<8x64xf32>
    %141 = arith.truncf %135 : vector<8x32xf32> to vector<8x32xbf16>
    %c0_58 = arith.constant 0 : index
    %c0_59 = arith.constant 0 : index
    %142 = vector.load %arg14[%c0_58, %c0_59] : memref<32x32xbf16, #tpu.memory_space<vmem>>, vector<32x32xbf16>
    %cst_60 = arith.constant dense<0.000000e+00> : vector<8x32xf32>
    %143 = tpu.matmul %141, %142, %cst_60 {dimension_numbers = #tpu.dot_dimension_numbers<[1], [0], [0], [1], [0, 0, 1, 1], [], []>} : vector<8x32xbf16>, vector<32x32xbf16>, vector<8x32xf32> -> vector<8x32xf32>
    %c0_61 = arith.constant 0 : index
    %c0_62 = arith.constant 0 : index
    %144 = vector.load %arg15[%c0_61, %c0_62] : memref<1x32xf32, #tpu.memory_space<vmem>>, vector<1x32xf32>
    %145 = vector.broadcast %144 : vector<1x32xf32> to vector<8x32xf32>
    %146 = arith.addf %143, %145 : vector<8x32xf32>
    %147 = vector.extract_strided_slice %140 {offsets = [0, 0], sizes = [8, 32], strides = [1, 1]} : vector<8x64xf32> to vector<8x32xf32>
    %148 = vector.extract_strided_slice %140 {offsets = [0, 32], sizes = [8, 32], strides = [1, 1]} : vector<8x64xf32> to vector<8x32xf32>
    %149 = tpu.transpose %147, [1, 0] : vector<8x32xf32> -> vector<32x8xf32>
    %150 = arith.truncf %149 : vector<32x8xf32> to vector<32x8xbf16>
    %cst_63 = arith.constant 0.353553385 : f32
    %151 = vector.broadcast %cst_63 : f32 to vector<8x32xf32>
    %152 = arith.mulf %146, %151 : vector<8x32xf32>
    %153 = arith.truncf %152 : vector<8x32xf32> to vector<8x32xbf16>
    %154 = arith.truncf %148 : vector<8x32xf32> to vector<8x32xbf16>
    %155 = vector.extract_strided_slice %153 {offsets = [0, 0], sizes = [8, 8], strides = [1, 1]} : vector<8x32xbf16> to vector<8x8xbf16>
    %156 = vector.extract_strided_slice %150 {offsets = [0, 0], sizes = [8, 8], strides = [1, 1]} : vector<32x8xbf16> to vector<8x8xbf16>
    %cst_64 = arith.constant dense<0.000000e+00> : vector<8x8xf32>
    %157 = tpu.matmul %155, %156, %cst_64 {dimension_numbers = #tpu.dot_dimension_numbers<[1], [0], [0], [1], [0, 0, 1, 1], [], []>} : vector<8x8xbf16>, vector<8x8xbf16>, vector<8x8xf32> -> vector<8x8xf32>
    %158 = vector.broadcast %14 : vector<1x8xf32> to vector<8x8xf32>
    %159 = arith.addf %157, %158 : vector<8x8xf32>
    %cst_65 = arith.constant dense<0xFF800000> : vector<8xf32>
    %160 = vector.multi_reduction <maximumf>, %159, %cst_65 [1] : vector<8x8xf32> to vector<8xf32>
    %161 = vector.shape_cast %160 : vector<8xf32> to vector<8x1xf32>
    %162 = vector.broadcast %161 : vector<8x1xf32> to vector<8x8xf32>
    %163 = arith.subf %159, %162 : vector<8x8xf32>
    %164 = math.exp %163 : vector<8x8xf32>
    %cst_66 = arith.constant dense<0.000000e+00> : vector<8xf32>
    %165 = vector.multi_reduction <add>, %164, %cst_66 [1] : vector<8x8xf32> to vector<8xf32>
    %166 = vector.shape_cast %165 : vector<8xf32> to vector<8x1xf32>
    %167 = arith.truncf %164 : vector<8x8xf32> to vector<8x8xbf16>
    %168 = vector.extract_strided_slice %154 {offsets = [0, 0], sizes = [8, 8], strides = [1, 1]} : vector<8x32xbf16> to vector<8x8xbf16>
    %cst_67 = arith.constant dense<0.000000e+00> : vector<8x8xf32>
    %169 = tpu.matmul %167, %168, %cst_67 {dimension_numbers = #tpu.dot_dimension_numbers<[1], [0], [0], [1], [0, 0, 1, 1], [], []>} : vector<8x8xbf16>, vector<8x8xbf16>, vector<8x8xf32> -> vector<8x8xf32>
    %170 = tpu.reciprocal %166 {approx = true} : vector<8x1xf32> -> vector<8x1xf32>
    %171 = vector.broadcast %170 : vector<8x1xf32> to vector<8x8xf32>
    %172 = arith.mulf %169, %171 : vector<8x8xf32>
    %173 = vector.extract_strided_slice %153 {offsets = [0, 8], sizes = [8, 8], strides = [1, 1]} : vector<8x32xbf16> to vector<8x8xbf16>
    %174 = vector.extract_strided_slice %150 {offsets = [8, 0], sizes = [8, 8], strides = [1, 1]} : vector<32x8xbf16> to vector<8x8xbf16>
    %cst_68 = arith.constant dense<0.000000e+00> : vector<8x8xf32>
    %175 = tpu.matmul %173, %174, %cst_68 {dimension_numbers = #tpu.dot_dimension_numbers<[1], [0], [0], [1], [0, 0, 1, 1], [], []>} : vector<8x8xbf16>, vector<8x8xbf16>, vector<8x8xf32> -> vector<8x8xf32>
    %176 = vector.broadcast %14 : vector<1x8xf32> to vector<8x8xf32>
    %177 = arith.addf %175, %176 : vector<8x8xf32>
    %cst_69 = arith.constant dense<0xFF800000> : vector<8xf32>
    %178 = vector.multi_reduction <maximumf>, %177, %cst_69 [1] : vector<8x8xf32> to vector<8xf32>
    %179 = vector.shape_cast %178 : vector<8xf32> to vector<8x1xf32>
    %180 = vector.broadcast %179 : vector<8x1xf32> to vector<8x8xf32>
    %181 = arith.subf %177, %180 : vector<8x8xf32>
    %182 = math.exp %181 : vector<8x8xf32>
    %cst_70 = arith.constant dense<0.000000e+00> : vector<8xf32>
    %183 = vector.multi_reduction <add>, %182, %cst_70 [1] : vector<8x8xf32> to vector<8xf32>
    %184 = vector.shape_cast %183 : vector<8xf32> to vector<8x1xf32>
    %185 = arith.truncf %182 : vector<8x8xf32> to vector<8x8xbf16>
    %186 = vector.extract_strided_slice %154 {offsets = [0, 8], sizes = [8, 8], strides = [1, 1]} : vector<8x32xbf16> to vector<8x8xbf16>
    %cst_71 = arith.constant dense<0.000000e+00> : vector<8x8xf32>
    %187 = tpu.matmul %185, %186, %cst_71 {dimension_numbers = #tpu.dot_dimension_numbers<[1], [0], [0], [1], [0, 0, 1, 1], [], []>} : vector<8x8xbf16>, vector<8x8xbf16>, vector<8x8xf32> -> vector<8x8xf32>
    %188 = tpu.reciprocal %184 {approx = true} : vector<8x1xf32> -> vector<8x1xf32>
    %189 = vector.broadcast %188 : vector<8x1xf32> to vector<8x8xf32>
    %190 = arith.mulf %187, %189 : vector<8x8xf32>
    %191 = vector.extract_strided_slice %153 {offsets = [0, 16], sizes = [8, 8], strides = [1, 1]} : vector<8x32xbf16> to vector<8x8xbf16>
    %192 = vector.extract_strided_slice %150 {offsets = [16, 0], sizes = [8, 8], strides = [1, 1]} : vector<32x8xbf16> to vector<8x8xbf16>
    %cst_72 = arith.constant dense<0.000000e+00> : vector<8x8xf32>
    %193 = tpu.matmul %191, %192, %cst_72 {dimension_numbers = #tpu.dot_dimension_numbers<[1], [0], [0], [1], [0, 0, 1, 1], [], []>} : vector<8x8xbf16>, vector<8x8xbf16>, vector<8x8xf32> -> vector<8x8xf32>
    %194 = vector.broadcast %14 : vector<1x8xf32> to vector<8x8xf32>
    %195 = arith.addf %193, %194 : vector<8x8xf32>
    %cst_73 = arith.constant dense<0xFF800000> : vector<8xf32>
    %196 = vector.multi_reduction <maximumf>, %195, %cst_73 [1] : vector<8x8xf32> to vector<8xf32>
    %197 = vector.shape_cast %196 : vector<8xf32> to vector<8x1xf32>
    %198 = vector.broadcast %197 : vector<8x1xf32> to vector<8x8xf32>
    %199 = arith.subf %195, %198 : vector<8x8xf32>
    %200 = math.exp %199 : vector<8x8xf32>
    %cst_74 = arith.constant dense<0.000000e+00> : vector<8xf32>
    %201 = vector.multi_reduction <add>, %200, %cst_74 [1] : vector<8x8xf32> to vector<8xf32>
    %202 = vector.shape_cast %201 : vector<8xf32> to vector<8x1xf32>
    %203 = arith.truncf %200 : vector<8x8xf32> to vector<8x8xbf16>
    %204 = vector.extract_strided_slice %154 {offsets = [0, 16], sizes = [8, 8], strides = [1, 1]} : vector<8x32xbf16> to vector<8x8xbf16>
    %cst_75 = arith.constant dense<0.000000e+00> : vector<8x8xf32>
    %205 = tpu.matmul %203, %204, %cst_75 {dimension_numbers = #tpu.dot_dimension_numbers<[1], [0], [0], [1], [0, 0, 1, 1], [], []>} : vector<8x8xbf16>, vector<8x8xbf16>, vector<8x8xf32> -> vector<8x8xf32>
    %206 = tpu.reciprocal %202 {approx = true} : vector<8x1xf32> -> vector<8x1xf32>
    %207 = vector.broadcast %206 : vector<8x1xf32> to vector<8x8xf32>
    %208 = arith.mulf %205, %207 : vector<8x8xf32>
    %209 = vector.extract_strided_slice %153 {offsets = [0, 24], sizes = [8, 8], strides = [1, 1]} : vector<8x32xbf16> to vector<8x8xbf16>
    %210 = vector.extract_strided_slice %150 {offsets = [24, 0], sizes = [8, 8], strides = [1, 1]} : vector<32x8xbf16> to vector<8x8xbf16>
    %cst_76 = arith.constant dense<0.000000e+00> : vector<8x8xf32>
    %211 = tpu.matmul %209, %210, %cst_76 {dimension_numbers = #tpu.dot_dimension_numbers<[1], [0], [0], [1], [0, 0, 1, 1], [], []>} : vector<8x8xbf16>, vector<8x8xbf16>, vector<8x8xf32> -> vector<8x8xf32>
    %212 = vector.broadcast %14 : vector<1x8xf32> to vector<8x8xf32>
    %213 = arith.addf %211, %212 : vector<8x8xf32>
    %cst_77 = arith.constant dense<0xFF800000> : vector<8xf32>
    %214 = vector.multi_reduction <maximumf>, %213, %cst_77 [1] : vector<8x8xf32> to vector<8xf32>
    %215 = vector.shape_cast %214 : vector<8xf32> to vector<8x1xf32>
    %216 = vector.broadcast %215 : vector<8x1xf32> to vector<8x8xf32>
    %217 = arith.subf %213, %216 : vector<8x8xf32>
    %218 = math.exp %217 : vector<8x8xf32>
    %cst_78 = arith.constant dense<0.000000e+00> : vector<8xf32>
    %219 = vector.multi_reduction <add>, %218, %cst_78 [1] : vector<8x8xf32> to vector<8xf32>
    %220 = vector.shape_cast %219 : vector<8xf32> to vector<8x1xf32>
    %221 = arith.truncf %218 : vector<8x8xf32> to vector<8x8xbf16>
    %222 = vector.extract_strided_slice %154 {offsets = [0, 24], sizes = [8, 8], strides = [1, 1]} : vector<8x32xbf16> to vector<8x8xbf16>
    %cst_79 = arith.constant dense<0.000000e+00> : vector<8x8xf32>
    %223 = tpu.matmul %221, %222, %cst_79 {dimension_numbers = #tpu.dot_dimension_numbers<[1], [0], [0], [1], [0, 0, 1, 1], [], []>} : vector<8x8xbf16>, vector<8x8xbf16>, vector<8x8xf32> -> vector<8x8xf32>
    %224 = tpu.reciprocal %220 {approx = true} : vector<8x1xf32> -> vector<8x1xf32>
    %225 = vector.broadcast %224 : vector<8x1xf32> to vector<8x8xf32>
    %226 = arith.mulf %223, %225 : vector<8x8xf32>
    %227 = tpu.concatenate %172, %190, %208, %226 in 1 : vector<8x8xf32>, vector<8x8xf32>, vector<8x8xf32>, vector<8x8xf32> -> vector<8x32xf32>
    %228 = arith.truncf %227 : vector<8x32xf32> to vector<8x32xbf16>
    %c0_80 = arith.constant 0 : index
    %c0_81 = arith.constant 0 : index
    %229 = vector.load %arg18[%c0_80, %c0_81] : memref<32x32xbf16, #tpu.memory_space<vmem>>, vector<32x32xbf16>
    %cst_82 = arith.constant dense<0.000000e+00> : vector<8x32xf32>
    %230 = tpu.matmul %228, %229, %cst_82 {dimension_numbers = #tpu.dot_dimension_numbers<[1], [0], [0], [1], [0, 0, 1, 1], [], []>} : vector<8x32xbf16>, vector<32x32xbf16>, vector<8x32xf32> -> vector<8x32xf32>
    %c0_83 = arith.constant 0 : index
    %c0_84 = arith.constant 0 : index
    %231 = vector.load %arg19[%c0_83, %c0_84] : memref<1x32xf32, #tpu.memory_space<vmem>>, vector<1x32xf32>
    %232 = vector.broadcast %231 : vector<1x32xf32> to vector<8x32xf32>
    %233 = arith.addf %230, %232 : vector<8x32xf32>
    %234 = arith.addf %135, %233 : vector<8x32xf32>
    %c0_85 = arith.constant 0 : index
    %c0_86 = arith.constant 0 : index
    %235 = vector.load %arg20[%c0_85, %c0_86] : memref<1x32xf32, #tpu.memory_space<vmem>>, vector<1x32xf32>
    %c0_87 = arith.constant 0 : index
    %c0_88 = arith.constant 0 : index
    %236 = vector.load %arg21[%c0_87, %c0_88] : memref<1x32xf32, #tpu.memory_space<vmem>>, vector<1x32xf32>
    %cst_89 = arith.constant dense<0.000000e+00> : vector<8xf32>
    %237 = vector.multi_reduction <add>, %234, %cst_89 [1] : vector<8x32xf32> to vector<8xf32>
    %238 = vector.shape_cast %237 : vector<8xf32> to vector<8x1xf32>
    %cst_90 = arith.constant 3.200000e+01 : f32
    %239 = vector.broadcast %cst_90 : f32 to vector<8x1xf32>
    %240 = arith.divf %238, %239 : vector<8x1xf32>
    %241 = vector.broadcast %240 : vector<8x1xf32> to vector<8x32xf32>
    %242 = arith.subf %234, %241 : vector<8x32xf32>
    %243 = arith.mulf %242, %242 : vector<8x32xf32>
    %cst_91 = arith.constant dense<0.000000e+00> : vector<8xf32>
    %244 = vector.multi_reduction <add>, %243, %cst_91 [1] : vector<8x32xf32> to vector<8xf32>
    %245 = vector.shape_cast %244 : vector<8xf32> to vector<8x1xf32>
    %cst_92 = arith.constant 3.200000e+01 : f32
    %246 = vector.broadcast %cst_92 : f32 to vector<8x1xf32>
    %247 = arith.divf %245, %246 : vector<8x1xf32>
    %cst_93 = arith.constant 9.99999974E-6 : f32
    %248 = vector.broadcast %cst_93 : f32 to vector<8x1xf32>
    %249 = arith.addf %247, %248 : vector<8x1xf32>
    %250 = math.rsqrt %249 : vector<8x1xf32>
    %251 = vector.broadcast %250 : vector<8x1xf32> to vector<8x32xf32>
    %252 = arith.mulf %242, %251 : vector<8x32xf32>
    %253 = vector.broadcast %235 : vector<1x32xf32> to vector<8x32xf32>
    %254 = arith.mulf %252, %253 : vector<8x32xf32>
    %255 = vector.broadcast %236 : vector<1x32xf32> to vector<8x32xf32>
    %256 = arith.addf %254, %255 : vector<8x32xf32>
    %257 = arith.truncf %256 : vector<8x32xf32> to vector<8x32xbf16>
    %c0_94 = arith.constant 0 : index
    %c0_95 = arith.constant 0 : index
    %258 = vector.load %arg22[%c0_94, %c0_95] : memref<32x64xbf16, #tpu.memory_space<vmem>>, vector<32x64xbf16>
    %cst_96 = arith.constant dense<0.000000e+00> : vector<8x64xf32>
    %259 = tpu.matmul %257, %258, %cst_96 {dimension_numbers = #tpu.dot_dimension_numbers<[1], [0], [0], [1], [0, 0, 1, 1], [], []>} : vector<8x32xbf16>, vector<32x64xbf16>, vector<8x64xf32> -> vector<8x64xf32>
    %c0_97 = arith.constant 0 : index
    %c0_98 = arith.constant 0 : index
    %260 = vector.load %arg23[%c0_97, %c0_98] : memref<1x64xf32, #tpu.memory_space<vmem>>, vector<1x64xf32>
    %261 = vector.broadcast %260 : vector<1x64xf32> to vector<8x64xf32>
    %262 = arith.addf %259, %261 : vector<8x64xf32>
    %cst_99 = arith.constant 0.000000e+00 : f32
    %263 = vector.broadcast %cst_99 : f32 to vector<8x64xf32>
    %264 = arith.maximumf %262, %263 : vector<8x64xf32>
    %265 = arith.truncf %264 : vector<8x64xf32> to vector<8x64xbf16>
    %c0_100 = arith.constant 0 : index
    %c0_101 = arith.constant 0 : index
    %266 = vector.load %arg24[%c0_100, %c0_101] : memref<64x32xbf16, #tpu.memory_space<vmem>>, vector<64x32xbf16>
    %cst_102 = arith.constant dense<0.000000e+00> : vector<8x32xf32>
    %267 = tpu.matmul %265, %266, %cst_102 {dimension_numbers = #tpu.dot_dimension_numbers<[1], [0], [0], [1], [0, 0, 1, 1], [], []>} : vector<8x64xbf16>, vector<64x32xbf16>, vector<8x32xf32> -> vector<8x32xf32>
    %c0_103 = arith.constant 0 : index
    %c0_104 = arith.constant 0 : index
    %268 = vector.load %arg25[%c0_103, %c0_104] : memref<1x32xf32, #tpu.memory_space<vmem>>, vector<1x32xf32>
    %269 = vector.broadcast %268 : vector<1x32xf32> to vector<8x32xf32>
    %270 = arith.addf %267, %269 : vector<8x32xf32>
    %271 = arith.addf %256, %270 : vector<8x32xf32>
    %c0_105 = arith.constant 0 : index
    %c0_106 = arith.constant 0 : index
    %272 = vector.load %arg26[%c0_105, %c0_106] : memref<1x32xf32, #tpu.memory_space<vmem>>, vector<1x32xf32>
    %c0_107 = arith.constant 0 : index
    %c0_108 = arith.constant 0 : index
    %273 = vector.load %arg27[%c0_107, %c0_108] : memref<1x32xf32, #tpu.memory_space<vmem>>, vector<1x32xf32>
    %cst_109 = arith.constant dense<0.000000e+00> : vector<8xf32>
    %274 = vector.multi_reduction <add>, %271, %cst_109 [1] : vector<8x32xf32> to vector<8xf32>
    %275 = vector.shape_cast %274 : vector<8xf32> to vector<8x1xf32>
    %cst_110 = arith.constant 3.200000e+01 : f32
    %276 = vector.broadcast %cst_110 : f32 to vector<8x1xf32>
    %277 = arith.divf %275, %276 : vector<8x1xf32>
    %278 = vector.broadcast %277 : vector<8x1xf32> to vector<8x32xf32>
    %279 = arith.subf %271, %278 : vector<8x32xf32>
    %280 = arith.mulf %279, %279 : vector<8x32xf32>
    %cst_111 = arith.constant dense<0.000000e+00> : vector<8xf32>
    %281 = vector.multi_reduction <add>, %280, %cst_111 [1] : vector<8x32xf32> to vector<8xf32>
    %282 = vector.shape_cast %281 : vector<8xf32> to vector<8x1xf32>
    %cst_112 = arith.constant 3.200000e+01 : f32
    %283 = vector.broadcast %cst_112 : f32 to vector<8x1xf32>
    %284 = arith.divf %282, %283 : vector<8x1xf32>
    %cst_113 = arith.constant 9.99999974E-6 : f32
    %285 = vector.broadcast %cst_113 : f32 to vector<8x1xf32>
    %286 = arith.addf %284, %285 : vector<8x1xf32>
    %287 = math.rsqrt %286 : vector<8x1xf32>
    %288 = vector.broadcast %287 : vector<8x1xf32> to vector<8x32xf32>
    %289 = arith.mulf %279, %288 : vector<8x32xf32>
    %290 = vector.broadcast %272 : vector<1x32xf32> to vector<8x32xf32>
    %291 = arith.mulf %289, %290 : vector<8x32xf32>
    %292 = vector.broadcast %273 : vector<1x32xf32> to vector<8x32xf32>
    %293 = arith.addf %291, %292 : vector<8x32xf32>
    %c0_114 = arith.constant 0 : index
    %c0_115 = arith.constant 0 : index
    %c0_116 = arith.constant 0 : index
    %294 = vector.load %arg28[%c0_114, %c0_115, %c0_116] : memref<1x8x32xf32, #tpu.memory_space<vmem>>, vector<1x8x32xf32>
    %295 = vector.shape_cast %294 : vector<1x8x32xf32> to vector<8x32xf32>
    %296 = vector.shape_cast %293 : vector<8x32xf32> to vector<1x8x32xf32>
    tpu.vector_store %arg28[%c0_114, %c0_115, %c0_116], %296 {strides = array<i32>} : memref<1x8x32xf32, #tpu.memory_space<vmem>>, vector<1x8x32xf32>,
    return
  }
  func.func @transform_0(%arg0: i32, %arg1: i32) -> (i32, i32, i32) {
    %c0_i32 = arith.constant 0 : i32
    %c0_i32_0 = arith.constant 0 : i32
    %c0_i32_1 = arith.constant 0 : i32
    return %arg0, %c0_i32, %c0_i32_0 : i32, i32, i32
  }
  func.func @transform_1(%arg0: i32, %arg1: i32) -> (i32, i32, i32) {
    %c0_i32 = arith.constant 0 : i32
    %c0_i32_0 = arith.constant 0 : i32
    %c0_i32_1 = arith.constant 0 : i32
    return %arg0, %c0_i32, %c0_i32_0 : i32, i32, i32
  }
  func.func @transform_2(%arg0: i32, %arg1: i32) -> (i32, i32, i32) {
    %c0_i32 = arith.constant 0 : i32
    %c0_i32_0 = arith.constant 0 : i32
    %c0_i32_1 = arith.constant 0 : i32
    return %arg0, %c0_i32, %c0_i32_0 : i32, i32, i32
  }
  func.func @transform_3(%arg0: i32, %arg1: i32) -> (i32, i32, i32) {
    %c0_i32 = arith.constant 0 : i32
    %c0_i32_0 = arith.constant 0 : i32
    %c0_i32_1 = arith.constant 0 : i32
    return %arg0, %c0_i32, %c0_i32_0 : i32, i32, i32
  }
  func.func @transform_4(%arg0: i32, %arg1: i32) -> (i32, i32) {
    %c0_i32 = arith.constant 0 : i32
    %c0_i32_0 = arith.constant 0 : i32
    %c0_i32_1 = arith.constant 0 : i32
    return %c0_i32, %c0_i32_0 : i32, i32
  }
  func.func @transform_5(%arg0: i32, %arg1: i32) -> (i32, i32) {
    %c0_i32 = arith.constant 0 : i32
    %c0_i32_0 = arith.constant 0 : i32
    %c0_i32_1 = arith.constant 0 : i32
    return %c0_i32, %c0_i32_0 : i32, i32
  }
  func.func @transform_6(%arg0: i32, %arg1: i32) -> (i32, i32) {
    %c0_i32 = arith.constant 0 : i32
    %c0_i32_0 = arith.constant 0 : i32
    %c0_i32_1 = arith.constant 0 : i32
    return %c0_i32, %c0_i32_0 : i32, i32
  }
  func.func @transform_7(%arg0: i32, %arg1: i32) -> (i32, i32) {
    %c0_i32 = arith.constant 0 : i32
    %c0_i32_0 = arith.constant 0 : i32
    %c0_i32_1 = arith.constant 0 : i32
    return %c0_i32, %c0_i32_0 : i32, i32
  }
  func.func @transform_8(%arg0: i32, %arg1: i32) -> (i32, i32) {
    %c0_i32 = arith.constant 0 : i32
    %c0_i32_0 = arith.constant 0 : i32
    %c0_i32_1 = arith.constant 0 : i32
    return %c0_i32, %c0_i32_0 : i32, i32
  }
  func.func @transform_9(%arg0: i32, %arg1: i32) -> (i32, i32) {
    %c0_i32 = arith.constant 0 : i32
    %c0_i32_0 = arith.constant 0 : i32
    %c0_i32_1 = arith.constant 0 : i32
    return %c0_i32, %c0_i32_0 : i32, i32
  }
  func.func @transform_10(%arg0: i32, %arg1: i32) -> (i32, i32) {
    %c0_i32 = arith.constant 0 : i32
    %c0_i32_0 = arith.constant 0 : i32
    %c0_i32_1 = arith.constant 0 : i32
    return %c0_i32, %c0_i32_0 : i32, i32
  }
  func.func @transform_11(%arg0: i32, %arg1: i32) -> (i32, i32) {
    %c0_i32 = arith.constant 0 : i32
    %c0_i32_0 = arith.constant 0 : i32
    %c0_i32_1 = arith.constant 0 : i32
    return %c0_i32, %c0_i32_0 : i32, i32
  }
  func.func @transform_12(%arg0: i32, %arg1: i32) -> (i32, i32) {
    %c0_i32 = arith.constant 0 : i32
    %c0_i32_0 = arith.constant 0 : i32
    %c0_i32_1 = arith.constant 0 : i32
    return %c0_i32, %c0_i32_0 : i32, i32
  }
  func.func @transform_13(%arg0: i32, %arg1: i32) -> (i32, i32) {
    %c0_i32 = arith.constant 0 : i32
    %c0_i32_0 = arith.constant 0 : i32
    %c0_i32_1 = arith.constant 0 : i32
    return %c0_i32, %c0_i32_0 : i32, i32
  }
  func.func @transform_14(%arg0: i32, %arg1: i32) -> (i32, i32) {
    %c0_i32 = arith.constant 0 : i32
    %c0_i32_0 = arith.constant 0 : i32
    %c0_i32_1 = arith.constant 0 : i32
    return %c0_i32, %c0_i32_0 : i32, i32
  }
  func.func @transform_15(%arg0: i32, %arg1: i32) -> (i32, i32) {
    %c0_i32 = arith.constant 0 : i32
    %c0_i32_0 = arith.constant 0 : i32
    %c0_i32_1 = arith.constant 0 : i32
    return %c0_i32, %c0_i32_0 : i32, i32
  }
  func.func @transform_16(%arg0: i32, %arg1: i32) -> (i32, i32) {
    %c0_i32 = arith.constant 0 : i32
    %c0_i32_0 = arith.constant 0 : i32
    %c0_i32_1 = arith.constant 0 : i32
    return %c0_i32, %c0_i32_0 : i32, i32
  }
  func.func @transform_17(%arg0: i32, %arg1: i32) -> (i32, i32) {
    %c0_i32 = arith.constant 0 : i32
    %c0_i32_0 = arith.constant 0 : i32
    %c0_i32_1 = arith.constant 0 : i32
    return %c0_i32, %c0_i32_0 : i32, i32
  }
  func.func @transform_18(%arg0: i32, %arg1: i32) -> (i32, i32) {
    %c0_i32 = arith.constant 0 : i32
    %c0_i32_0 = arith.constant 0 : i32
    %c0_i32_1 = arith.constant 0 : i32
    return %c0_i32, %c0_i32_0 : i32, i32
  }
  func.func @transform_19(%arg0: i32, %arg1: i32) -> (i32, i32) {
    %c0_i32 = arith.constant 0 : i32
    %c0_i32_0 = arith.constant 0 : i32
    %c0_i32_1 = arith.constant 0 : i32
    return %c0_i32, %c0_i32_0 : i32, i32
  }
  func.func @transform_20(%arg0: i32, %arg1: i32) -> (i32, i32) {
    %c0_i32 = arith.constant 0 : i32
    %c0_i32_0 = arith.constant 0 : i32
    %c0_i32_1 = arith.constant 0 : i32
    return %c0_i32, %c0_i32_0 : i32, i32
  }
  func.func @transform_21(%arg0: i32, %arg1: i32) -> (i32, i32) {
    %c0_i32 = arith.constant 0 : i32
    %c0_i32_0 = arith.constant 0 : i32
    %c0_i32_1 = arith.constant 0 : i32
    return %c0_i32, %c0_i32_0 : i32, i32
  }
  func.func @transform_22(%arg0: i32, %arg1: i32) -> (i32, i32) {
    %c0_i32 = arith.constant 0 : i32
    %c0_i32_0 = arith.constant 0 : i32
    %c0_i32_1 = arith.constant 0 : i32
    return %c0_i32, %c0_i32_0 : i32, i32
  }
  func.func @transform_23(%arg0: i32, %arg1: i32) -> (i32, i32) {
    %c0_i32 = arith.constant 0 : i32
    %c0_i32_0 = arith.constant 0 : i32
    %c0_i32_1 = arith.constant 0 : i32
    return %c0_i32, %c0_i32_0 : i32, i32
  }
  func.func @transform_24(%arg0: i32, %arg1: i32) -> (i32, i32) {
    %c0_i32 = arith.constant 0 : i32
    %c0_i32_0 = arith.constant 0 : i32
    %c0_i32_1 = arith.constant 0 : i32
    return %c0_i32, %c0_i32_0 : i32, i32
  }
  func.func @transform_25(%arg0: i32, %arg1: i32) -> (i32, i32) {
    %c0_i32 = arith.constant 0 : i32
    %c0_i32_0 = arith.constant 0 : i32
    %c0_i32_1 = arith.constant 0 : i32
    return %c0_i32, %c0_i32_0 : i32, i32
  }
  func.func @transform_26(%arg0: i32, %arg1: i32) -> (i32, i32, i32) {
    %c0_i32 = arith.constant 0 : i32
    %c0_i32_0 = arith.constant 0 : i32
    return %arg0, %arg1, %c0_i32 : i32, i32, i32
  }
}

</mosaic_0001>

<llo_original>
// kernel: t5_forward.9
$region0: #{t5_forward.9}
  #allocation0 [shape = 'u32[]', space=smem, size = 0x4, offset = 0x4, fixed_abs, tag = 'smem constant byte address 0x4 - core index']
  #allocation1 [shape = 'u32[144,128]{1,0:T(1,128)}', space=vmem, size = 0x12000, scoped, tag = 'internal scratch']
  %s0 = inlined_call_operand.vmem [shape: f32[16,32], index: 0, kind: input, shape index: {}]
  %s1 = inlined_call_operand.vmem [shape: bf16[32,64], index: 1, kind: input, shape index: {}]
  %s2 = inlined_call_operand.vmem [shape: f32[1,64], index: 2, kind: input, shape index: {}]
  %s3 = inlined_call_operand.hbm [shape: f32[16,64], index: 3, kind: output, shape index: {}]
  %s4 = sld [smem:[#allocation0]]
  $region22: #{t5_forward.9} parent=0
    _
  %s6 = ssub.s32 1, %s4
  %s7 = scalar_select 0, %s6, %s4
  $region1: #{t5_forward.9} parent=0
    #allocation2 [shape = 'u8[8192]{0}', space=vmem, size = 0x2000, scoped, tag = 'output window, operand 0, single buffered']
    #allocation3 [shape = 's32[1]{0}', space=sflag, size = 0x4, scoped, tag = 'scoped memory for t5_forward.9']
    %8 = vsyncpa [#allocation3], 0
    // Predicated region
    $region2: #{t5_forward.9} parent=1 // pred_check
      _
    $region3: #{t5_forward.9} parent=1 // pred_check_branch
      %10 = sbr.rel (0) target = $region5
    $region4: #{t5_forward.9} parent=1 // pred_region
      _
    $region5: #{t5_forward.9} parent=1 // pred_fallthru
      _
    // Predicated region
    $region6: #{t5_forward.9} parent=1 // pred_check
      _
    $region7: #{t5_forward.9} parent=1 // pred_check_branch
      %12 = sbr.rel (0) target = $region9
    $region8: #{t5_forward.9} parent=1 // pred_region
      _
    $region9: #{t5_forward.9} parent=1 // pred_fallthru
      _
    // Predicated region
    $region10: #{t5_forward.9} parent=1 // pred_check
      _
    $region11: #{t5_forward.9} parent=1 // pred_check_branch
      %14 = sbr.rel (0) target = $region13
    $region12: #{t5_forward.9} parent=1 // pred_region
      _
    $region13: #{t5_forward.9} parent=1 // pred_fallthru
      _
    %v16 = vld [vmem:[%s0] sm:$0xff]
    %v17 = vld [vmem:[%s0 + $0x8] sm:$0xff]
    %v18 = vpack.c.bf16 %v17, %v16
    %v19 = vld [vmem:[%s1] sm:$0xf]
    %v20 = vld [vmem:[%s1 + $0x4] sm:$0xf]
    %v21 = vld [vmem:[%s1 + $0x8] sm:$0xf]
    %v22 = vld [vmem:[%s1 + $0xc] sm:$0xf]
    %v23 = vld [vmem:[%s2] sm:$0x1]
    %v25 = vlaneseq
    %v26 = vshrl.u32 %v25, 7
    %v27 = vsub.s32 0, %v26
    %v28 = vrot.slane %v23, %v27
    %v34 = vunpack.c.l.b16 %v19
    %v35 = vunpack.c.l.b16 %v20
    %v36 = vunpack.c.l.b16 %v21
    %v37 = vunpack.c.l.b16 %v22
    %v38 = vpack.c.b16 %v35, %v34
    %v39 = vpack.c.b16 %v37, %v36
    %vm42 = vcmask 261120
    %v44 = vsel %vm42, %v18, 0
    %46 = vmatprep.subr.bf16.mxu0 0
    %47 = vmatpush1.bf16.msra.mxu0 %v38
    %48 = vmatprep.subr.bf16.mxu0 0
    %49 = vmatpush1.bf16.msra.mxu0 %v39
    %50 = vmatprep.subr.bf16.mxu0 0
    %51 = vmatpush1.bf16.msra.mxu0 0
    %52 = vmatprep.subr.bf16.mxu0 0
    %53 = vmatpush1.bf16.msra.mxu0 0
    %54 = vmatprep.subr.bf16.mxu0 0
    %55 = vmatpush1.bf16.msra.mxu0 0
    %56 = vmatprep.subr.bf16.mxu0 0
    %57 = vmatpush1.bf16.msra.mxu0 0
    %58 = vmatprep.subr.bf16.mxu0 0
    %59 = vmatpush1.bf16.msra.mxu0 0
    %60 = vmatprep.subr.bf16.mxu0 0
    %61 = vmatpush1.bf16.msra.mxu0 0
    %62 = vmatprep.subr.bf16.mxu0 0
    %63 = vmatpush1.bf16.msra.mxu0 0
    %64 = vmatprep.subr.bf16.mxu0 0
    %65 = vmatpush1.bf16.msra.mxu0 0
    %66 = vmatprep.subr.bf16.mxu0 0
    %67 = vmatpush1.bf16.msra.mxu0 0
    %68 = vmatprep.subr.bf16.mxu0 0
    %69 = vmatpush1.bf16.msra.mxu0 0
    %70 = vmatprep.subr.bf16.mxu0 0
    %71 = vmatpush1.bf16.msra.mxu0 0
    %72 = vmatprep.subr.bf16.mxu0 0
    %73 = vmatpush1.bf16.msra.mxu0 0
    %74 = vmatprep.subr.bf16.mxu0 0
    %75 = vmatpush1.bf16.msra.mxu0 0
    %76 = vmatprep.subr.bf16.mxu0 0
    %77 = vmatpush1.bf16.msra.mxu0 0
    %78 = vmatprep.mubr.bf16.mxu0 0
    %79 = vmatmul.mubr.bf16.gmra.mrb[0].mxu0 %v44
    %v80 = vpop.f32.mrb[0].mxu0
    %v81 = vadd.f32 %v28, %v80
    %v82 = vpop.f32.mrb[0].mxu0
    %v83 = vpop.f32.mrb[0].mxu0
    %v84 = vadd.f32 %v28, %v83
    %v85 = vpop.f32.mrb[0].mxu0
    %86 = vdwg.mxu0
    %vm87 = vcmask 523264
    %88 = vst.msk [vmem:[#allocation2] sm:$0xff] %vm87, %v81
    %89 = vst.msk [vmem:[#allocation2 + $0x8] sm:$0xff] %vm87, %v84
    // Predicated region
    $region14: #{t5_forward.9} parent=1 // pred_check
      _
    $region15: #{t5_forward.9} parent=1 // pred_check_branch
      %91 = sbr.rel (0) target = $region17
    $region16: #{t5_forward.9} parent=1 // pred_region
      %s93 = ssub.s32 256, 256
      %94 = vsyncadd [#allocation3], %s93
      %s95 = sshll.u32 [#allocation2], 4
      %s96 = int_to_ptr.vmem [resolvable:$true] %s95
      %101 = dma.vmem_to_hbm [thread:$0]  %s96, 256, %s3, [#allocation3], 128, 128, 8
    $region17: #{t5_forward.9} parent=1 // pred_fallthru
      _
    // Predicated region
    $region18: #{t5_forward.9} parent=1 // pred_check
      _
    $region19: #{t5_forward.9} parent=1 // pred_check_branch
      %103 = sbr.rel (0) target = $region21
    $region20: #{t5_forward.9} parent=1 // pred_region
      %104 = dma.done [#allocation3], 256
    $region21: #{t5_forward.9} parent=1 // pred_fallthru
      _
    %105 = vsyncpa [#allocation3], 1

// kernel: t5_forward.5
$region0: #{t5_forward.5}
  #allocation0 [shape = 'u32[]', space=smem, size = 0x4, offset = 0x4, fixed_abs, tag = 'smem constant byte address 0x4 - core index']
  #allocation1 [shape = 'u32[144,128]{1,0:T(1,128)}', space=vmem, size = 0x12000, scoped, tag = 'internal scratch']
  %s0 = inlined_call_operand.vmem [shape: f32[2,8,32], index: 0, kind: input, shape index: {}]
  %s1 = inlined_call_operand.vmem [shape: f32[2,1,8], index: 1, kind: input, shape index: {}]
  %s2 = inlined_call_operand.vmem [shape: bf16[32,32], index: 2, kind: input, shape index: {}]
  %s3 = inlined_call_operand.vmem [shape: f32[1,32], index: 3, kind: input, shape index: {}, may-alias: {3,7,9,13,15}]
  %s4 = inlined_call_operand.vmem [shape: bf16[32,64], index: 4, kind: input, shape index: {}]
  %s5 = inlined_call_operand.vmem [shape: f32[1,64], index: 5, kind: input, shape index: {}, may-alias: {5,11}]
  %s6 = inlined_call_operand.vmem [shape: bf16[32,32], index: 6, kind: input, shape index: {}]
  %s7 = inlined_call_operand.vmem [shape: f32[1,32], index: 7, kind: input, shape index: {}, may-alias: {3,7,9,13,15}]
  %s8 = inlined_call_operand.vmem [shape: f32[1,32], index: 8, kind: input, shape index: {}, may-alias: {8,14}]
  %s9 = inlined_call_operand.vmem [shape: f32[1,32], index: 9, kind: input, shape index: {}, may-alias: {3,7,9,13,15}]
  %s10 = inlined_call_operand.vmem [shape: bf16[32,64], index: 10, kind: input, shape index: {}]
  %s11 = inlined_call_operand.vmem [shape: f32[1,64], index: 11, kind: input, shape index: {}, may-alias: {5,11}]
  %s12 = inlined_call_operand.vmem [shape: bf16[64,32], index: 12, kind: input, shape index: {}]
  %s13 = inlined_call_operand.vmem [shape: f32[1,32], index: 13, kind: input, shape index: {}, may-alias: {3,7,9,13,15}]
  %s14 = inlined_call_operand.vmem [shape: f32[1,32], index: 14, kind: input, shape index: {}, may-alias: {8,14}]
  %s15 = inlined_call_operand.vmem [shape: f32[1,32], index: 15, kind: input, shape index: {}, may-alias: {3,7,9,13,15}]
  %s16 = inlined_call_operand.vmem [shape: f32[2,8,32], index: 16, kind: output, shape index: {}]
  %s17 = sld [smem:[#allocation0]]
  $region97: #{t5_forward.5} parent=0
    _
  %s19 = ssub.s32 1, %s17
  %s20 = scalar_select 0, %s19, %s17
  loop: start=0, step=1, limit=4
  $region2: #{t5_forward.5} parent=0 // loop_pre_header
    _
  $region3: #{t5_forward.5} parent=0 // loop_header
    %s22 = sphi 0, %s26
    %p23 = scmp.ge.s32.totalorder %s22, 4
    %s29 = sphi 0, %s41
    %s30 = sphi 0, %s37
    %s31 = sphi 0, %s29
    %s32 = sphi 0, %s30
    %s33 = sphi 0, %s31
    %s34 = sphi 0, %s32
    %s44 = sphi 0, %s46
    %s47 = sphi 0, %s44
    %s48 = sphi 0, %s47
    %s64 = sphi 0, %s48
    %s70 = sphi 0, %s72
    %s73 = sphi 0, %s70
    %s74 = sphi 0, %s73
    %s90 = sphi 0, %s74
    %s94 = sphi 0, %s94
    %s96 = sphi 0, %s94
    %s97 = sphi 0, %s96
    %s111 = sphi 0, %s97
    %s115 = sphi 0, %s115
    %s117 = sphi 0, %s115
    %s118 = sphi 0, %s117
    %s132 = sphi 0, %s118
    %s136 = sphi 0, %s136
    %s138 = sphi 0, %s136
    %s139 = sphi 0, %s138
    %s153 = sphi 0, %s139
    %s157 = sphi 0, %s157
    %s159 = sphi 0, %s157
    %s160 = sphi 0, %s159
    %s174 = sphi 0, %s160
    %s178 = sphi 0, %s178
    %s180 = sphi 0, %s178
    %s181 = sphi 0, %s180
    %s195 = sphi 0, %s181
    %s199 = sphi 0, %s199
    %s201 = sphi 0, %s199
    %s202 = sphi 0, %s201
    %s216 = sphi 0, %s202
    %s220 = sphi 0, %s220
    %s222 = sphi 0, %s220
    %s223 = sphi 0, %s222
    %s237 = sphi 0, %s223
    %s241 = sphi 0, %s241
    %s243 = sphi 0, %s241
    %s244 = sphi 0, %s243
    %s258 = sphi 0, %s244
    %s262 = sphi 0, %s262
    %s264 = sphi 0, %s262
    %s265 = sphi 0, %s264
    %s279 = sphi 0, %s265
    %s283 = sphi 0, %s283
    %s285 = sphi 0, %s283
    %s286 = sphi 0, %s285
    %s300 = sphi 0, %s286
    %s304 = sphi 0, %s304
    %s306 = sphi 0, %s304
    %s307 = sphi 0, %s306
    %s321 = sphi 0, %s307
    %s325 = sphi 0, %s325
    %s327 = sphi 0, %s325
    %s328 = sphi 0, %s327
    %s342 = sphi 0, %s328
    %s346 = sphi 0, %s346
    %s348 = sphi 0, %s346
    %s349 = sphi 0, %s348
    %s363 = sphi 0, %s349
    %s367 = sphi 0, %s367
    %s369 = sphi 0, %s367
    %s370 = sphi 0, %s369
    %s384 = sphi 0, %s370
    %s392 = sphi 0, %s394
    %s395 = sphi 0, %s392
    %s396 = sphi 0, %s395
    %s412 = sphi 0, %s396
  $region4: #{t5_forward.5} parent=0 // loop_header_branch
    %25 = sbr.rel (%p23) target = $region8
  $region5: #{t5_forward.5} parent=0 // loop_body
    %s27 = ssub.s32 %s22, 1
    %s28 = ssub.s32 %s22, 2
    %s35 = sadd.s32 1, %s30
    %p36 = scmp.ge.s32.totalorder %s35, 1
    %s37 = scalar_select %p36, 0, %s35
    %s38 = sadd.s32 1, %s29
    %s39 = scalar_select %p36, %s38, %s29
    %p40 = scmp.ge.s32.totalorder %s39, 2
    %s41 = scalar_select %p40, 0, %s39
    %s42 = ssub.s32 %s29, %s41
    %p43 = scmp.eq.s32.totalorder %s42, 0
    %s45 = sadd.s32 %s44, 1
    %s46 = scalar_select %p43, %s44, %s45
    %p49 = pneg %p43
    %p50 = scmp.eq.s32.totalorder %s22, 1
    %p51 = por %p49, %p50
    %p52 = scmp.ne.s32.totalorder %s44, %s47
    %p53 = scmp.eq.s32.totalorder %s22, 0
    %p54 = por %p52, %p53
    %p55 = scmp.ne.s32.totalorder %s44, %s47
    %p56 = scmp.eq.s32.totalorder %s27, 1
    %p57 = por %p55, %p56
    %p58 = scmp.ne.s32.totalorder %s47, %s48
    %p59 = scmp.eq.s32.totalorder %s27, 0
    %p60 = por %p58, %p59
    %p61 = scmp.ne.s32.totalorder %s47, %s48
    %p62 = scmp.eq.s32.totalorder %s28, 1
    %p63 = por %p61, %p62
    %p65 = scmp.ne.s32.totalorder %s48, %s64
    %p66 = scmp.eq.s32.totalorder %s28, 0
    %p67 = por %p65, %p66
    %s68 = ssub.s32 %s29, %s41
    %p69 = scmp.eq.s32.totalorder %s68, 0
    %s71 = sadd.s32 %s70, 1
    %s72 = scalar_select %p69, %s70, %s71
    %p75 = pneg %p69
    %p76 = scmp.eq.s32.totalorder %s22, 1
    %p77 = por %p75, %p76
    %p78 = scmp.ne.s32.totalorder %s70, %s73
    %p79 = scmp.eq.s32.totalorder %s22, 0
    %p80 = por %p78, %p79
    %p81 = scmp.ne.s32.totalorder %s70, %s73
    %p82 = scmp.eq.s32.totalorder %s27, 1
    %p83 = por %p81, %p82
    %p84 = scmp.ne.s32.totalorder %s73, %s74
    %p85 = scmp.eq.s32.totalorder %s27, 0
    %p86 = por %p84, %p85
    %p87 = scmp.ne.s32.totalorder %s73, %s74
    %p88 = scmp.eq.s32.totalorder %s28, 1
    %p89 = por %p87, %p88
    %p91 = scmp.ne.s32.totalorder %s74, %s90
    %p92 = scmp.eq.s32.totalorder %s28, 0
    %p93 = por %p91, %p92
    %s95 = sadd.s32 %s94, 1
    %p98 = scmp.eq.s32.totalorder %s22, 1
    %p99 = scmp.ne.s32.totalorder %s94, %s96
    %p100 = scmp.eq.s32.totalorder %s22, 0
    %p101 = por %p99, %p100
    %p102 = scmp.ne.s32.totalorder %s94, %s96
    %p103 = scmp.eq.s32.totalorder %s27, 1
    %p104 = por %p102, %p103
    %p105 = scmp.ne.s32.totalorder %s96, %s97
    %p106 = scmp.eq.s32.totalorder %s27, 0
    %p107 = por %p105, %p106
    %p108 = scmp.ne.s32.totalorder %s96, %s97
    %p109 = scmp.eq.s32.totalorder %s28, 1
    %p110 = por %p108, %p109
    %p112 = scmp.ne.s32.totalorder %s97, %s111
    %p113 = scmp.eq.s32.totalorder %s28, 0
    %p114 = por %p112, %p113
    %s116 = sadd.s32 %s115, 1
    %p119 = scmp.eq.s32.totalorder %s22, 1
    %p120 = scmp.ne.s32.totalorder %s115, %s117
    %p121 = scmp.eq.s32.totalorder %s22, 0
    %p122 = por %p120, %p121
    %p123 = scmp.ne.s32.totalorder %s115, %s117
    %p124 = scmp.eq.s32.totalorder %s27, 1
    %p125 = por %p123, %p124
    %p126 = scmp.ne.s32.totalorder %s117, %s118
    %p127 = scmp.eq.s32.totalorder %s27, 0
    %p128 = por %p126, %p127
    %p129 = scmp.ne.s32.totalorder %s117, %s118
    %p130 = scmp.eq.s32.totalorder %s28, 1
    %p131 = por %p129, %p130
    %p133 = scmp.ne.s32.totalorder %s118, %s132
    %p134 = scmp.eq.s32.totalorder %s28, 0
    %p135 = por %p133, %p134
    %s137 = sadd.s32 %s136, 1
    %p140 = scmp.eq.s32.totalorder %s22, 1
    %p141 = scmp.ne.s32.totalorder %s136, %s138
    %p142 = scmp.eq.s32.totalorder %s22, 0
    %p143 = por %p141, %p142
    %p144 = scmp.ne.s32.totalorder %s136, %s138
    %p145 = scmp.eq.s32.totalorder %s27, 1
    %p146 = por %p144, %p145
    %p147 = scmp.ne.s32.totalorder %s138, %s139
    %p148 = scmp.eq.s32.totalorder %s27, 0
    %p149 = por %p147, %p148
    %p150 = scmp.ne.s32.totalorder %s138, %s139
    %p151 = scmp.eq.s32.totalorder %s28, 1
    %p152 = por %p150, %p151
    %p154 = scmp.ne.s32.totalorder %s139, %s153
    %p155 = scmp.eq.s32.totalorder %s28, 0
    %p156 = por %p154, %p155
    %s158 = sadd.s32 %s157, 1
    %p161 = scmp.eq.s32.totalorder %s22, 1
    %p162 = scmp.ne.s32.totalorder %s157, %s159
    %p163 = scmp.eq.s32.totalorder %s22, 0
    %p164 = por %p162, %p163
    %p165 = scmp.ne.s32.totalorder %s157, %s159
    %p166 = scmp.eq.s32.totalorder %s27, 1
    %p167 = por %p165, %p166
    %p168 = scmp.ne.s32.totalorder %s159, %s160
    %p169 = scmp.eq.s32.totalorder %s27, 0
    %p170 = por %p168, %p169
    %p171 = scmp.ne.s32.totalorder %s159, %s160
    %p172 = scmp.eq.s32.totalorder %s28, 1
    %p173 = por %p171, %p172
    %p175 = scmp.ne.s32.totalorder %s160, %s174
    %p176 = scmp.eq.s32.totalorder %s28, 0
    %p177 = por %p175, %p176
    %s179 = sadd.s32 %s178, 1
    %p182 = scmp.eq.s32.totalorder %s22, 1
    %p183 = scmp.ne.s32.totalorder %s178, %s180
    %p184 = scmp.eq.s32.totalorder %s22, 0
    %p185 = por %p183, %p184
    %p186 = scmp.ne.s32.totalorder %s178, %s180
    %p187 = scmp.eq.s32.totalorder %s27, 1
    %p188 = por %p186, %p187
    %p189 = scmp.ne.s32.totalorder %s180, %s181
    %p190 = scmp.eq.s32.totalorder %s27, 0
    %p191 = por %p189, %p190
    %p192 = scmp.ne.s32.totalorder %s180, %s181
    %p193 = scmp.eq.s32.totalorder %s28, 1
    %p194 = por %p192, %p193
    %p196 = scmp.ne.s32.totalorder %s181, %s195
    %p197 = scmp.eq.s32.totalorder %s28, 0
    %p198 = por %p196, %p197
    %s200 = sadd.s32 %s199, 1
    %p203 = scmp.eq.s32.totalorder %s22, 1
    %p204 = scmp.ne.s32.totalorder %s199, %s201
    %p205 = scmp.eq.s32.totalorder %s22, 0
    %p206 = por %p204, %p205
    %p207 = scmp.ne.s32.totalorder %s199, %s201
    %p208 = scmp.eq.s32.totalorder %s27, 1
    %p209 = por %p207, %p208
    %p210 = scmp.ne.s32.totalorder %s201, %s202
    %p211 = scmp.eq.s32.totalorder %s27, 0
    %p212 = por %p210, %p211
    %p213 = scmp.ne.s32.totalorder %s201, %s202
    %p214 = scmp.eq.s32.totalorder %s28, 1
    %p215 = por %p213, %p214
    %p217 = scmp.ne.s32.totalorder %s202, %s216
    %p218 = scmp.eq.s32.totalorder %s28, 0
    %p219 = por %p217, %p218
    %s221 = sadd.s32 %s220, 1
    %p224 = scmp.eq.s32.totalorder %s22, 1
    %p225 = scmp.ne.s32.totalorder %s220, %s222
    %p226 = scmp.eq.s32.totalorder %s22, 0
    %p227 = por %p225, %p226
    %p228 = scmp.ne.s32.totalorder %s220, %s222
    %p229 = scmp.eq.s32.totalorder %s27, 1
    %p230 = por %p228, %p229
    %p231 = scmp.ne.s32.totalorder %s222, %s223
    %p232 = scmp.eq.s32.totalorder %s27, 0
    %p233 = por %p231, %p232
    %p234 = scmp.ne.s32.totalorder %s222, %s223
    %p235 = scmp.eq.s32.totalorder %s28, 1
    %p236 = por %p234, %p235
    %p238 = scmp.ne.s32.totalorder %s223, %s237
    %p239 = scmp.eq.s32.totalorder %s28, 0
    %p240 = por %p238, %p239
    %s242 = sadd.s32 %s241, 1
    %p245 = scmp.eq.s32.totalorder %s22, 1
    %p246 = scmp.ne.s32.totalorder %s241, %s243
    %p247 = scmp.eq.s32.totalorder %s22, 0
    %p248 = por %p246, %p247
    %p249 = scmp.ne.s32.totalorder %s241, %s243
    %p250 = scmp.eq.s32.totalorder %s27, 1
    %p251 = por %p249, %p250
    %p252 = scmp.ne.s32.totalorder %s243, %s244
    %p253 = scmp.eq.s32.totalorder %s27, 0
    %p254 = por %p252, %p253
    %p255 = scmp.ne.s32.totalorder %s243, %s244
    %p256 = scmp.eq.s32.totalorder %s28, 1
    %p257 = por %p255, %p256
    %p259 = scmp.ne.s32.totalorder %s244, %s258
    %p260 = scmp.eq.s32.totalorder %s28, 0
    %p261 = por %p259, %p260
    %s263 = sadd.s32 %s262, 1
    %p266 = scmp.eq.s32.totalorder %s22, 1
    %p267 = scmp.ne.s32.totalorder %s262, %s264
    %p268 = scmp.eq.s32.totalorder %s22, 0
    %p269 = por %p267, %p268
    %p270 = scmp.ne.s32.totalorder %s262, %s264
    %p271 = scmp.eq.s32.totalorder %s27, 1
    %p272 = por %p270, %p271
    %p273 = scmp.ne.s32.totalorder %s264, %s265
    %p274 = scmp.eq.s32.totalorder %s27, 0
    %p275 = por %p273, %p274
    %p276 = scmp.ne.s32.totalorder %s264, %s265
    %p277 = scmp.eq.s32.totalorder %s28, 1
    %p278 = por %p276, %p277
    %p280 = scmp.ne.s32.totalorder %s265, %s279
    %p281 = scmp.eq.s32.totalorder %s28, 0
    %p282 = por %p280, %p281
    %s284 = sadd.s32 %s283, 1
    %p287 = scmp.eq.s32.totalorder %s22, 1
    %p288 = scmp.ne.s32.totalorder %s283, %s285
    %p289 = scmp.eq.s32.totalorder %s22, 0
    %p290 = por %p288, %p289
    %p291 = scmp.ne.s32.totalorder %s283, %s285
    %p292 = scmp.eq.s32.totalorder %s27, 1
    %p293 = por %p291, %p292
    %p294 = scmp.ne.s32.totalorder %s285, %s286
    %p295 = scmp.eq.s32.totalorder %s27, 0
    %p296 = por %p294, %p295
    %p297 = scmp.ne.s32.totalorder %s285, %s286
    %p298 = scmp.eq.s32.totalorder %s28, 1
    %p299 = por %p297, %p298
    %p301 = scmp.ne.s32.totalorder %s286, %s300
    %p302 = scmp.eq.s32.totalorder %s28, 0
    %p303 = por %p301, %p302
    %s305 = sadd.s32 %s304, 1
    %p308 = scmp.eq.s32.totalorder %s22, 1
    %p309 = scmp.ne.s32.totalorder %s304, %s306
    %p310 = scmp.eq.s32.totalorder %s22, 0
    %p311 = por %p309, %p310
    %p312 = scmp.ne.s32.totalorder %s304, %s306
    %p313 = scmp.eq.s32.totalorder %s27, 1
    %p314 = por %p312, %p313
    %p315 = scmp.ne.s32.totalorder %s306, %s307
    %p316 = scmp.eq.s32.totalorder %s27, 0
    %p317 = por %p315, %p316
    %p318 = scmp.ne.s32.totalorder %s306, %s307
    %p319 = scmp.eq.s32.totalorder %s28, 1
    %p320 = por %p318, %p319
    %p322 = scmp.ne.s32.totalorder %s307, %s321
    %p323 = scmp.eq.s32.totalorder %s28, 0
    %p324 = por %p322, %p323
    %s326 = sadd.s32 %s325, 1
    %p329 = scmp.eq.s32.totalorder %s22, 1
    %p330 = scmp.ne.s32.totalorder %s325, %s327
    %p331 = scmp.eq.s32.totalorder %s22, 0
    %p332 = por %p330, %p331
    %p333 = scmp.ne.s32.totalorder %s325, %s327
    %p334 = scmp.eq.s32.totalorder %s27, 1
    %p335 = por %p333, %p334
    %p336 = scmp.ne.s32.totalorder %s327, %s328
    %p337 = scmp.eq.s32.totalorder %s27, 0
    %p338 = por %p336, %p337
    %p339 = scmp.ne.s32.totalorder %s327, %s328
    %p340 = scmp.eq.s32.totalorder %s28, 1
    %p341 = por %p339, %p340
    %p343 = scmp.ne.s32.totalorder %s328, %s342
    %p344 = scmp.eq.s32.totalorder %s28, 0
    %p345 = por %p343, %p344
    %s347 = sadd.s32 %s346, 1
    %p350 = scmp.eq.s32.totalorder %s22, 1
    %p351 = scmp.ne.s32.totalorder %s346, %s348
    %p352 = scmp.eq.s32.totalorder %s22, 0
    %p353 = por %p351, %p352
    %p354 = scmp.ne.s32.totalorder %s346, %s348
    %p355 = scmp.eq.s32.totalorder %s27, 1
    %p356 = por %p354, %p355
    %p357 = scmp.ne.s32.totalorder %s348, %s349
    %p358 = scmp.eq.s32.totalorder %s27, 0
    %p359 = por %p357, %p358
    %p360 = scmp.ne.s32.totalorder %s348, %s349
    %p361 = scmp.eq.s32.totalorder %s28, 1
    %p362 = por %p360, %p361
    %p364 = scmp.ne.s32.totalorder %s349, %s363
    %p365 = scmp.eq.s32.totalorder %s28, 0
    %p366 = por %p364, %p365
    %s368 = sadd.s32 %s367, 1
    %p371 = scmp.eq.s32.totalorder %s22, 1
    %p372 = scmp.ne.s32.totalorder %s367, %s369
    %p373 = scmp.eq.s32.totalorder %s22, 0
    %p374 = por %p372, %p373
    %p375 = scmp.ne.s32.totalorder %s367, %s369
    %p376 = scmp.eq.s32.totalorder %s27, 1
    %p377 = por %p375, %p376
    %p378 = scmp.ne.s32.totalorder %s369, %s370
    %p379 = scmp.eq.s32.totalorder %s27, 0
    %p380 = por %p378, %p379
    %p381 = scmp.ne.s32.totalorder %s369, %s370
    %p382 = scmp.eq.s32.totalorder %s28, 1
    %p383 = por %p381, %p382
    %p385 = scmp.ne.s32.totalorder %s370, %s384
    %p386 = scmp.eq.s32.totalorder %s28, 0
    %p387 = por %p385, %p386
    %s388 = ssub.s32 %s29, %s41
    %s389 = ssub.s32 %s30, %s37
    %s390 = sor.u32 %s388, %s389
    %p391 = scmp.eq.s32.totalorder %s390, 0
    %s393 = sadd.s32 %s392, 1
    %s394 = scalar_select %p391, %s392, %s393
    %p397 = pneg %p391
    %p398 = scmp.eq.s32.totalorder %s22, 1
    %p399 = por %p397, %p398
    %p400 = scmp.ne.s32.totalorder %s392, %s395
    %p401 = scmp.eq.s32.totalorder %s22, 0
    %p402 = por %p400, %p401
    %p403 = scmp.ne.s32.totalorder %s392, %s395
    %p404 = scmp.eq.s32.totalorder %s27, 1
    %p405 = por %p403, %p404
    %p406 = scmp.ne.s32.totalorder %s395, %s396
    %p407 = scmp.eq.s32.totalorder %s27, 0
    %p408 = por %p406, %p407
    %p409 = scmp.ne.s32.totalorder %s395, %s396
    %p410 = scmp.eq.s32.totalorder %s28, 1
    %p411 = por %p409, %p410
    %p413 = scmp.ne.s32.totalorder %s396, %s412
    %p414 = scmp.eq.s32.totalorder %s28, 0
    %p415 = por %p413, %p414
    %p416 = scmp.le.s32.totalorder 1, %s22
    %p417 = scmp.lt.s32.totalorder %s22, 3
    %p418 = pnand %p416, %p417
    %p419 = pneg %p418
    // Predicated region
    $region9: #{t5_forward.5} parent=5 // pred_check
      _
    $region10: #{t5_forward.5} parent=5 // pred_check_branch
      %421 = sbr.rel (%p418) target = $region12
    $region11: #{t5_forward.5} parent=5 // pred_region
      %s422 = ssub.s32 %s22, 1
      // Predicated region
      $region13: #{t5_forward.5} parent=11 // pred_check
        %p423 = pneg %p107
      $region14: #{t5_forward.5} parent=11 // pred_check_branch
        %425 = sbr.rel (%p423) target = $region16
      $region15: #{t5_forward.5} parent=11 // pred_region
        _
      $region16: #{t5_forward.5} parent=11 // pred_fallthru
        _
      // Predicated region
      $region17: #{t5_forward.5} parent=11 // pred_check
        %p426 = pneg %p128
      $region18: #{t5_forward.5} parent=11 // pred_check_branch
        %428 = sbr.rel (%p426) target = $region20
      $region19: #{t5_forward.5} parent=11 // pred_region
        _
      $region20: #{t5_forward.5} parent=11 // pred_fallthru
        _
      // Predicated region
      $region21: #{t5_forward.5} parent=11 // pred_check
        %p429 = pneg %p149
      $region22: #{t5_forward.5} parent=11 // pred_check_branch
        %431 = sbr.rel (%p429) target = $region24
      $region23: #{t5_forward.5} parent=11 // pred_region
        _
      $region24: #{t5_forward.5} parent=11 // pred_fallthru
        _
      // Predicated region
      $region25: #{t5_forward.5} parent=11 // pred_check
        %p432 = pneg %p170
      $region26: #{t5_forward.5} parent=11 // pred_check_branch
        %434 = sbr.rel (%p432) target = $region28
      $region27: #{t5_forward.5} parent=11 // pred_region
        _
      $region28: #{t5_forward.5} parent=11 // pred_fallthru
        _
      // Predicated region
      $region29: #{t5_forward.5} parent=11 // pred_check
        %p435 = pneg %p191
      $region30: #{t5_forward.5} parent=11 // pred_check_branch
        %437 = sbr.rel (%p435) target = $region32
      $region31: #{t5_forward.5} parent=11 // pred_region
        _
      $region32: #{t5_forward.5} parent=11 // pred_fallthru
        _
      // Predicated region
      $region33: #{t5_forward.5} parent=11 // pred_check
        %p438 = pneg %p212
      $region34: #{t5_forward.5} parent=11 // pred_check_branch
        %440 = sbr.rel (%p438) target = $region36
      $region35: #{t5_forward.5} parent=11 // pred_region
        _
      $region36: #{t5_forward.5} parent=11 // pred_fallthru
        _
      // Predicated region
      $region37: #{t5_forward.5} parent=11 // pred_check
        %p441 = pneg %p233
      $region38: #{t5_forward.5} parent=11 // pred_check_branch
        %443 = sbr.rel (%p441) target = $region40
      $region39: #{t5_forward.5} parent=11 // pred_region
        _
      $region40: #{t5_forward.5} parent=11 // pred_fallthru
        _
      // Predicated region
      $region41: #{t5_forward.5} parent=11 // pred_check
        %p444 = pneg %p254
      $region42: #{t5_forward.5} parent=11 // pred_check_branch
        %446 = sbr.rel (%p444) target = $region44
      $region43: #{t5_forward.5} parent=11 // pred_region
        _
      $region44: #{t5_forward.5} parent=11 // pred_fallthru
        _
      // Predicated region
      $region45: #{t5_forward.5} parent=11 // pred_check
        %p447 = pneg %p275
      $region46: #{t5_forward.5} parent=11 // pred_check_branch
        %449 = sbr.rel (%p447) target = $region48
      $region47: #{t5_forward.5} parent=11 // pred_region
        _
      $region48: #{t5_forward.5} parent=11 // pred_fallthru
        _
      // Predicated region
      $region49: #{t5_forward.5} parent=11 // pred_check
        %p450 = pneg %p296
      $region50: #{t5_forward.5} parent=11 // pred_check_branch
        %452 = sbr.rel (%p450) target = $region52
      $region51: #{t5_forward.5} parent=11 // pred_region
        _
      $region52: #{t5_forward.5} parent=11 // pred_fallthru
        _
      // Predicated region
      $region53: #{t5_forward.5} parent=11 // pred_check
        %p453 = pneg %p317
      $region54: #{t5_forward.5} parent=11 // pred_check_branch
        %455 = sbr.rel (%p453) target = $region56
      $region55: #{t5_forward.5} parent=11 // pred_region
        _
      $region56: #{t5_forward.5} parent=11 // pred_fallthru
        _
      // Predicated region
      $region57: #{t5_forward.5} parent=11 // pred_check
        %p456 = pneg %p338
      $region58: #{t5_forward.5} parent=11 // pred_check_branch
        %458 = sbr.rel (%p456) target = $region60
      $region59: #{t5_forward.5} parent=11 // pred_region
        _
      $region60: #{t5_forward.5} parent=11 // pred_fallthru
        _
      // Predicated region
      $region61: #{t5_forward.5} parent=11 // pred_check
        %p459 = pneg %p359
      $region62: #{t5_forward.5} parent=11 // pred_check_branch
        %461 = sbr.rel (%p459) target = $region64
      $region63: #{t5_forward.5} parent=11 // pred_region
        _
      $region64: #{t5_forward.5} parent=11 // pred_fallthru
        _
      // Predicated region
      $region65: #{t5_forward.5} parent=11 // pred_check
        %p462 = pneg %p380
      $region66: #{t5_forward.5} parent=11 // pred_check_branch
        %464 = sbr.rel (%p462) target = $region68
      $region67: #{t5_forward.5} parent=11 // pred_region
        _
      $region68: #{t5_forward.5} parent=11 // pred_fallthru
        _
    $region12: #{t5_forward.5} parent=5 // pred_fallthru
      _
    %p465 = scmp.lt.s32.totalorder %s22, 2
    // Predicated region
    $region69: #{t5_forward.5} parent=5 // pred_check
      %p466 = pneg %p465
    $region70: #{t5_forward.5} parent=5 // pred_check_branch
      %468 = sbr.rel (%p466) target = $region72
    $region71: #{t5_forward.5} parent=5 // pred_region
      // Predicated region
      $region73: #{t5_forward.5} parent=71 // pred_check
        %p469 = pneg %p54
      $region74: #{t5_forward.5} parent=71 // pred_check_branch
        %471 = sbr.rel (%p469) target = $region76
      $region75: #{t5_forward.5} parent=71 // pred_region
        %p472 = scmp.lt.s32.totalorder %s29, 1
        %s473 = scalar_select %p472, %s29, 1
        %s474 = smul.addr %s473, 8
        %s475 = scalar_lea.vmem %s0, %s474
      $region76: #{t5_forward.5} parent=71 // pred_fallthru
        _
      // Predicated region
      $region77: #{t5_forward.5} parent=71 // pred_check
        %p476 = pneg %p80
      $region78: #{t5_forward.5} parent=71 // pred_check_branch
        %478 = sbr.rel (%p476) target = $region80
      $region79: #{t5_forward.5} parent=71 // pred_region
        %p479 = scmp.lt.s32.totalorder %s29, 1
        %s480 = scalar_select %p479, %s29, 1
        %s481 = scalar_lea.vmem %s1, %s480
      $region80: #{t5_forward.5} parent=71 // pred_fallthru
        _
    $region72: #{t5_forward.5} parent=5 // pred_fallthru
      _
    %p482 = scmp.le.s32.totalorder 1, %s22
    %p483 = scmp.lt.s32.totalorder %s22, 3
    %p484 = pnand %p482, %p483
    %p485 = pneg %p484
    // Predicated region
    $region81: #{t5_forward.5} parent=5 // pred_check
      _
    $region82: #{t5_forward.5} parent=5 // pred_check_branch
      %487 = sbr.rel (%p484) target = $region84
    $region83: #{t5_forward.5} parent=5 // pred_region
      %s488 = ssub.s32 %s22, 1
      %p489 = scmp.lt.s32.totalorder %s31, 1
      %s490 = scalar_select %p489, %s31, 1
      %s491 = smul.addr %s490, 8
      %s492 = scalar_lea.vmem %s0, %s491
      %p493 = pneg %p60
      %p494 = pneg %p57
      %p495 = scmp.lt.s32.totalorder %s31, 1
      %s496 = scalar_select %p495, %s31, 1
      %s497 = scalar_lea.vmem %s1, %s496
      %p498 = pneg %p86
      %p499 = pneg %p83
      %p500 = pneg %p107
      %p501 = pneg %p104
      %p502 = pneg %p128
      %p503 = pneg %p125
      %p504 = pneg %p149
      %p505 = pneg %p146
      %p506 = pneg %p170
      %p507 = pneg %p167
      %p508 = pneg %p191
      %p509 = pneg %p188
      %p510 = pneg %p212
      %p511 = pneg %p209
      %p512 = pneg %p233
      %p513 = pneg %p230
      %p514 = pneg %p254
      %p515 = pneg %p251
      %p516 = pneg %p275
      %p517 = pneg %p272
      %p518 = pneg %p296
      %p519 = pneg %p293
      %p520 = pneg %p317
      %p521 = pneg %p314
      %p522 = pneg %p338
      %p523 = pneg %p335
      %p524 = pneg %p359
      %p525 = pneg %p356
      %p526 = pneg %p380
      %p527 = pneg %p377
      %p528 = pneg %p408
      %p529 = pneg %p405
      %p530 = scmp.lt.s32.totalorder %s31, 1
      %s531 = scalar_select %p530, %s31, 1
      %p532 = scmp.lt.s32.totalorder %s32, 0
      %s533 = scalar_select %p532, %s32, 0
      %s534 = sadd.s32 %s533, %s531
      %s535 = smul.addr %s534, 8
      %s536 = scalar_lea.vmem %s16, %s535
      %p537 = scmp.lt.s32.totalorder %s31, 1
      %s538 = scalar_select %p537, %s31, 1
      %s539 = smul.addr %s538, 8
      %s540 = scalar_lea.vmem %s0, %s539
      %p541 = scmp.lt.s32.totalorder %s31, 1
      %s542 = scalar_select %p541, %s31, 1
      %s543 = scalar_lea.vmem %s1, %s542
      %p544 = scmp.lt.s32.totalorder %s31, 1
      %s545 = scalar_select %p544, %s31, 1
      %p546 = scmp.lt.s32.totalorder %s32, 0
      %s547 = scalar_select %p546, %s32, 0
      %s548 = sadd.s32 %s547, %s545
      %s549 = smul.addr %s548, 8
      %s550 = scalar_lea.vmem %s16, %s549
      %s552 = smul.u32 %s32, 8
      %v553 = vld [vmem:[%s540] sm:$0xff]
      %v554 = vpack.c.bf16 %v553, %v553
      %s555 = scalar_lea.vmem %s540, %s552
      %v556 = vld [vmem:[%s555] sm:$0xff]
      %v557 = vld [vmem:[%s543] sm:$0x1]
      %v558 = vld [vmem:[%s4] sm:$0xf]
      %v559 = vld [vmem:[%s4 + $0x4] sm:$0xf]
      %v560 = vld [vmem:[%s4 + $0x8] sm:$0xf]
      %v561 = vld [vmem:[%s4 + $0xc] sm:$0xf]
      %v562 = vld [vmem:[%s5] sm:$0x1]
      %v564 = vlaneseq
      %v565 = vshrl.u32 %v564, 7
      %v566 = vsub.s32 0, %v565
      %v567 = vrot.slane %v562, %v566
      %v573 = vunpack.c.l.b16 %v558
      %v574 = vunpack.c.l.b16 %v559
      %v575 = vunpack.c.l.b16 %v560
      %v576 = vunpack.c.l.b16 %v561
      %v577 = vpack.c.b16 %v574, %v573
      %v578 = vpack.c.b16 %v576, %v575
      %vm581 = vcmask 261120
      %v583 = vsel %vm581, %v554, 0
      %585 = vmatprep.subr.bf16.mxu0 0
      %586 = vmatpush1.bf16.msra.mxu0 %v577
      %587 = vmatprep.subr.bf16.mxu0 0
      %588 = vmatpush1.bf16.msra.mxu0 %v578
      %589 = vmatprep.subr.bf16.mxu0 0
      %590 = vmatpush1.bf16.msra.mxu0 0
      %591 = vmatprep.subr.bf16.mxu0 0
      %592 = vmatpush1.bf16.msra.mxu0 0
      %593 = vmatprep.subr.bf16.mxu0 0
      %594 = vmatpush1.bf16.msra.mxu0 0
      %595 = vmatprep.subr.bf16.mxu0 0
      %596 = vmatpush1.bf16.msra.mxu0 0
      %597 = vmatprep.subr.bf16.mxu0 0
      %598 = vmatpush1.bf16.msra.mxu0 0
      %599 = vmatprep.subr.bf16.mxu0 0
      %600 = vmatpush1.bf16.msra.mxu0 0
      %601 = vmatprep.subr.bf16.mxu0 0
      %602 = vmatpush1.bf16.msra.mxu0 0
      %603 = vmatprep.subr.bf16.mxu0 0
      %604 = vmatpush1.bf16.msra.mxu0 0
      %605 = vmatprep.subr.bf16.mxu0 0
      %606 = vmatpush1.bf16.msra.mxu0 0
      %607 = vmatprep.subr.bf16.mxu0 0
      %608 = vmatpush1.bf16.msra.mxu0 0
      %609 = vmatprep.subr.bf16.mxu0 0
      %610 = vmatpush1.bf16.msra.mxu0 0
      %611 = vmatprep.subr.bf16.mxu0 0
      %612 = vmatpush1.bf16.msra.mxu0 0
      %613 = vmatprep.subr.bf16.mxu0 0
      %614 = vmatpush1.bf16.msra.mxu0 0
      %615 = vmatprep.subr.bf16.mxu0 0
      %616 = vmatpush1.bf16.msra.mxu0 0
      %617 = vmatprep.mubr.bf16.mxu0 0
      %618 = vmatmul.mubr.bf16.gmra.mrb[0].mxu0 %v583
      %v619 = vpop.f32.mrb[0].mxu0
      %v620 = vadd.f32 %v567, %v619
      %v621 = vpop.f32.mrb[0].mxu0
      %v622 = vpop.f32.mrb[0].mxu0
      %v623 = vpop.f32.mrb[0].mxu0
      %624 = vdwg.mxu0
      %v625 = vpack.c.bf16 %v556, %v556
      %v626 = vld [vmem:[%s2] sm:$0xf]
      %v627 = vld [vmem:[%s2 + $0x4] sm:$0xf]
      %v628 = vld [vmem:[%s2 + $0x8] sm:$0xf]
      %v629 = vld [vmem:[%s2 + $0xc] sm:$0xf]
      %v630 = vld [vmem:[%s3] sm:$0x1]
      %v632 = vlaneseq
      %v633 = vshrl.u32 %v632, 7
      %v634 = vsub.s32 0, %v633
      %v635 = vrot.slane %v630, %v634
      %v641 = vunpack.c.l.b16 %v626
      %v642 = vunpack.c.l.b16 %v627
      %v643 = vunpack.c.l.b16 %v628
      %v644 = vunpack.c.l.b16 %v629
      %v645 = vpack.c.b16 %v642, %v641
      %v646 = vpack.c.b16 %v644, %v643
      %v650 = vsel %vm581, %v625, 0
      %652 = vmatprep.subr.bf16.mxu0 0
      %653 = vmatpush1.bf16.msra.mxu0 %v645
      %654 = vmatprep.subr.bf16.mxu0 0
      %655 = vmatpush1.bf16.msra.mxu0 %v646
      %656 = vmatprep.subr.bf16.mxu0 0
      %657 = vmatpush1.bf16.msra.mxu0 0
      %658 = vmatprep.subr.bf16.mxu0 0
      %659 = vmatpush1.bf16.msra.mxu0 0
      %660 = vmatprep.subr.bf16.mxu0 0
      %661 = vmatpush1.bf16.msra.mxu0 0
      %662 = vmatprep.subr.bf16.mxu0 0
      %663 = vmatpush1.bf16.msra.mxu0 0
      %664 = vmatprep.subr.bf16.mxu0 0
      %665 = vmatpush1.bf16.msra.mxu0 0
      %666 = vmatprep.subr.bf16.mxu0 0
      %667 = vmatpush1.bf16.msra.mxu0 0
      %668 = vmatprep.subr.bf16.mxu0 0
      %669 = vmatpush1.bf16.msra.mxu0 0
      %670 = vmatprep.subr.bf16.mxu0 0
      %671 = vmatpush1.bf16.msra.mxu0 0
      %672 = vmatprep.subr.bf16.mxu0 0
      %673 = vmatpush1.bf16.msra.mxu0 0
      %674 = vmatprep.subr.bf16.mxu0 0
      %675 = vmatpush1.bf16.msra.mxu0 0
      %676 = vmatprep.subr.bf16.mxu0 0
      %677 = vmatpush1.bf16.msra.mxu0 0
      %678 = vmatprep.subr.bf16.mxu0 0
      %679 = vmatpush1.bf16.msra.mxu0 0
      %680 = vmatprep.subr.bf16.mxu0 0
      %681 = vmatpush1.bf16.msra.mxu0 0
      %682 = vmatprep.subr.bf16.mxu0 0
      %683 = vmatpush1.bf16.msra.mxu0 0
      %684 = vmatprep.mubr.bf16.mxu0 0
      %685 = vmatmul.mubr.bf16.gmra.mrb[0].mxu0 %v650
      %v686 = vpop.f32.mrb[0].mxu0
      %v687 = vadd.f32 %v635, %v686
      %v688 = vpop.f32.mrb[0].mxu0
      %v689 = vpop.f32.mrb[0].mxu0
      %v690 = vpop.f32.mrb[0].mxu0
      %691 = vdwg.mxu0
      %692 = vxpose.xlu0.b32.start [1/16] %v620, 128
      %693 = vxpose.xlu0.b32.cont [2/16] 0.0, 128
      %694 = vxpose.xlu0.b32.cont [3/16] 0.0, 128
      %695 = vxpose.xlu0.b32.cont [4/16] 0.0, 128
      %696 = vxpose.xlu0.b32.cont [5/16] 0.0, 128
      %697 = vxpose.xlu0.b32.cont [6/16] 0.0, 128
      %698 = vxpose.xlu0.b32.cont [7/16] 0.0, 128
      %699 = vxpose.xlu0.b32.cont [8/16] 0.0, 128
      %700 = vxpose.xlu0.b32.cont [9/16] 0.0, 128
      %701 = vxpose.xlu0.b32.cont [10/16] 0.0, 128
      %702 = vxpose.xlu0.b32.cont [11/16] 0.0, 128
      %703 = vxpose.xlu0.b32.cont [12/16] 0.0, 128
      %704 = vxpose.xlu0.b32.cont [13/16] 0.0, 128
      %705 = vxpose.xlu0.b32.cont [14/16] 0.0, 128
      %706 = vxpose.xlu0.b32.cont [15/16] 0.0, 128
      %707 = vxpose.xlu0.b32.end [16/16] 0.0, 128
      %v708 = vpop.trf.xlu0
      %v709 = vpop.trf.xlu0
      %v710 = vpop.trf.xlu0
      %v711 = vpop.trf.xlu0
      %v712 = vpop.trf.xlu0
      %v713 = vpop.trf.xlu0
      %v714 = vpop.trf.xlu0
      %v715 = vpop.trf.xlu0
      %v716 = vpop.trf.xlu0
      %v717 = vpop.trf.xlu0
      %v718 = vpop.trf.xlu0
      %v719 = vpop.trf.xlu0
      %v720 = vpop.trf.xlu0
      %v721 = vpop.trf.xlu0
      %v722 = vpop.trf.xlu0
      %v723 = vpop.trf.xlu0
      %v724 = vpack.c.bf16 %v709, %v708
      %v725 = vpack.c.bf16 %v711, %v710
      %v726 = vmul.f32 %v687, 0.35355338
      %v727 = vpack.c.bf16 %v726, %v726
      %v728 = vpack.c.bf16 %v620, %v620
      %v730 = vlaneseq
      %v731 = vshrl.u32 %v730, 7
      %v732 = vsub.s32 0, %v731
      %v733 = vrot.slane %v557, %v732
      %vm735 = vcmask 64512
      %v737 = vsel %vm735, %v727, 0
      %vm739 = vcmask 1043456
      %v741 = vsel %vm739, %v724, 0
      %743 = vmatprep.subr.bf16.mxu0 0
      %744 = vmatpush1.bf16.msra.mxu0 %v741
      %745 = vmatprep.subr.bf16.mxu0 0
      %746 = vmatpush1.bf16.msra.mxu0 0
      %747 = vmatprep.subr.bf16.mxu0 0
      %748 = vmatpush1.bf16.msra.mxu0 0
      %749 = vmatprep.subr.bf16.mxu0 0
      %750 = vmatpush1.bf16.msra.mxu0 0
      %751 = vmatprep.subr.bf16.mxu0 0
      %752 = vmatpush1.bf16.msra.mxu0 0
      %753 = vmatprep.subr.bf16.mxu0 0
      %754 = vmatpush1.bf16.msra.mxu0 0
      %755 = vmatprep.subr.bf16.mxu0 0
      %756 = vmatpush1.bf16.msra.mxu0 0
      %757 = vmatprep.subr.bf16.mxu0 0
      %758 = vmatpush1.bf16.msra.mxu0 0
      %759 = vmatprep.subr.bf16.mxu0 0
      %760 = vmatpush1.bf16.msra.mxu0 0
      %761 = vmatprep.subr.bf16.mxu0 0
      %762 = vmatpush1.bf16.msra.mxu0 0
      %763 = vmatprep.subr.bf16.mxu0 0
      %764 = vmatpush1.bf16.msra.mxu0 0
      %765 = vmatprep.subr.bf16.mxu0 0
      %766 = vmatpush1.bf16.msra.mxu0 0
      %767 = vmatprep.subr.bf16.mxu0 0
      %768 = vmatpush1.bf16.msra.mxu0 0
      %769 = vmatprep.subr.bf16.mxu0 0
      %770 = vmatpush1.bf16.msra.mxu0 0
      %771 = vmatprep.subr.bf16.mxu0 0
      %772 = vmatpush1.bf16.msra.mxu0 0
      %773 = vmatprep.subr.bf16.mxu0 0
      %774 = vmatpush1.bf16.msra.mxu0 0
      %775 = vmatprep.mubr.bf16.mxu0 0
      %776 = vmatmul.mubr.bf16.gmra.mrb[0].mxu0 %v737
      %v777 = vpop.f32.mrb[0].mxu0
      %v778 = vadd.f32 %v733, %v777
      %v779 = vpop.f32.mrb[0].mxu0
      %v780 = vpop.f32.mrb[0].mxu0
      %v781 = vpop.f32.mrb[0].mxu0
      %782 = vdwg.mxu0
      %v783 = vsel %vm735, %v778, -inf
      %784 = vmax.xlane.f32.xlu0 %v783
      %v785 = vpop.xlane.xlu0 %784
      %v786 = vsub.f32 %v778, %v785
      %v787 = vmul.f32 %v786, 1.442695
      %v788 = vpow.pop %v787
      %v789 = vsel %vm735, %v788, 0.0
      %790 = vadd.xlane.f32.xlu0 %v789
      %v791 = vpop.xlane.xlu0 %790
      %v792 = vpack.c.bf16 %v788, %v788
      %794 = vrot.lane.b32.xlu0 %v728, 96
      %v795 = vpop.permute.xlu0 %794
      %v797 = vsel %vm735, %v792, 0
      %v800 = vsel %vm739, %v795, 0
      %802 = vmatprep.subr.bf16.mxu0 0
      %803 = vmatpush1.bf16.msra.mxu0 %v800
      %804 = vmatprep.subr.bf16.mxu0 0
      %805 = vmatpush1.bf16.msra.mxu0 0
      %806 = vmatprep.subr.bf16.mxu0 0
      %807 = vmatpush1.bf16.msra.mxu0 0
      %808 = vmatprep.subr.bf16.mxu0 0
      %809 = vmatpush1.bf16.msra.mxu0 0
      %810 = vmatprep.subr.bf16.mxu0 0
      %811 = vmatpush1.bf16.msra.mxu0 0
      %812 = vmatprep.subr.bf16.mxu0 0
      %813 = vmatpush1.bf16.msra.mxu0 0
      %814 = vmatprep.subr.bf16.mxu0 0
      %815 = vmatpush1.bf16.msra.mxu0 0
      %816 = vmatprep.subr.bf16.mxu0 0
      %817 = vmatpush1.bf16.msra.mxu0 0
      %818 = vmatprep.subr.bf16.mxu0 0
      %819 = vmatpush1.bf16.msra.mxu0 0
      %820 = vmatprep.subr.bf16.mxu0 0
      %821 = vmatpush1.bf16.msra.mxu0 0
      %822 = vmatprep.subr.bf16.mxu0 0
      %823 = vmatpush1.bf16.msra.mxu0 0
      %824 = vmatprep.subr.bf16.mxu0 0
      %825 = vmatpush1.bf16.msra.mxu0 0
      %826 = vmatprep.subr.bf16.mxu0 0
      %827 = vmatpush1.bf16.msra.mxu0 0
      %828 = vmatprep.subr.bf16.mxu0 0
      %829 = vmatpush1.bf16.msra.mxu0 0
      %830 = vmatprep.subr.bf16.mxu0 0
      %831 = vmatpush1.bf16.msra.mxu0 0
      %832 = vmatprep.subr.bf16.mxu0 0
      %833 = vmatpush1.bf16.msra.mxu0 0
      %834 = vmatprep.mubr.bf16.mxu0 0
      %835 = vmatmul.mubr.bf16.gmra.mrb[0].mxu0 %v797
      %v836 = vpop.f32.mrb[0].mxu0
      %v837 = vadd.f32 0.0, %v836
      %v838 = vpop.f32.mrb[0].mxu0
      %v839 = vpop.f32.mrb[0].mxu0
      %v840 = vpop.f32.mrb[0].mxu0
      %841 = vdwg.mxu0
      %v842 = vrcp.pop %v791
      %v843 = vmul.f32 %v837, %v842
      %845 = vrot.lane.b32.xlu0 %v727, 120
      %v846 = vpop.permute.xlu0 %845
      %v848 = vrot.slane %v724, 4
      %v850 = vsel %vm735, %v846, 0
      %v853 = vsel %vm739, %v848, 0
      %855 = vmatprep.subr.bf16.mxu0 0
      %856 = vmatpush1.bf16.msra.mxu0 %v853
      %857 = vmatprep.subr.bf16.mxu0 0
      %858 = vmatpush1.bf16.msra.mxu0 0
      %859 = vmatprep.subr.bf16.mxu0 0
      %860 = vmatpush1.bf16.msra.mxu0 0
      %861 = vmatprep.subr.bf16.mxu0 0
      %862 = vmatpush1.bf16.msra.mxu0 0
      %863 = vmatprep.subr.bf16.mxu0 0
      %864 = vmatpush1.bf16.msra.mxu0 0
      %865 = vmatprep.subr.bf16.mxu0 0
      %866 = vmatpush1.bf16.msra.mxu0 0
      %867 = vmatprep.subr.bf16.mxu0 0
      %868 = vmatpush1.bf16.msra.mxu0 0
      %869 = vmatprep.subr.bf16.mxu0 0
      %870 = vmatpush1.bf16.msra.mxu0 0
      %871 = vmatprep.subr.bf16.mxu0 0
      %872 = vmatpush1.bf16.msra.mxu0 0
      %873 = vmatprep.subr.bf16.mxu0 0
      %874 = vmatpush1.bf16.msra.mxu0 0
      %875 = vmatprep.subr.bf16.mxu0 0
      %876 = vmatpush1.bf16.msra.mxu0 0
      %877 = vmatprep.subr.bf16.mxu0 0
      %878 = vmatpush1.bf16.msra.mxu0 0
      %879 = vmatprep.subr.bf16.mxu0 0
      %880 = vmatpush1.bf16.msra.mxu0 0
      %881 = vmatprep.subr.bf16.mxu0 0
      %882 = vmatpush1.bf16.msra.mxu0 0
      %883 = vmatprep.subr.bf16.mxu0 0
      %884 = vmatpush1.bf16.msra.mxu0 0
      %885 = vmatprep.subr.bf16.mxu0 0
      %886 = vmatpush1.bf16.msra.mxu0 0
      %887 = vmatprep.mubr.bf16.mxu0 0
      %888 = vmatmul.mubr.bf16.gmra.mrb[0].mxu0 %v850
      %v889 = vpop.f32.mrb[0].mxu0
      %v890 = vadd.f32 %v733, %v889
      %v891 = vpop.f32.mrb[0].mxu0
      %v892 = vpop.f32.mrb[0].mxu0
      %v893 = vpop.f32.mrb[0].mxu0
      %894 = vdwg.mxu0
      %v895 = vsel %vm735, %v890, -inf
      %896 = vmax.xlane.f32.xlu0 %v895
      %v897 = vpop.xlane.xlu0 %896
      %v898 = vsub.f32 %v890, %v897
      %v899 = vmul.f32 %v898, 1.442695
      %v900 = vpow.pop %v899
      %v901 = vsel %vm735, %v900, 0.0
      %902 = vadd.xlane.f32.xlu0 %v901
      %v903 = vpop.xlane.xlu0 %902
      %v904 = vpack.c.bf16 %v900, %v900
      %905 = vrot.lane.b32.xlu0 %v728, 88
      %v906 = vpop.permute.xlu0 %905
      %v908 = vsel %vm735, %v904, 0
      %v911 = vsel %vm739, %v906, 0
      %913 = vmatprep.subr.bf16.mxu0 0
      %914 = vmatpush1.bf16.msra.mxu0 %v911
      %915 = vmatprep.subr.bf16.mxu0 0
      %916 = vmatpush1.bf16.msra.mxu0 0
      %917 = vmatprep.subr.bf16.mxu0 0
      %918 = vmatpush1.bf16.msra.mxu0 0
      %919 = vmatprep.subr.bf16.mxu0 0
      %920 = vmatpush1.bf16.msra.mxu0 0
      %921 = vmatprep.subr.bf16.mxu0 0
      %922 = vmatpush1.bf16.msra.mxu0 0
      %923 = vmatprep.subr.bf16.mxu0 0
      %924 = vmatpush1.bf16.msra.mxu0 0
      %925 = vmatprep.subr.bf16.mxu0 0
      %926 = vmatpush1.bf16.msra.mxu0 0
      %927 = vmatprep.subr.bf16.mxu0 0
      %928 = vmatpush1.bf16.msra.mxu0 0
      %929 = vmatprep.subr.bf16.mxu0 0
      %930 = vmatpush1.bf16.msra.mxu0 0
      %931 = vmatprep.subr.bf16.mxu0 0
      %932 = vmatpush1.bf16.msra.mxu0 0
      %933 = vmatprep.subr.bf16.mxu0 0
      %934 = vmatpush1.bf16.msra.mxu0 0
      %935 = vmatprep.subr.bf16.mxu0 0
      %936 = vmatpush1.bf16.msra.mxu0 0
      %937 = vmatprep.subr.bf16.mxu0 0
      %938 = vmatpush1.bf16.msra.mxu0 0
      %939 = vmatprep.subr.bf16.mxu0 0
      %940 = vmatpush1.bf16.msra.mxu0 0
      %941 = vmatprep.subr.bf16.mxu0 0
      %942 = vmatpush1.bf16.msra.mxu0 0
      %943 = vmatprep.subr.bf16.mxu0 0
      %944 = vmatpush1.bf16.msra.mxu0 0
      %945 = vmatprep.mubr.bf16.mxu0 0
      %946 = vmatmul.mubr.bf16.gmra.mrb[0].mxu0 %v908
      %v947 = vpop.f32.mrb[0].mxu0
      %v948 = vadd.f32 0.0, %v947
      %v949 = vpop.f32.mrb[0].mxu0
      %v950 = vpop.f32.mrb[0].mxu0
      %v951 = vpop.f32.mrb[0].mxu0
      %952 = vdwg.mxu0
      %v953 = vrcp.pop %v903
      %v954 = vmul.f32 %v948, %v953
      %955 = vrot.lane.b32.xlu0 %v727, 112
      %v956 = vpop.permute.xlu0 %955
      %v958 = vsel %vm735, %v956, 0
      %v961 = vsel %vm739, %v725, 0
      %963 = vmatprep.subr.bf16.mxu0 0
      %964 = vmatpush1.bf16.msra.mxu0 %v961
      %965 = vmatprep.subr.bf16.mxu0 0
      %966 = vmatpush1.bf16.msra.mxu0 0
      %967 = vmatprep.subr.bf16.mxu0 0
      %968 = vmatpush1.bf16.msra.mxu0 0
      %969 = vmatprep.subr.bf16.mxu0 0
      %970 = vmatpush1.bf16.msra.mxu0 0
      %971 = vmatprep.subr.bf16.mxu0 0
      %972 = vmatpush1.bf16.msra.mxu0 0
      %973 = vmatprep.subr.bf16.mxu0 0
      %974 = vmatpush1.bf16.msra.mxu0 0
      %975 = vmatprep.subr.bf16.mxu0 0
      %976 = vmatpush1.bf16.msra.mxu0 0
      %977 = vmatprep.subr.bf16.mxu0 0
      %978 = vmatpush1.bf16.msra.mxu0 0
      %979 = vmatprep.subr.bf16.mxu0 0
      %980 = vmatpush1.bf16.msra.mxu0 0
      %981 = vmatprep.subr.bf16.mxu0 0
      %982 = vmatpush1.bf16.msra.mxu0 0
      %983 = vmatprep.subr.bf16.mxu0 0
      %984 = vmatpush1.bf16.msra.mxu0 0
      %985 = vmatprep.subr.bf16.mxu0 0
      %986 = vmatpush1.bf16.msra.mxu0 0
      %987 = vmatprep.subr.bf16.mxu0 0
      %988 = vmatpush1.bf16.msra.mxu0 0
      %989 = vmatprep.subr.bf16.mxu0 0
      %990 = vmatpush1.bf16.msra.mxu0 0
      %991 = vmatprep.subr.bf16.mxu0 0
      %992 = vmatpush1.bf16.msra.mxu0 0
      %993 = vmatprep.subr.bf16.mxu0 0
      %994 = vmatpush1.bf16.msra.mxu0 0
      %995 = vmatprep.mubr.bf16.mxu0 0
      %996 = vmatmul.mubr.bf16.gmra.mrb[0].mxu0 %v958
      %v997 = vpop.f32.mrb[0].mxu0
      %v998 = vadd.f32 %v733, %v997
      %v999 = vpop.f32.mrb[0].mxu0
      %v1000 = vpop.f32.mrb[0].mxu0
      %v1001 = vpop.f32.mrb[0].mxu0
      %1002 = vdwg.mxu0
      %v1003 = vsel %vm735, %v998, -inf
      %1004 = vmax.xlane.f32.xlu0 %v1003
      %v1005 = vpop.xlane.xlu0 %1004
      %v1006 = vsub.f32 %v998, %v1005
      %v1007 = vmul.f32 %v1006, 1.442695
      %v1008 = vpow.pop %v1007
      %v1009 = vsel %vm735, %v1008, 0.0
      %1010 = vadd.xlane.f32.xlu0 %v1009
      %v1011 = vpop.xlane.xlu0 %1010
      %v1012 = vpack.c.bf16 %v1008, %v1008
      %1013 = vrot.lane.b32.xlu0 %v728, 80
      %v1014 = vpop.permute.xlu0 %1013
      %v1016 = vsel %vm735, %v1012, 0
      %v1019 = vsel %vm739, %v1014, 0
      %1021 = vmatprep.subr.bf16.mxu0 0
      %1022 = vmatpush1.bf16.msra.mxu0 %v1019
      %1023 = vmatprep.subr.bf16.mxu0 0
      %1024 = vmatpush1.bf16.msra.mxu0 0
      %1025 = vmatprep.subr.bf16.mxu0 0
      %1026 = vmatpush1.bf16.msra.mxu0 0
      %1027 = vmatprep.subr.bf16.mxu0 0
      %1028 = vmatpush1.bf16.msra.mxu0 0
      %1029 = vmatprep.subr.bf16.mxu0 0
      %1030 = vmatpush1.bf16.msra.mxu0 0
      %1031 = vmatprep.subr.bf16.mxu0 0
      %1032 = vmatpush1.bf16.msra.mxu0 0
      %1033 = vmatprep.subr.bf16.mxu0 0
      %1034 = vmatpush1.bf16.msra.mxu0 0
      %1035 = vmatprep.subr.bf16.mxu0 0
      %1036 = vmatpush1.bf16.msra.mxu0 0
      %1037 = vmatprep.subr.bf16.mxu0 0
      %1038 = vmatpush1.bf16.msra.mxu0 0
      %1039 = vmatprep.subr.bf16.mxu0 0
      %1040 = vmatpush1.bf16.msra.mxu0 0
      %1041 = vmatprep.subr.bf16.mxu0 0
      %1042 = vmatpush1.bf16.msra.mxu0 0
      %1043 = vmatprep.subr.bf16.mxu0 0
      %1044 = vmatpush1.bf16.msra.mxu0 0
      %1045 = vmatprep.subr.bf16.mxu0 0
      %1046 = vmatpush1.bf16.msra.mxu0 0
      %1047 = vmatprep.subr.bf16.mxu0 0
      %1048 = vmatpush1.bf16.msra.mxu0 0
      %1049 = vmatprep.subr.bf16.mxu0 0
      %1050 = vmatpush1.bf16.msra.mxu0 0
      %1051 = vmatprep.subr.bf16.mxu0 0
      %1052 = vmatpush1.bf16.msra.mxu0 0
      %1053 = vmatprep.mubr.bf16.mxu0 0
      %1054 = vmatmul.mubr.bf16.gmra.mrb[0].mxu0 %v1016
      %v1055 = vpop.f32.mrb[0].mxu0
      %v1056 = vadd.f32 0.0, %v1055
      %v1057 = vpop.f32.mrb[0].mxu0
      %v1058 = vpop.f32.mrb[0].mxu0
      %v1059 = vpop.f32.mrb[0].mxu0
      %1060 = vdwg.mxu0
      %v1061 = vrcp.pop %v1011
      %v1062 = vmul.f32 %v1056, %v1061
      %1063 = vrot.lane.b32.xlu0 %v727, 104
      %v1064 = vpop.permute.xlu0 %1063
      %v1066 = vrot.slane %v725, 4
      %v1068 = vsel %vm735, %v1064, 0
      %v1071 = vsel %vm739, %v1066, 0
      %1073 = vmatprep.subr.bf16.mxu0 0
      %1074 = vmatpush1.bf16.msra.mxu0 %v1071
      %1075 = vmatprep.subr.bf16.mxu0 0
      %1076 = vmatpush1.bf16.msra.mxu0 0
      %1077 = vmatprep.subr.bf16.mxu0 0
      %1078 = vmatpush1.bf16.msra.mxu0 0
      %1079 = vmatprep.subr.bf16.mxu0 0
      %1080 = vmatpush1.bf16.msra.mxu0 0
      %1081 = vmatprep.subr.bf16.mxu0 0
      %1082 = vmatpush1.bf16.msra.mxu0 0
      %1083 = vmatprep.subr.bf16.mxu0 0
      %1084 = vmatpush1.bf16.msra.mxu0 0
      %1085 = vmatprep.subr.bf16.mxu0 0
      %1086 = vmatpush1.bf16.msra.mxu0 0
      %1087 = vmatprep.subr.bf16.mxu0 0
      %1088 = vmatpush1.bf16.msra.mxu0 0
      %1089 = vmatprep.subr.bf16.mxu0 0
      %1090 = vmatpush1.bf16.msra.mxu0 0
      %1091 = vmatprep.subr.bf16.mxu0 0
      %1092 = vmatpush1.bf16.msra.mxu0 0
      %1093 = vmatprep.subr.bf16.mxu0 0
      %1094 = vmatpush1.bf16.msra.mxu0 0
      %1095 = vmatprep.subr.bf16.mxu0 0
      %1096 = vmatpush1.bf16.msra.mxu0 0
      %1097 = vmatprep.subr.bf16.mxu0 0
      %1098 = vmatpush1.bf16.msra.mxu0 0
      %1099 = vmatprep.subr.bf16.mxu0 0
      %1100 = vmatpush1.bf16.msra.mxu0 0
      %1101 = vmatprep.subr.bf16.mxu0 0
      %1102 = vmatpush1.bf16.msra.mxu0 0
      %1103 = vmatprep.subr.bf16.mxu0 0
      %1104 = vmatpush1.bf16.msra.mxu0 0
      %1105 = vmatprep.mubr.bf16.mxu0 0
      %1106 = vmatmul.mubr.bf16.gmra.mrb[0].mxu0 %v1068
      %v1107 = vpop.f32.mrb[0].mxu0
      %v1108 = vadd.f32 %v733, %v1107
      %v1109 = vpop.f32.mrb[0].mxu0
      %v1110 = vpop.f32.mrb[0].mxu0
      %v1111 = vpop.f32.mrb[0].mxu0
      %1112 = vdwg.mxu0
      %v1113 = vsel %vm735, %v1108, -inf
      %1114 = vmax.xlane.f32.xlu0 %v1113
      %v1115 = vpop.xlane.xlu0 %1114
      %v1116 = vsub.f32 %v1108, %v1115
      %v1117 = vmul.f32 %v1116, 1.442695
      %v1118 = vpow.pop %v1117
      %v1119 = vsel %vm735, %v1118, 0.0
      %1120 = vadd.xlane.f32.xlu0 %v1119
      %v1121 = vpop.xlane.xlu0 %1120
      %v1122 = vpack.c.bf16 %v1118, %v1118
      %1123 = vrot.lane.b32.xlu0 %v728, 72
      %v1124 = vpop.permute.xlu0 %1123
      %v1126 = vsel %vm735, %v1122, 0
      %v1129 = vsel %vm739, %v1124, 0
      %1131 = vmatprep.subr.bf16.mxu0 0
      %1132 = vmatpush1.bf16.msra.mxu0 %v1129
      %1133 = vmatprep.subr.bf16.mxu0 0
      %1134 = vmatpush1.bf16.msra.mxu0 0
      %1135 = vmatprep.subr.bf16.mxu0 0
      %1136 = vmatpush1.bf16.msra.mxu0 0
      %1137 = vmatprep.subr.bf16.mxu0 0
      %1138 = vmatpush1.bf16.msra.mxu0 0
      %1139 = vmatprep.subr.bf16.mxu0 0
      %1140 = vmatpush1.bf16.msra.mxu0 0
      %1141 = vmatprep.subr.bf16.mxu0 0
      %1142 = vmatpush1.bf16.msra.mxu0 0
      %1143 = vmatprep.subr.bf16.mxu0 0
      %1144 = vmatpush1.bf16.msra.mxu0 0
      %1145 = vmatprep.subr.bf16.mxu0 0
      %1146 = vmatpush1.bf16.msra.mxu0 0
      %1147 = vmatprep.subr.bf16.mxu0 0
      %1148 = vmatpush1.bf16.msra.mxu0 0
      %1149 = vmatprep.subr.bf16.mxu0 0
      %1150 = vmatpush1.bf16.msra.mxu0 0
      %1151 = vmatprep.subr.bf16.mxu0 0
      %1152 = vmatpush1.bf16.msra.mxu0 0
      %1153 = vmatprep.subr.bf16.mxu0 0
      %1154 = vmatpush1.bf16.msra.mxu0 0
      %1155 = vmatprep.subr.bf16.mxu0 0
      %1156 = vmatpush1.bf16.msra.mxu0 0
      %1157 = vmatprep.subr.bf16.mxu0 0
      %1158 = vmatpush1.bf16.msra.mxu0 0
      %1159 = vmatprep.subr.bf16.mxu0 0
      %1160 = vmatpush1.bf16.msra.mxu0 0
      %1161 = vmatprep.subr.bf16.mxu0 0
      %1162 = vmatpush1.bf16.msra.mxu0 0
      %1163 = vmatprep.mubr.bf16.mxu0 0
      %1164 = vmatmul.mubr.bf16.gmra.mrb[0].mxu0 %v1126
      %v1165 = vpop.f32.mrb[0].mxu0
      %v1166 = vadd.f32 0.0, %v1165
      %v1167 = vpop.f32.mrb[0].mxu0
      %v1168 = vpop.f32.mrb[0].mxu0
      %v1169 = vpop.f32.mrb[0].mxu0
      %1170 = vdwg.mxu0
      %v1171 = vrcp.pop %v1121
      %v1172 = vmul.f32 %v1166, %v1171
      %1174 = vrot.lane.b32.xlu0 %v954, 8
      %v1175 = vpop.permute.xlu0 %1174
      %1178 = vrot.lane.b32.xlu0 %v1062, 16
      %v1179 = vpop.permute.xlu0 %1178
      %1182 = vrot.lane.b32.xlu0 %v1172, 24
      %v1183 = vpop.permute.xlu0 %1182
      %v1185 = vsel %vm735, %v843, %v1175
      %vm1186 = vcmask 130048
      %v1187 = vsel %vm1186, %v1185, %v1179
      %vm1188 = vcmask 195584
      %v1189 = vsel %vm1188, %v1187, %v1183
      %v1190 = vpack.c.bf16 %v1189, %v1189
      %v1191 = vld [vmem:[%s6] sm:$0xf]
      %v1192 = vld [vmem:[%s6 + $0x4] sm:$0xf]
      %v1193 = vld [vmem:[%s6 + $0x8] sm:$0xf]
      %v1194 = vld [vmem:[%s6 + $0xc] sm:$0xf]
      %v1195 = vld [vmem:[%s7] sm:$0x1]
      %v1197 = vlaneseq
      %v1198 = vshrl.u32 %v1197, 7
      %v1199 = vsub.s32 0, %v1198
      %v1200 = vrot.slane %v1195, %v1199
      %v1206 = vunpack.c.l.b16 %v1191
      %v1207 = vunpack.c.l.b16 %v1192
      %v1208 = vunpack.c.l.b16 %v1193
      %v1209 = vunpack.c.l.b16 %v1194
      %v1210 = vpack.c.b16 %v1207, %v1206
      %v1211 = vpack.c.b16 %v1209, %v1208
      %v1215 = vsel %vm581, %v1190, 0
      %1217 = vmatprep.subr.bf16.mxu0 0
      %1218 = vmatpush1.bf16.msra.mxu0 %v1210
      %1219 = vmatprep.subr.bf16.mxu0 0
      %1220 = vmatpush1.bf16.msra.mxu0 %v1211
      %1221 = vmatprep.subr.bf16.mxu0 0
      %1222 = vmatpush1.bf16.msra.mxu0 0
      %1223 = vmatprep.subr.bf16.mxu0 0
      %1224 = vmatpush1.bf16.msra.mxu0 0
      %1225 = vmatprep.subr.bf16.mxu0 0
      %1226 = vmatpush1.bf16.msra.mxu0 0
      %1227 = vmatprep.subr.bf16.mxu0 0
      %1228 = vmatpush1.bf16.msra.mxu0 0
      %1229 = vmatprep.subr.bf16.mxu0 0
      %1230 = vmatpush1.bf16.msra.mxu0 0
      %1231 = vmatprep.subr.bf16.mxu0 0
      %1232 = vmatpush1.bf16.msra.mxu0 0
      %1233 = vmatprep.subr.bf16.mxu0 0
      %1234 = vmatpush1.bf16.msra.mxu0 0
      %1235 = vmatprep.subr.bf16.mxu0 0
      %1236 = vmatpush1.bf16.msra.mxu0 0
      %1237 = vmatprep.subr.bf16.mxu0 0
      %1238 = vmatpush1.bf16.msra.mxu0 0
      %1239 = vmatprep.subr.bf16.mxu0 0
      %1240 = vmatpush1.bf16.msra.mxu0 0
      %1241 = vmatprep.subr.bf16.mxu0 0
      %1242 = vmatpush1.bf16.msra.mxu0 0
      %1243 = vmatprep.subr.bf16.mxu0 0
      %1244 = vmatpush1.bf16.msra.mxu0 0
      %1245 = vmatprep.subr.bf16.mxu0 0
      %1246 = vmatpush1.bf16.msra.mxu0 0
      %1247 = vmatprep.subr.bf16.mxu0 0
      %1248 = vmatpush1.bf16.msra.mxu0 0
      %1249 = vmatprep.mubr.bf16.mxu0 0
      %1250 = vmatmul.mubr.bf16.gmra.mrb[0].mxu0 %v1215
      %v1251 = vpop.f32.mrb[0].mxu0
      %v1252 = vadd.f32 %v1200, %v1251
      %v1253 = vpop.f32.mrb[0].mxu0
      %v1254 = vpop.f32.mrb[0].mxu0
      %v1255 = vpop.f32.mrb[0].mxu0
      %1256 = vdwg.mxu0
      %v1257 = vadd.f32 %v556, %v1252
      %v1258 = vld [vmem:[%s8] sm:$0x1]
      %v1259 = vld [vmem:[%s9] sm:$0x1]
      %v1260 = vsel %vm581, %v1257, 0.0
      %1261 = vadd.xlane.f32.xlu0 %v1260
      %v1262 = vpop.xlane.xlu0 %1261
      %v1263 = vrcp.pop 32.0
      %v1264 = vmul.f32 %v1262, %v1263
      %v1265 = vsub.f32 %v1257, %v1264
      %v1266 = vmul.f32 %v1265, %v1265
      %v1267 = vsel %vm581, %v1266, 0.0
      %1268 = vadd.xlane.f32.xlu0 %v1267
      %v1269 = vpop.xlane.xlu0 %1268
      %v1270 = vmul.f32 %v1269, %v1263
      %v1271 = vadd.f32 %v1270, 1e-05
      %v1272 = vrsqrt.pop %v1271
      %v1273 = vmul.f32 %v1265, %v1272
      %v1275 = vlaneseq
      %v1276 = vshrl.u32 %v1275, 7
      %v1277 = vsub.s32 0, %v1276
      %v1278 = vrot.slane %v1258, %v1277
      %v1280 = vmul.f32 %v1273, %v1278
      %v1282 = vlaneseq
      %v1283 = vshrl.u32 %v1282, 7
      %v1284 = vsub.s32 0, %v1283
      %v1285 = vrot.slane %v1259, %v1284
      %v1287 = vadd.f32 %v1280, %v1285
      %v1288 = vpack.c.bf16 %v1287, %v1287
      %v1289 = vld [vmem:[%s10] sm:$0xf]
      %v1290 = vld [vmem:[%s10 + $0x4] sm:$0xf]
      %v1291 = vld [vmem:[%s10 + $0x8] sm:$0xf]
      %v1292 = vld [vmem:[%s10 + $0xc] sm:$0xf]
      %v1293 = vld [vmem:[%s11] sm:$0x1]
      %v1295 = vlaneseq
      %v1296 = vshrl.u32 %v1295, 7
      %v1297 = vsub.s32 0, %v1296
      %v1298 = vrot.slane %v1293, %v1297
      %v1304 = vunpack.c.l.b16 %v1289
      %v1305 = vunpack.c.l.b16 %v1290
      %v1306 = vunpack.c.l.b16 %v1291
      %v1307 = vunpack.c.l.b16 %v1292
      %v1308 = vpack.c.b16 %v1305, %v1304
      %v1309 = vpack.c.b16 %v1307, %v1306
      %v1313 = vsel %vm581, %v1288, 0
      %1315 = vmatprep.subr.bf16.mxu0 0
      %1316 = vmatpush1.bf16.msra.mxu0 %v1308
      %1317 = vmatprep.subr.bf16.mxu0 0
      %1318 = vmatpush1.bf16.msra.mxu0 %v1309
      %1319 = vmatprep.subr.bf16.mxu0 0
      %1320 = vmatpush1.bf16.msra.mxu0 0
      %1321 = vmatprep.subr.bf16.mxu0 0
      %1322 = vmatpush1.bf16.msra.mxu0 0
      %1323 = vmatprep.subr.bf16.mxu0 0
      %1324 = vmatpush1.bf16.msra.mxu0 0
      %1325 = vmatprep.subr.bf16.mxu0 0
      %1326 = vmatpush1.bf16.msra.mxu0 0
      %1327 = vmatprep.subr.bf16.mxu0 0
      %1328 = vmatpush1.bf16.msra.mxu0 0
      %1329 = vmatprep.subr.bf16.mxu0 0
      %1330 = vmatpush1.bf16.msra.mxu0 0
      %1331 = vmatprep.subr.bf16.mxu0 0
      %1332 = vmatpush1.bf16.msra.mxu0 0
      %1333 = vmatprep.subr.bf16.mxu0 0
      %1334 = vmatpush1.bf16.msra.mxu0 0
      %1335 = vmatprep.subr.bf16.mxu0 0
      %1336 = vmatpush1.bf16.msra.mxu0 0
      %1337 = vmatprep.subr.bf16.mxu0 0
      %1338 = vmatpush1.bf16.msra.mxu0 0
      %1339 = vmatprep.subr.bf16.mxu0 0
      %1340 = vmatpush1.bf16.msra.mxu0 0
      %1341 = vmatprep.subr.bf16.mxu0 0
      %1342 = vmatpush1.bf16.msra.mxu0 0
      %1343 = vmatprep.subr.bf16.mxu0 0
      %1344 = vmatpush1.bf16.msra.mxu0 0
      %1345 = vmatprep.subr.bf16.mxu0 0
      %1346 = vmatpush1.bf16.msra.mxu0 0
      %1347 = vmatprep.mubr.bf16.mxu0 0
      %1348 = vmatmul.mubr.bf16.gmra.mrb[0].mxu0 %v1313
      %v1349 = vpop.f32.mrb[0].mxu0
      %v1350 = vadd.f32 %v1298, %v1349
      %v1351 = vpop.f32.mrb[0].mxu0
      %v1352 = vpop.f32.mrb[0].mxu0
      %v1353 = vpop.f32.mrb[0].mxu0
      %1354 = vdwg.mxu0
      %v1355 = vmax.f32 %v1350, 0.0
      %v1356 = vpack.c.bf16 %v1355, %v1355
      %v1357 = vld [vmem:[%s12] sm:$0xf]
      %v1358 = vld [vmem:[%s12 + $0x4] sm:$0xf]
      %v1359 = vld [vmem:[%s12 + $0x8] sm:$0xf]
      %v1360 = vld [vmem:[%s12 + $0xc] sm:$0xf]
      %v1361 = vld [vmem:[%s12 + $0x10] sm:$0xf]
      %v1362 = vld [vmem:[%s12 + $0x14] sm:$0xf]
      %v1363 = vld [vmem:[%s12 + $0x18] sm:$0xf]
      %v1364 = vld [vmem:[%s12 + $0x1c] sm:$0xf]
      %v1365 = vld [vmem:[%s13] sm:$0x1]
      %v1367 = vlaneseq
      %v1368 = vshrl.u32 %v1367, 7
      %v1369 = vsub.s32 0, %v1368
      %v1370 = vrot.slane %v1365, %v1369
      %v1380 = vunpack.c.l.b16 %v1357
      %v1381 = vunpack.c.l.b16 %v1358
      %v1382 = vunpack.c.l.b16 %v1359
      %v1383 = vunpack.c.l.b16 %v1360
      %v1384 = vunpack.c.l.b16 %v1361
      %v1385 = vunpack.c.l.b16 %v1362
      %v1386 = vunpack.c.l.b16 %v1363
      %v1387 = vunpack.c.l.b16 %v1364
      %v1388 = vpack.c.b16 %v1381, %v1380
      %v1389 = vpack.c.b16 %v1383, %v1382
      %v1390 = vpack.c.b16 %v1385, %v1384
      %v1391 = vpack.c.b16 %v1387, %v1386
      %vm1396 = vcmask 523264
      %v1398 = vsel %vm1396, %v1356, 0
      %1400 = vmatprep.subr.bf16.mxu0 0
      %1401 = vmatpush1.bf16.msra.mxu0 %v1388
      %1402 = vmatprep.subr.bf16.mxu0 0
      %1403 = vmatpush1.bf16.msra.mxu0 %v1389
      %1404 = vmatprep.subr.bf16.mxu0 0
      %1405 = vmatpush1.bf16.msra.mxu0 %v1390
      %1406 = vmatprep.subr.bf16.mxu0 0
      %1407 = vmatpush1.bf16.msra.mxu0 %v1391
      %1408 = vmatprep.subr.bf16.mxu0 0
      %1409 = vmatpush1.bf16.msra.mxu0 0
      %1410 = vmatprep.subr.bf16.mxu0 0
      %1411 = vmatpush1.bf16.msra.mxu0 0
      %1412 = vmatprep.subr.bf16.mxu0 0
      %1413 = vmatpush1.bf16.msra.mxu0 0
      %1414 = vmatprep.subr.bf16.mxu0 0
      %1415 = vmatpush1.bf16.msra.mxu0 0
      %1416 = vmatprep.subr.bf16.mxu0 0
      %1417 = vmatpush1.bf16.msra.mxu0 0
      %1418 = vmatprep.subr.bf16.mxu0 0
      %1419 = vmatpush1.bf16.msra.mxu0 0
      %1420 = vmatprep.subr.bf16.mxu0 0
      %1421 = vmatpush1.bf16.msra.mxu0 0
      %1422 = vmatprep.subr.bf16.mxu0 0
      %1423 = vmatpush1.bf16.msra.mxu0 0
      %1424 = vmatprep.subr.bf16.mxu0 0
      %1425 = vmatpush1.bf16.msra.mxu0 0
      %1426 = vmatprep.subr.bf16.mxu0 0
      %1427 = vmatpush1.bf16.msra.mxu0 0
      %1428 = vmatprep.subr.bf16.mxu0 0
      %1429 = vmatpush1.bf16.msra.mxu0 0
      %1430 = vmatprep.subr.bf16.mxu0 0
      %1431 = vmatpush1.bf16.msra.mxu0 0
      %1432 = vmatprep.mubr.bf16.mxu0 0
      %1433 = vmatmul.mubr.bf16.gmra.mrb[0].mxu0 %v1398
      %v1434 = vpop.f32.mrb[0].mxu0
      %v1435 = vadd.f32 %v1370, %v1434
      %v1436 = vpop.f32.mrb[0].mxu0
      %v1437 = vpop.f32.mrb[0].mxu0
      %v1438 = vpop.f32.mrb[0].mxu0
      %1439 = vdwg.mxu0
      %v1440 = vadd.f32 %v1287, %v1435
      %v1441 = vld [vmem:[%s14] sm:$0x1]
      %v1442 = vld [vmem:[%s15] sm:$0x1]
      %v1443 = vsel %vm581, %v1440, 0.0
      %1444 = vadd.xlane.f32.xlu0 %v1443
      %v1445 = vpop.xlane.xlu0 %1444
      %v1446 = vmul.f32 %v1445, %v1263
      %v1447 = vsub.f32 %v1440, %v1446
      %v1448 = vmul.f32 %v1447, %v1447
      %v1449 = vsel %vm581, %v1448, 0.0
      %1450 = vadd.xlane.f32.xlu0 %v1449
      %v1451 = vpop.xlane.xlu0 %1450
      %v1452 = vmul.f32 %v1451, %v1263
      %v1453 = vadd.f32 %v1452, 1e-05
      %v1454 = vrsqrt.pop %v1453
      %v1455 = vmul.f32 %v1447, %v1454
      %v1457 = vlaneseq
      %v1458 = vshrl.u32 %v1457, 7
      %v1459 = vsub.s32 0, %v1458
      %v1460 = vrot.slane %v1441, %v1459
      %v1462 = vmul.f32 %v1455, %v1460
      %v1464 = vlaneseq
      %v1465 = vshrl.u32 %v1464, 7
      %v1466 = vsub.s32 0, %v1465
      %v1467 = vrot.slane %v1442, %v1466
      %v1469 = vadd.f32 %v1462, %v1467
      %1470 = vst.msk [vmem:[%s550] sm:$0xff] %vm581, %v1469
      %p1471 = scmp.lt.s32.totalorder %s31, 1
      %s1472 = scalar_select %p1471, %s31, 1
      %p1473 = scmp.lt.s32.totalorder %s32, 0
      %s1474 = scalar_select %p1473, %s32, 0
      %s1475 = sadd.s32 %s1474, %s1472
      %s1476 = smul.addr %s1475, 8
      %s1477 = scalar_lea.vmem %s16, %s1476
      // Predicated region
      $region85: #{t5_forward.5} parent=83 // pred_check
        %p1478 = pneg %p405
      $region86: #{t5_forward.5} parent=83 // pred_check_branch
        %1480 = sbr.rel (%p1478) target = $region88
      $region87: #{t5_forward.5} parent=83 // pred_region
        _
      $region88: #{t5_forward.5} parent=83 // pred_fallthru
        _
    $region84: #{t5_forward.5} parent=5 // pred_fallthru
      _
    %p1481 = scmp.le.s32.totalorder 2, %s22
    // Predicated region
    $region89: #{t5_forward.5} parent=5 // pred_check
      %p1482 = pneg %p1481
    $region90: #{t5_forward.5} parent=5 // pred_check_branch
      %1484 = sbr.rel (%p1482) target = $region92
    $region91: #{t5_forward.5} parent=5 // pred_region
      %s1485 = ssub.s32 %s22, 2
      // Predicated region
      $region93: #{t5_forward.5} parent=91 // pred_check
        %p1486 = pneg %p411
      $region94: #{t5_forward.5} parent=91 // pred_check_branch
        %1488 = sbr.rel (%p1486) target = $region96
      $region95: #{t5_forward.5} parent=91 // pred_region
        %p1489 = scmp.lt.s32.totalorder %s33, 1
        %s1490 = scalar_select %p1489, %s33, 1
        %p1491 = scmp.lt.s32.totalorder %s34, 0
        %s1492 = scalar_select %p1491, %s34, 0
        %s1493 = sadd.s32 %s1492, %s1490
        %s1494 = smul.addr %s1493, 8
        %s1495 = scalar_lea.vmem %s16, %s1494
      $region96: #{t5_forward.5} parent=91 // pred_fallthru
        _
    $region92: #{t5_forward.5} parent=5 // pred_fallthru
      _
  $region6: #{t5_forward.5} parent=0 // loop_footer
    %s26 = sadd.s32 1, %s22
  $region7: #{t5_forward.5} parent=0 // loop_footer_branch
    %21 = sbr.rel target = $region3
  $region8: #{t5_forward.5} parent=0 // loop_exit
    _

// kernel: t5_forward.7
$region0: #{t5_forward.7}
  #allocation0 [shape = 'u32[]', space=smem, size = 0x4, offset = 0x4, fixed_abs, tag = 'smem constant byte address 0x4 - core index']
  #allocation1 [shape = 'u32[144,128]{1,0:T(1,128)}', space=vmem, size = 0x12000, scoped, tag = 'internal scratch']
  %s0 = inlined_call_operand.vmem [shape: f32[2,8,32], index: 0, kind: input, shape index: {}]
  %s1 = inlined_call_operand.vmem [shape: f32[2,8,32], index: 1, kind: input, shape index: {}]
  %s2 = inlined_call_operand.vmem [shape: f32[2,1,8], index: 2, kind: input, shape index: {}]
  %s3 = inlined_call_operand.vmem [shape: f32[2,1,8], index: 3, kind: input, shape index: {}]
  %s4 = inlined_call_operand.vmem [shape: bf16[32,32], index: 4, kind: input, shape index: {}]
  %s5 = inlined_call_operand.vmem [shape: f32[1,32], index: 5, kind: input, shape index: {}, may-alias: {5,9,11,13,17,19,23,25}]
  %s6 = inlined_call_operand.vmem [shape: bf16[32,64], index: 6, kind: input, shape index: {}]
  %s7 = inlined_call_operand.vmem [shape: f32[1,64], index: 7, kind: input, shape index: {}, may-alias: {7,15,21}]
  %s8 = inlined_call_operand.vmem [shape: bf16[32,32], index: 8, kind: input, shape index: {}]
  %s9 = inlined_call_operand.vmem [shape: f32[1,32], index: 9, kind: input, shape index: {}, may-alias: {5,9,11,13,17,19,23,25}]
  %s10 = inlined_call_operand.vmem [shape: f32[1,32], index: 10, kind: input, shape index: {}, may-alias: {10,18,24}]
  %s11 = inlined_call_operand.vmem [shape: f32[1,32], index: 11, kind: input, shape index: {}, may-alias: {5,9,11,13,17,19,23,25}]
  %s12 = inlined_call_operand.vmem [shape: bf16[32,32], index: 12, kind: input, shape index: {}]
  %s13 = inlined_call_operand.vmem [shape: f32[1,32], index: 13, kind: input, shape index: {}, may-alias: {5,9,11,13,17,19,23,25}]
  %s14 = inlined_call_operand.vmem [shape: bf16[32,64], index: 14, kind: input, shape index: {}]
  %s15 = inlined_call_operand.vmem [shape: f32[1,64], index: 15, kind: input, shape index: {}, may-alias: {7,15,21}]
  %s16 = inlined_call_operand.vmem [shape: bf16[32,32], index: 16, kind: input, shape index: {}]
  %s17 = inlined_call_operand.vmem [shape: f32[1,32], index: 17, kind: input, shape index: {}, may-alias: {5,9,11,13,17,19,23,25}]
  %s18 = inlined_call_operand.vmem [shape: f32[1,32], index: 18, kind: input, shape index: {}, may-alias: {10,18,24}]
  %s19 = inlined_call_operand.vmem [shape: f32[1,32], index: 19, kind: input, shape index: {}, may-alias: {5,9,11,13,17,19,23,25}]
  %s20 = inlined_call_operand.vmem [shape: bf16[32,64], index: 20, kind: input, shape index: {}]
  %s21 = inlined_call_operand.vmem [shape: f32[1,64], index: 21, kind: input, shape index: {}, may-alias: {7,15,21}]
  %s22 = inlined_call_operand.vmem [shape: bf16[64,32], index: 22, kind: input, shape index: {}]
  %s23 = inlined_call_operand.vmem [shape: f32[1,32], index: 23, kind: input, shape index: {}, may-alias: {5,9,11,13,17,19,23,25}]
  %s24 = inlined_call_operand.vmem [shape: f32[1,32], index: 24, kind: input, shape index: {}, may-alias: {10,18,24}]
  %s25 = inlined_call_operand.vmem [shape: f32[1,32], index: 25, kind: input, shape index: {}, may-alias: {5,9,11,13,17,19,23,25}]
  %s26 = inlined_call_operand.vmem [shape: f32[2,8,32], index: 26, kind: output, shape index: {}]
  %s27 = sld [smem:[#allocation0]]
  $region137: #{t5_forward.7} parent=0
    _
  %s29 = ssub.s32 1, %s27
  %s30 = scalar_select 0, %s29, %s27
  loop: start=0, step=1, limit=4
  $region2: #{t5_forward.7} parent=0 // loop_pre_header
    _
  $region3: #{t5_forward.7} parent=0 // loop_header
    %s32 = sphi 0, %s36
    %p33 = scmp.ge.s32.totalorder %s32, 4
    %s39 = sphi 0, %s51
    %s40 = sphi 0, %s47
    %s41 = sphi 0, %s39
    %s42 = sphi 0, %s40
    %s43 = sphi 0, %s41
    %s44 = sphi 0, %s42
    %s54 = sphi 0, %s56
    %s57 = sphi 0, %s54
    %s58 = sphi 0, %s57
    %s74 = sphi 0, %s58
    %s80 = sphi 0, %s82
    %s83 = sphi 0, %s80
    %s84 = sphi 0, %s83
    %s100 = sphi 0, %s84
    %s106 = sphi 0, %s108
    %s109 = sphi 0, %s106
    %s110 = sphi 0, %s109
    %s126 = sphi 0, %s110
    %s132 = sphi 0, %s134
    %s135 = sphi 0, %s132
    %s136 = sphi 0, %s135
    %s152 = sphi 0, %s136
    %s156 = sphi 0, %s156
    %s158 = sphi 0, %s156
    %s159 = sphi 0, %s158
    %s173 = sphi 0, %s159
    %s177 = sphi 0, %s177
    %s179 = sphi 0, %s177
    %s180 = sphi 0, %s179
    %s194 = sphi 0, %s180
    %s198 = sphi 0, %s198
    %s200 = sphi 0, %s198
    %s201 = sphi 0, %s200
    %s215 = sphi 0, %s201
    %s219 = sphi 0, %s219
    %s221 = sphi 0, %s219
    %s222 = sphi 0, %s221
    %s236 = sphi 0, %s222
    %s240 = sphi 0, %s240
    %s242 = sphi 0, %s240
    %s243 = sphi 0, %s242
    %s257 = sphi 0, %s243
    %s261 = sphi 0, %s261
    %s263 = sphi 0, %s261
    %s264 = sphi 0, %s263
    %s278 = sphi 0, %s264
    %s282 = sphi 0, %s282
    %s284 = sphi 0, %s282
    %s285 = sphi 0, %s284
    %s299 = sphi 0, %s285
    %s303 = sphi 0, %s303
    %s305 = sphi 0, %s303
    %s306 = sphi 0, %s305
    %s320 = sphi 0, %s306
    %s324 = sphi 0, %s324
    %s326 = sphi 0, %s324
    %s327 = sphi 0, %s326
    %s341 = sphi 0, %s327
    %s345 = sphi 0, %s345
    %s347 = sphi 0, %s345
    %s348 = sphi 0, %s347
    %s362 = sphi 0, %s348
    %s366 = sphi 0, %s366
    %s368 = sphi 0, %s366
    %s369 = sphi 0, %s368
    %s383 = sphi 0, %s369
    %s387 = sphi 0, %s387
    %s389 = sphi 0, %s387
    %s390 = sphi 0, %s389
    %s404 = sphi 0, %s390
    %s408 = sphi 0, %s408
    %s410 = sphi 0, %s408
    %s411 = sphi 0, %s410
    %s425 = sphi 0, %s411
    %s429 = sphi 0, %s429
    %s431 = sphi 0, %s429
    %s432 = sphi 0, %s431
    %s446 = sphi 0, %s432
    %s450 = sphi 0, %s450
    %s452 = sphi 0, %s450
    %s453 = sphi 0, %s452
    %s467 = sphi 0, %s453
    %s471 = sphi 0, %s471
    %s473 = sphi 0, %s471
    %s474 = sphi 0, %s473
    %s488 = sphi 0, %s474
    %s492 = sphi 0, %s492
    %s494 = sphi 0, %s492
    %s495 = sphi 0, %s494
    %s509 = sphi 0, %s495
    %s513 = sphi 0, %s513
    %s515 = sphi 0, %s513
    %s516 = sphi 0, %s515
    %s530 = sphi 0, %s516
    %s534 = sphi 0, %s534
    %s536 = sphi 0, %s534
    %s537 = sphi 0, %s536
    %s551 = sphi 0, %s537
    %s555 = sphi 0, %s555
    %s557 = sphi 0, %s555
    %s558 = sphi 0, %s557
    %s572 = sphi 0, %s558
    %s576 = sphi 0, %s576
    %s578 = sphi 0, %s576
    %s579 = sphi 0, %s578
    %s593 = sphi 0, %s579
    %s597 = sphi 0, %s597
    %s599 = sphi 0, %s597
    %s600 = sphi 0, %s599
    %s614 = sphi 0, %s600
    %s622 = sphi 0, %s624
    %s625 = sphi 0, %s622
    %s626 = sphi 0, %s625
    %s642 = sphi 0, %s626
  $region4: #{t5_forward.7} parent=0 // loop_header_branch
    %35 = sbr.rel (%p33) target = $region8
  $region5: #{t5_forward.7} parent=0 // loop_body
    %s37 = ssub.s32 %s32, 1
    %s38 = ssub.s32 %s32, 2
    %s45 = sadd.s32 1, %s40
    %p46 = scmp.ge.s32.totalorder %s45, 1
    %s47 = scalar_select %p46, 0, %s45
    %s48 = sadd.s32 1, %s39
    %s49 = scalar_select %p46, %s48, %s39
    %p50 = scmp.ge.s32.totalorder %s49, 2
    %s51 = scalar_select %p50, 0, %s49
    %s52 = ssub.s32 %s39, %s51
    %p53 = scmp.eq.s32.totalorder %s52, 0
    %s55 = sadd.s32 %s54, 1
    %s56 = scalar_select %p53, %s54, %s55
    %p59 = pneg %p53
    %p60 = scmp.eq.s32.totalorder %s32, 1
    %p61 = por %p59, %p60
    %p62 = scmp.ne.s32.totalorder %s54, %s57
    %p63 = scmp.eq.s32.totalorder %s32, 0
    %p64 = por %p62, %p63
    %p65 = scmp.ne.s32.totalorder %s54, %s57
    %p66 = scmp.eq.s32.totalorder %s37, 1
    %p67 = por %p65, %p66
    %p68 = scmp.ne.s32.totalorder %s57, %s58
    %p69 = scmp.eq.s32.totalorder %s37, 0
    %p70 = por %p68, %p69
    %p71 = scmp.ne.s32.totalorder %s57, %s58
    %p72 = scmp.eq.s32.totalorder %s38, 1
    %p73 = por %p71, %p72
    %p75 = scmp.ne.s32.totalorder %s58, %s74
    %p76 = scmp.eq.s32.totalorder %s38, 0
    %p77 = por %p75, %p76
    %s78 = ssub.s32 %s39, %s51
    %p79 = scmp.eq.s32.totalorder %s78, 0
    %s81 = sadd.s32 %s80, 1
    %s82 = scalar_select %p79, %s80, %s81
    %p85 = pneg %p79
    %p86 = scmp.eq.s32.totalorder %s32, 1
    %p87 = por %p85, %p86
    %p88 = scmp.ne.s32.totalorder %s80, %s83
    %p89 = scmp.eq.s32.totalorder %s32, 0
    %p90 = por %p88, %p89
    %p91 = scmp.ne.s32.totalorder %s80, %s83
    %p92 = scmp.eq.s32.totalorder %s37, 1
    %p93 = por %p91, %p92
    %p94 = scmp.ne.s32.totalorder %s83, %s84
    %p95 = scmp.eq.s32.totalorder %s37, 0
    %p96 = por %p94, %p95
    %p97 = scmp.ne.s32.totalorder %s83, %s84
    %p98 = scmp.eq.s32.totalorder %s38, 1
    %p99 = por %p97, %p98
    %p101 = scmp.ne.s32.totalorder %s84, %s100
    %p102 = scmp.eq.s32.totalorder %s38, 0
    %p103 = por %p101, %p102
    %s104 = ssub.s32 %s39, %s51
    %p105 = scmp.eq.s32.totalorder %s104, 0
    %s107 = sadd.s32 %s106, 1
    %s108 = scalar_select %p105, %s106, %s107
    %p111 = pneg %p105
    %p112 = scmp.eq.s32.totalorder %s32, 1
    %p113 = por %p111, %p112
    %p114 = scmp.ne.s32.totalorder %s106, %s109
    %p115 = scmp.eq.s32.totalorder %s32, 0
    %p116 = por %p114, %p115
    %p117 = scmp.ne.s32.totalorder %s106, %s109
    %p118 = scmp.eq.s32.totalorder %s37, 1
    %p119 = por %p117, %p118
    %p120 = scmp.ne.s32.totalorder %s109, %s110
    %p121 = scmp.eq.s32.totalorder %s37, 0
    %p122 = por %p120, %p121
    %p123 = scmp.ne.s32.totalorder %s109, %s110
    %p124 = scmp.eq.s32.totalorder %s38, 1
    %p125 = por %p123, %p124
    %p127 = scmp.ne.s32.totalorder %s110, %s126
    %p128 = scmp.eq.s32.totalorder %s38, 0
    %p129 = por %p127, %p128
    %s130 = ssub.s32 %s39, %s51
    %p131 = scmp.eq.s32.totalorder %s130, 0
    %s133 = sadd.s32 %s132, 1
    %s134 = scalar_select %p131, %s132, %s133
    %p137 = pneg %p131
    %p138 = scmp.eq.s32.totalorder %s32, 1
    %p139 = por %p137, %p138
    %p140 = scmp.ne.s32.totalorder %s132, %s135
    %p141 = scmp.eq.s32.totalorder %s32, 0
    %p142 = por %p140, %p141
    %p143 = scmp.ne.s32.totalorder %s132, %s135
    %p144 = scmp.eq.s32.totalorder %s37, 1
    %p145 = por %p143, %p144
    %p146 = scmp.ne.s32.totalorder %s135, %s136
    %p147 = scmp.eq.s32.totalorder %s37, 0
    %p148 = por %p146, %p147
    %p149 = scmp.ne.s32.totalorder %s135, %s136
    %p150 = scmp.eq.s32.totalorder %s38, 1
    %p151 = por %p149, %p150
    %p153 = scmp.ne.s32.totalorder %s136, %s152
    %p154 = scmp.eq.s32.totalorder %s38, 0
    %p155 = por %p153, %p154
    %s157 = sadd.s32 %s156, 1
    %p160 = scmp.eq.s32.totalorder %s32, 1
    %p161 = scmp.ne.s32.totalorder %s156, %s158
    %p162 = scmp.eq.s32.totalorder %s32, 0
    %p163 = por %p161, %p162
    %p164 = scmp.ne.s32.totalorder %s156, %s158
    %p165 = scmp.eq.s32.totalorder %s37, 1
    %p166 = por %p164, %p165
    %p167 = scmp.ne.s32.totalorder %s158, %s159
    %p168 = scmp.eq.s32.totalorder %s37, 0
    %p169 = por %p167, %p168
    %p170 = scmp.ne.s32.totalorder %s158, %s159
    %p171 = scmp.eq.s32.totalorder %s38, 1
    %p172 = por %p170, %p171
    %p174 = scmp.ne.s32.totalorder %s159, %s173
    %p175 = scmp.eq.s32.totalorder %s38, 0
    %p176 = por %p174, %p175
    %s178 = sadd.s32 %s177, 1
    %p181 = scmp.eq.s32.totalorder %s32, 1
    %p182 = scmp.ne.s32.totalorder %s177, %s179
    %p183 = scmp.eq.s32.totalorder %s32, 0
    %p184 = por %p182, %p183
    %p185 = scmp.ne.s32.totalorder %s177, %s179
    %p186 = scmp.eq.s32.totalorder %s37, 1
    %p187 = por %p185, %p186
    %p188 = scmp.ne.s32.totalorder %s179, %s180
    %p189 = scmp.eq.s32.totalorder %s37, 0
    %p190 = por %p188, %p189
    %p191 = scmp.ne.s32.totalorder %s179, %s180
    %p192 = scmp.eq.s32.totalorder %s38, 1
    %p193 = por %p191, %p192
    %p195 = scmp.ne.s32.totalorder %s180, %s194
    %p196 = scmp.eq.s32.totalorder %s38, 0
    %p197 = por %p195, %p196
    %s199 = sadd.s32 %s198, 1
    %p202 = scmp.eq.s32.totalorder %s32, 1
    %p203 = scmp.ne.s32.totalorder %s198, %s200
    %p204 = scmp.eq.s32.totalorder %s32, 0
    %p205 = por %p203, %p204
    %p206 = scmp.ne.s32.totalorder %s198, %s200
    %p207 = scmp.eq.s32.totalorder %s37, 1
    %p208 = por %p206, %p207
    %p209 = scmp.ne.s32.totalorder %s200, %s201
    %p210 = scmp.eq.s32.totalorder %s37, 0
    %p211 = por %p209, %p210
    %p212 = scmp.ne.s32.totalorder %s200, %s201
    %p213 = scmp.eq.s32.totalorder %s38, 1
    %p214 = por %p212, %p213
    %p216 = scmp.ne.s32.totalorder %s201, %s215
    %p217 = scmp.eq.s32.totalorder %s38, 0
    %p218 = por %p216, %p217
    %s220 = sadd.s32 %s219, 1
    %p223 = scmp.eq.s32.totalorder %s32, 1
    %p224 = scmp.ne.s32.totalorder %s219, %s221
    %p225 = scmp.eq.s32.totalorder %s32, 0
    %p226 = por %p224, %p225
    %p227 = scmp.ne.s32.totalorder %s219, %s221
    %p228 = scmp.eq.s32.totalorder %s37, 1
    %p229 = por %p227, %p228
    %p230 = scmp.ne.s32.totalorder %s221, %s222
    %p231 = scmp.eq.s32.totalorder %s37, 0
    %p232 = por %p230, %p231
    %p233 = scmp.ne.s32.totalorder %s221, %s222
    %p234 = scmp.eq.s32.totalorder %s38, 1
    %p235 = por %p233, %p234
    %p237 = scmp.ne.s32.totalorder %s222, %s236
    %p238 = scmp.eq.s32.totalorder %s38, 0
    %p239 = por %p237, %p238
    %s241 = sadd.s32 %s240, 1
    %p244 = scmp.eq.s32.totalorder %s32, 1
    %p245 = scmp.ne.s32.totalorder %s240, %s242
    %p246 = scmp.eq.s32.totalorder %s32, 0
    %p247 = por %p245, %p246
    %p248 = scmp.ne.s32.totalorder %s240, %s242
    %p249 = scmp.eq.s32.totalorder %s37, 1
    %p250 = por %p248, %p249
    %p251 = scmp.ne.s32.totalorder %s242, %s243
    %p252 = scmp.eq.s32.totalorder %s37, 0
    %p253 = por %p251, %p252
    %p254 = scmp.ne.s32.totalorder %s242, %s243
    %p255 = scmp.eq.s32.totalorder %s38, 1
    %p256 = por %p254, %p255
    %p258 = scmp.ne.s32.totalorder %s243, %s257
    %p259 = scmp.eq.s32.totalorder %s38, 0
    %p260 = por %p258, %p259
    %s262 = sadd.s32 %s261, 1
    %p265 = scmp.eq.s32.totalorder %s32, 1
    %p266 = scmp.ne.s32.totalorder %s261, %s263
    %p267 = scmp.eq.s32.totalorder %s32, 0
    %p268 = por %p266, %p267
    %p269 = scmp.ne.s32.totalorder %s261, %s263
    %p270 = scmp.eq.s32.totalorder %s37, 1
    %p271 = por %p269, %p270
    %p272 = scmp.ne.s32.totalorder %s263, %s264
    %p273 = scmp.eq.s32.totalorder %s37, 0
    %p274 = por %p272, %p273
    %p275 = scmp.ne.s32.totalorder %s263, %s264
    %p276 = scmp.eq.s32.totalorder %s38, 1
    %p277 = por %p275, %p276
    %p279 = scmp.ne.s32.totalorder %s264, %s278
    %p280 = scmp.eq.s32.totalorder %s38, 0
    %p281 = por %p279, %p280
    %s283 = sadd.s32 %s282, 1
    %p286 = scmp.eq.s32.totalorder %s32, 1
    %p287 = scmp.ne.s32.totalorder %s282, %s284
    %p288 = scmp.eq.s32.totalorder %s32, 0
    %p289 = por %p287, %p288
    %p290 = scmp.ne.s32.totalorder %s282, %s284
    %p291 = scmp.eq.s32.totalorder %s37, 1
    %p292 = por %p290, %p291
    %p293 = scmp.ne.s32.totalorder %s284, %s285
    %p294 = scmp.eq.s32.totalorder %s37, 0
    %p295 = por %p293, %p294
    %p296 = scmp.ne.s32.totalorder %s284, %s285
    %p297 = scmp.eq.s32.totalorder %s38, 1
    %p298 = por %p296, %p297
    %p300 = scmp.ne.s32.totalorder %s285, %s299
    %p301 = scmp.eq.s32.totalorder %s38, 0
    %p302 = por %p300, %p301
    %s304 = sadd.s32 %s303, 1
    %p307 = scmp.eq.s32.totalorder %s32, 1
    %p308 = scmp.ne.s32.totalorder %s303, %s305
    %p309 = scmp.eq.s32.totalorder %s32, 0
    %p310 = por %p308, %p309
    %p311 = scmp.ne.s32.totalorder %s303, %s305
    %p312 = scmp.eq.s32.totalorder %s37, 1
    %p313 = por %p311, %p312
    %p314 = scmp.ne.s32.totalorder %s305, %s306
    %p315 = scmp.eq.s32.totalorder %s37, 0
    %p316 = por %p314, %p315
    %p317 = scmp.ne.s32.totalorder %s305, %s306
    %p318 = scmp.eq.s32.totalorder %s38, 1
    %p319 = por %p317, %p318
    %p321 = scmp.ne.s32.totalorder %s306, %s320
    %p322 = scmp.eq.s32.totalorder %s38, 0
    %p323 = por %p321, %p322
    %s325 = sadd.s32 %s324, 1
    %p328 = scmp.eq.s32.totalorder %s32, 1
    %p329 = scmp.ne.s32.totalorder %s324, %s326
    %p330 = scmp.eq.s32.totalorder %s32, 0
    %p331 = por %p329, %p330
    %p332 = scmp.ne.s32.totalorder %s324, %s326
    %p333 = scmp.eq.s32.totalorder %s37, 1
    %p334 = por %p332, %p333
    %p335 = scmp.ne.s32.totalorder %s326, %s327
    %p336 = scmp.eq.s32.totalorder %s37, 0
    %p337 = por %p335, %p336
    %p338 = scmp.ne.s32.totalorder %s326, %s327
    %p339 = scmp.eq.s32.totalorder %s38, 1
    %p340 = por %p338, %p339
    %p342 = scmp.ne.s32.totalorder %s327, %s341
    %p343 = scmp.eq.s32.totalorder %s38, 0
    %p344 = por %p342, %p343
    %s346 = sadd.s32 %s345, 1
    %p349 = scmp.eq.s32.totalorder %s32, 1
    %p350 = scmp.ne.s32.totalorder %s345, %s347
    %p351 = scmp.eq.s32.totalorder %s32, 0
    %p352 = por %p350, %p351
    %p353 = scmp.ne.s32.totalorder %s345, %s347
    %p354 = scmp.eq.s32.totalorder %s37, 1
    %p355 = por %p353, %p354
    %p356 = scmp.ne.s32.totalorder %s347, %s348
    %p357 = scmp.eq.s32.totalorder %s37, 0
    %p358 = por %p356, %p357
    %p359 = scmp.ne.s32.totalorder %s347, %s348
    %p360 = scmp.eq.s32.totalorder %s38, 1
    %p361 = por %p359, %p360
    %p363 = scmp.ne.s32.totalorder %s348, %s362
    %p364 = scmp.eq.s32.totalorder %s38, 0
    %p365 = por %p363, %p364
    %s367 = sadd.s32 %s366, 1
    %p370 = scmp.eq.s32.totalorder %s32, 1
    %p371 = scmp.ne.s32.totalorder %s366, %s368
    %p372 = scmp.eq.s32.totalorder %s32, 0
    %p373 = por %p371, %p372
    %p374 = scmp.ne.s32.totalorder %s366, %s368
    %p375 = scmp.eq.s32.totalorder %s37, 1
    %p376 = por %p374, %p375
    %p377 = scmp.ne.s32.totalorder %s368, %s369
    %p378 = scmp.eq.s32.totalorder %s37, 0
    %p379 = por %p377, %p378
    %p380 = scmp.ne.s32.totalorder %s368, %s369
    %p381 = scmp.eq.s32.totalorder %s38, 1
    %p382 = por %p380, %p381
    %p384 = scmp.ne.s32.totalorder %s369, %s383
    %p385 = scmp.eq.s32.totalorder %s38, 0
    %p386 = por %p384, %p385
    %s388 = sadd.s32 %s387, 1
    %p391 = scmp.eq.s32.totalorder %s32, 1
    %p392 = scmp.ne.s32.totalorder %s387, %s389
    %p393 = scmp.eq.s32.totalorder %s32, 0
    %p394 = por %p392, %p393
    %p395 = scmp.ne.s32.totalorder %s387, %s389
    %p396 = scmp.eq.s32.totalorder %s37, 1
    %p397 = por %p395, %p396
    %p398 = scmp.ne.s32.totalorder %s389, %s390
    %p399 = scmp.eq.s32.totalorder %s37, 0
    %p400 = por %p398, %p399
    %p401 = scmp.ne.s32.totalorder %s389, %s390
    %p402 = scmp.eq.s32.totalorder %s38, 1
    %p403 = por %p401, %p402
    %p405 = scmp.ne.s32.totalorder %s390, %s404
    %p406 = scmp.eq.s32.totalorder %s38, 0
    %p407 = por %p405, %p406
    %s409 = sadd.s32 %s408, 1
    %p412 = scmp.eq.s32.totalorder %s32, 1
    %p413 = scmp.ne.s32.totalorder %s408, %s410
    %p414 = scmp.eq.s32.totalorder %s32, 0
    %p415 = por %p413, %p414
    %p416 = scmp.ne.s32.totalorder %s408, %s410
    %p417 = scmp.eq.s32.totalorder %s37, 1
    %p418 = por %p416, %p417
    %p419 = scmp.ne.s32.totalorder %s410, %s411
    %p420 = scmp.eq.s32.totalorder %s37, 0
    %p421 = por %p419, %p420
    %p422 = scmp.ne.s32.totalorder %s410, %s411
    %p423 = scmp.eq.s32.totalorder %s38, 1
    %p424 = por %p422, %p423
    %p426 = scmp.ne.s32.totalorder %s411, %s425
    %p427 = scmp.eq.s32.totalorder %s38, 0
    %p428 = por %p426, %p427
    %s430 = sadd.s32 %s429, 1
    %p433 = scmp.eq.s32.totalorder %s32, 1
    %p434 = scmp.ne.s32.totalorder %s429, %s431
    %p435 = scmp.eq.s32.totalorder %s32, 0
    %p436 = por %p434, %p435
    %p437 = scmp.ne.s32.totalorder %s429, %s431
    %p438 = scmp.eq.s32.totalorder %s37, 1
    %p439 = por %p437, %p438
    %p440 = scmp.ne.s32.totalorder %s431, %s432
    %p441 = scmp.eq.s32.totalorder %s37, 0
    %p442 = por %p440, %p441
    %p443 = scmp.ne.s32.totalorder %s431, %s432
    %p444 = scmp.eq.s32.totalorder %s38, 1
    %p445 = por %p443, %p444
    %p447 = scmp.ne.s32.totalorder %s432, %s446
    %p448 = scmp.eq.s32.totalorder %s38, 0
    %p449 = por %p447, %p448
    %s451 = sadd.s32 %s450, 1
    %p454 = scmp.eq.s32.totalorder %s32, 1
    %p455 = scmp.ne.s32.totalorder %s450, %s452
    %p456 = scmp.eq.s32.totalorder %s32, 0
    %p457 = por %p455, %p456
    %p458 = scmp.ne.s32.totalorder %s450, %s452
    %p459 = scmp.eq.s32.totalorder %s37, 1
    %p460 = por %p458, %p459
    %p461 = scmp.ne.s32.totalorder %s452, %s453
    %p462 = scmp.eq.s32.totalorder %s37, 0
    %p463 = por %p461, %p462
    %p464 = scmp.ne.s32.totalorder %s452, %s453
    %p465 = scmp.eq.s32.totalorder %s38, 1
    %p466 = por %p464, %p465
    %p468 = scmp.ne.s32.totalorder %s453, %s467
    %p469 = scmp.eq.s32.totalorder %s38, 0
    %p470 = por %p468, %p469
    %s472 = sadd.s32 %s471, 1
    %p475 = scmp.eq.s32.totalorder %s32, 1
    %p476 = scmp.ne.s32.totalorder %s471, %s473
    %p477 = scmp.eq.s32.totalorder %s32, 0
    %p478 = por %p476, %p477
    %p479 = scmp.ne.s32.totalorder %s471, %s473
    %p480 = scmp.eq.s32.totalorder %s37, 1
    %p481 = por %p479, %p480
    %p482 = scmp.ne.s32.totalorder %s473, %s474
    %p483 = scmp.eq.s32.totalorder %s37, 0
    %p484 = por %p482, %p483
    %p485 = scmp.ne.s32.totalorder %s473, %s474
    %p486 = scmp.eq.s32.totalorder %s38, 1
    %p487 = por %p485, %p486
    %p489 = scmp.ne.s32.totalorder %s474, %s488
    %p490 = scmp.eq.s32.totalorder %s38, 0
    %p491 = por %p489, %p490
    %s493 = sadd.s32 %s492, 1
    %p496 = scmp.eq.s32.totalorder %s32, 1
    %p497 = scmp.ne.s32.totalorder %s492, %s494
    %p498 = scmp.eq.s32.totalorder %s32, 0
    %p499 = por %p497, %p498
    %p500 = scmp.ne.s32.totalorder %s492, %s494
    %p501 = scmp.eq.s32.totalorder %s37, 1
    %p502 = por %p500, %p501
    %p503 = scmp.ne.s32.totalorder %s494, %s495
    %p504 = scmp.eq.s32.totalorder %s37, 0
    %p505 = por %p503, %p504
    %p506 = scmp.ne.s32.totalorder %s494, %s495
    %p507 = scmp.eq.s32.totalorder %s38, 1
    %p508 = por %p506, %p507
    %p510 = scmp.ne.s32.totalorder %s495, %s509
    %p511 = scmp.eq.s32.totalorder %s38, 0
    %p512 = por %p510, %p511
    %s514 = sadd.s32 %s513, 1
    %p517 = scmp.eq.s32.totalorder %s32, 1
    %p518 = scmp.ne.s32.totalorder %s513, %s515
    %p519 = scmp.eq.s32.totalorder %s32, 0
    %p520 = por %p518, %p519
    %p521 = scmp.ne.s32.totalorder %s513, %s515
    %p522 = scmp.eq.s32.totalorder %s37, 1
    %p523 = por %p521, %p522
    %p524 = scmp.ne.s32.totalorder %s515, %s516
    %p525 = scmp.eq.s32.totalorder %s37, 0
    %p526 = por %p524, %p525
    %p527 = scmp.ne.s32.totalorder %s515, %s516
    %p528 = scmp.eq.s32.totalorder %s38, 1
    %p529 = por %p527, %p528
    %p531 = scmp.ne.s32.totalorder %s516, %s530
    %p532 = scmp.eq.s32.totalorder %s38, 0
    %p533 = por %p531, %p532
    %s535 = sadd.s32 %s534, 1
    %p538 = scmp.eq.s32.totalorder %s32, 1
    %p539 = scmp.ne.s32.totalorder %s534, %s536
    %p540 = scmp.eq.s32.totalorder %s32, 0
    %p541 = por %p539, %p540
    %p542 = scmp.ne.s32.totalorder %s534, %s536
    %p543 = scmp.eq.s32.totalorder %s37, 1
    %p544 = por %p542, %p543
    %p545 = scmp.ne.s32.totalorder %s536, %s537
    %p546 = scmp.eq.s32.totalorder %s37, 0
    %p547 = por %p545, %p546
    %p548 = scmp.ne.s32.totalorder %s536, %s537
    %p549 = scmp.eq.s32.totalorder %s38, 1
    %p550 = por %p548, %p549
    %p552 = scmp.ne.s32.totalorder %s537, %s551
    %p553 = scmp.eq.s32.totalorder %s38, 0
    %p554 = por %p552, %p553
    %s556 = sadd.s32 %s555, 1
    %p559 = scmp.eq.s32.totalorder %s32, 1
    %p560 = scmp.ne.s32.totalorder %s555, %s557
    %p561 = scmp.eq.s32.totalorder %s32, 0
    %p562 = por %p560, %p561
    %p563 = scmp.ne.s32.totalorder %s555, %s557
    %p564 = scmp.eq.s32.totalorder %s37, 1
    %p565 = por %p563, %p564
    %p566 = scmp.ne.s32.totalorder %s557, %s558
    %p567 = scmp.eq.s32.totalorder %s37, 0
    %p568 = por %p566, %p567
    %p569 = scmp.ne.s32.totalorder %s557, %s558
    %p570 = scmp.eq.s32.totalorder %s38, 1
    %p571 = por %p569, %p570
    %p573 = scmp.ne.s32.totalorder %s558, %s572
    %p574 = scmp.eq.s32.totalorder %s38, 0
    %p575 = por %p573, %p574
    %s577 = sadd.s32 %s576, 1
    %p580 = scmp.eq.s32.totalorder %s32, 1
    %p581 = scmp.ne.s32.totalorder %s576, %s578
    %p582 = scmp.eq.s32.totalorder %s32, 0
    %p583 = por %p581, %p582
    %p584 = scmp.ne.s32.totalorder %s576, %s578
    %p585 = scmp.eq.s32.totalorder %s37, 1
    %p586 = por %p584, %p585
    %p587 = scmp.ne.s32.totalorder %s578, %s579
    %p588 = scmp.eq.s32.totalorder %s37, 0
    %p589 = por %p587, %p588
    %p590 = scmp.ne.s32.totalorder %s578, %s579
    %p591 = scmp.eq.s32.totalorder %s38, 1
    %p592 = por %p590, %p591
    %p594 = scmp.ne.s32.totalorder %s579, %s593
    %p595 = scmp.eq.s32.totalorder %s38, 0
    %p596 = por %p594, %p595
    %s598 = sadd.s32 %s597, 1
    %p601 = scmp.eq.s32.totalorder %s32, 1
    %p602 = scmp.ne.s32.totalorder %s597, %s599
    %p603 = scmp.eq.s32.totalorder %s32, 0
    %p604 = por %p602, %p603
    %p605 = scmp.ne.s32.totalorder %s597, %s599
    %p606 = scmp.eq.s32.totalorder %s37, 1
    %p607 = por %p605, %p606
    %p608 = scmp.ne.s32.totalorder %s599, %s600
    %p609 = scmp.eq.s32.totalorder %s37, 0
    %p610 = por %p608, %p609
    %p611 = scmp.ne.s32.totalorder %s599, %s600
    %p612 = scmp.eq.s32.totalorder %s38, 1
    %p613 = por %p611, %p612
    %p615 = scmp.ne.s32.totalorder %s600, %s614
    %p616 = scmp.eq.s32.totalorder %s38, 0
    %p617 = por %p615, %p616
    %s618 = ssub.s32 %s39, %s51
    %s619 = ssub.s32 %s40, %s47
    %s620 = sor.u32 %s618, %s619
    %p621 = scmp.eq.s32.totalorder %s620, 0
    %s623 = sadd.s32 %s622, 1
    %s624 = scalar_select %p621, %s622, %s623
    %p627 = pneg %p621
    %p628 = scmp.eq.s32.totalorder %s32, 1
    %p629 = por %p627, %p628
    %p630 = scmp.ne.s32.totalorder %s622, %s625
    %p631 = scmp.eq.s32.totalorder %s32, 0
    %p632 = por %p630, %p631
    %p633 = scmp.ne.s32.totalorder %s622, %s625
    %p634 = scmp.eq.s32.totalorder %s37, 1
    %p635 = por %p633, %p634
    %p636 = scmp.ne.s32.totalorder %s625, %s626
    %p637 = scmp.eq.s32.totalorder %s37, 0
    %p638 = por %p636, %p637
    %p639 = scmp.ne.s32.totalorder %s625, %s626
    %p640 = scmp.eq.s32.totalorder %s38, 1
    %p641 = por %p639, %p640
    %p643 = scmp.ne.s32.totalorder %s626, %s642
    %p644 = scmp.eq.s32.totalorder %s38, 0
    %p645 = por %p643, %p644
    %p646 = scmp.le.s32.totalorder 1, %s32
    %p647 = scmp.lt.s32.totalorder %s32, 3
    %p648 = pnand %p646, %p647
    %p649 = pneg %p648
    // Predicated region
    $region9: #{t5_forward.7} parent=5 // pred_check
      _
    $region10: #{t5_forward.7} parent=5 // pred_check_branch
      %651 = sbr.rel (%p648) target = $region12
    $region11: #{t5_forward.7} parent=5 // pred_region
      %s652 = ssub.s32 %s32, 1
      // Predicated region
      $region13: #{t5_forward.7} parent=11 // pred_check
        %p653 = pneg %p169
      $region14: #{t5_forward.7} parent=11 // pred_check_branch
        %655 = sbr.rel (%p653) target = $region16
      $region15: #{t5_forward.7} parent=11 // pred_region
        _
      $region16: #{t5_forward.7} parent=11 // pred_fallthru
        _
      // Predicated region
      $region17: #{t5_forward.7} parent=11 // pred_check
        %p656 = pneg %p190
      $region18: #{t5_forward.7} parent=11 // pred_check_branch
        %658 = sbr.rel (%p656) target = $region20
      $region19: #{t5_forward.7} parent=11 // pred_region
        _
      $region20: #{t5_forward.7} parent=11 // pred_fallthru
        _
      // Predicated region
      $region21: #{t5_forward.7} parent=11 // pred_check
        %p659 = pneg %p211
      $region22: #{t5_forward.7} parent=11 // pred_check_branch
        %661 = sbr.rel (%p659) target = $region24
      $region23: #{t5_forward.7} parent=11 // pred_region
        _
      $region24: #{t5_forward.7} parent=11 // pred_fallthru
        _
      // Predicated region
      $region25: #{t5_forward.7} parent=11 // pred_check
        %p662 = pneg %p232
      $region26: #{t5_forward.7} parent=11 // pred_check_branch
        %664 = sbr.rel (%p662) target = $region28
      $region27: #{t5_forward.7} parent=11 // pred_region
        _
      $region28: #{t5_forward.7} parent=11 // pred_fallthru
        _
      // Predicated region
      $region29: #{t5_forward.7} parent=11 // pred_check
        %p665 = pneg %p253
      $region30: #{t5_forward.7} parent=11 // pred_check_branch
        %667 = sbr.rel (%p665) target = $region32
      $region31: #{t5_forward.7} parent=11 // pred_region
        _
      $region32: #{t5_forward.7} parent=11 // pred_fallthru
        _
      // Predicated region
      $region33: #{t5_forward.7} parent=11 // pred_check
        %p668 = pneg %p274
      $region34: #{t5_forward.7} parent=11 // pred_check_branch
        %670 = sbr.rel (%p668) target = $region36
      $region35: #{t5_forward.7} parent=11 // pred_region
        _
      $region36: #{t5_forward.7} parent=11 // pred_fallthru
        _
      // Predicated region
      $region37: #{t5_forward.7} parent=11 // pred_check
        %p671 = pneg %p295
      $region38: #{t5_forward.7} parent=11 // pred_check_branch
        %673 = sbr.rel (%p671) target = $region40
      $region39: #{t5_forward.7} parent=11 // pred_region
        _
      $region40: #{t5_forward.7} parent=11 // pred_fallthru
        _
      // Predicated region
      $region41: #{t5_forward.7} parent=11 // pred_check
        %p674 = pneg %p316
      $region42: #{t5_forward.7} parent=11 // pred_check_branch
        %676 = sbr.rel (%p674) target = $region44
      $region43: #{t5_forward.7} parent=11 // pred_region
        _
      $region44: #{t5_forward.7} parent=11 // pred_fallthru
        _
      // Predicated region
      $region45: #{t5_forward.7} parent=11 // pred_check
        %p677 = pneg %p337
      $region46: #{t5_forward.7} parent=11 // pred_check_branch
        %679 = sbr.rel (%p677) target = $region48
      $region47: #{t5_forward.7} parent=11 // pred_region
        _
      $region48: #{t5_forward.7} parent=11 // pred_fallthru
        _
      // Predicated region
      $region49: #{t5_forward.7} parent=11 // pred_check
        %p680 = pneg %p358
      $region50: #{t5_forward.7} parent=11 // pred_check_branch
        %682 = sbr.rel (%p680) target = $region52
      $region51: #{t5_forward.7} parent=11 // pred_region
        _
      $region52: #{t5_forward.7} parent=11 // pred_fallthru
        _
      // Predicated region
      $region53: #{t5_forward.7} parent=11 // pred_check
        %p683 = pneg %p379
      $region54: #{t5_forward.7} parent=11 // pred_check_branch
        %685 = sbr.rel (%p683) target = $region56
      $region55: #{t5_forward.7} parent=11 // pred_region
        _
      $region56: #{t5_forward.7} parent=11 // pred_fallthru
        _
      // Predicated region
      $region57: #{t5_forward.7} parent=11 // pred_check
        %p686 = pneg %p400
      $region58: #{t5_forward.7} parent=11 // pred_check_branch
        %688 = sbr.rel (%p686) target = $region60
      $region59: #{t5_forward.7} parent=11 // pred_region
        _
      $region60: #{t5_forward.7} parent=11 // pred_fallthru
        _
      // Predicated region
      $region61: #{t5_forward.7} parent=11 // pred_check
        %p689 = pneg %p421
      $region62: #{t5_forward.7} parent=11 // pred_check_branch
        %691 = sbr.rel (%p689) target = $region64
      $region63: #{t5_forward.7} parent=11 // pred_region
        _
      $region64: #{t5_forward.7} parent=11 // pred_fallthru
        _
      // Predicated region
      $region65: #{t5_forward.7} parent=11 // pred_check
        %p692 = pneg %p442
      $region66: #{t5_forward.7} parent=11 // pred_check_branch
        %694 = sbr.rel (%p692) target = $region68
      $region67: #{t5_forward.7} parent=11 // pred_region
        _
      $region68: #{t5_forward.7} parent=11 // pred_fallthru
        _
      // Predicated region
      $region69: #{t5_forward.7} parent=11 // pred_check
        %p695 = pneg %p463
      $region70: #{t5_forward.7} parent=11 // pred_check_branch
        %697 = sbr.rel (%p695) target = $region72
      $region71: #{t5_forward.7} parent=11 // pred_region
        _
      $region72: #{t5_forward.7} parent=11 // pred_fallthru
        _
      // Predicated region
      $region73: #{t5_forward.7} parent=11 // pred_check
        %p698 = pneg %p484
      $region74: #{t5_forward.7} parent=11 // pred_check_branch
        %700 = sbr.rel (%p698) target = $region76
      $region75: #{t5_forward.7} parent=11 // pred_region
        _
      $region76: #{t5_forward.7} parent=11 // pred_fallthru
        _
      // Predicated region
      $region77: #{t5_forward.7} parent=11 // pred_check
        %p701 = pneg %p505
      $region78: #{t5_forward.7} parent=11 // pred_check_branch
        %703 = sbr.rel (%p701) target = $region80
      $region79: #{t5_forward.7} parent=11 // pred_region
        _
      $region80: #{t5_forward.7} parent=11 // pred_fallthru
        _
      // Predicated region
      $region81: #{t5_forward.7} parent=11 // pred_check
        %p704 = pneg %p526
      $region82: #{t5_forward.7} parent=11 // pred_check_branch
        %706 = sbr.rel (%p704) target = $region84
      $region83: #{t5_forward.7} parent=11 // pred_region
        _
      $region84: #{t5_forward.7} parent=11 // pred_fallthru
        _
      // Predicated region
      $region85: #{t5_forward.7} parent=11 // pred_check
        %p707 = pneg %p547
      $region86: #{t5_forward.7} parent=11 // pred_check_branch
        %709 = sbr.rel (%p707) target = $region88
      $region87: #{t5_forward.7} parent=11 // pred_region
        _
      $region88: #{t5_forward.7} parent=11 // pred_fallthru
        _
      // Predicated region
      $region89: #{t5_forward.7} parent=11 // pred_check
        %p710 = pneg %p568
      $region90: #{t5_forward.7} parent=11 // pred_check_branch
        %712 = sbr.rel (%p710) target = $region92
      $region91: #{t5_forward.7} parent=11 // pred_region
        _
      $region92: #{t5_forward.7} parent=11 // pred_fallthru
        _
      // Predicated region
      $region93: #{t5_forward.7} parent=11 // pred_check
        %p713 = pneg %p589
      $region94: #{t5_forward.7} parent=11 // pred_check_branch
        %715 = sbr.rel (%p713) target = $region96
      $region95: #{t5_forward.7} parent=11 // pred_region
        _
      $region96: #{t5_forward.7} parent=11 // pred_fallthru
        _
      // Predicated region
      $region97: #{t5_forward.7} parent=11 // pred_check
        %p716 = pneg %p610
      $region98: #{t5_forward.7} parent=11 // pred_check_branch
        %718 = sbr.rel (%p716) target = $region100
      $region99: #{t5_forward.7} parent=11 // pred_region
        _
      $region100: #{t5_forward.7} parent=11 // pred_fallthru
        _
    $region12: #{t5_forward.7} parent=5 // pred_fallthru
      _
    %p719 = scmp.lt.s32.totalorder %s32, 2
    // Predicated region
    $region101: #{t5_forward.7} parent=5 // pred_check
      %p720 = pneg %p719
    $region102: #{t5_forward.7} parent=5 // pred_check_branch
      %722 = sbr.rel (%p720) target = $region104
    $region103: #{t5_forward.7} parent=5 // pred_region
      // Predicated region
      $region105: #{t5_forward.7} parent=103 // pred_check
        %p723 = pneg %p64
      $region106: #{t5_forward.7} parent=103 // pred_check_branch
        %725 = sbr.rel (%p723) target = $region108
      $region107: #{t5_forward.7} parent=103 // pred_region
        %p726 = scmp.lt.s32.totalorder %s39, 1
        %s727 = scalar_select %p726, %s39, 1
        %s728 = smul.addr %s727, 8
        %s729 = scalar_lea.vmem %s0, %s728
      $region108: #{t5_forward.7} parent=103 // pred_fallthru
        _
      // Predicated region
      $region109: #{t5_forward.7} parent=103 // pred_check
        %p730 = pneg %p90
      $region110: #{t5_forward.7} parent=103 // pred_check_branch
        %732 = sbr.rel (%p730) target = $region112
      $region111: #{t5_forward.7} parent=103 // pred_region
        %p733 = scmp.lt.s32.totalorder %s39, 1
        %s734 = scalar_select %p733, %s39, 1
        %s735 = smul.addr %s734, 8
        %s736 = scalar_lea.vmem %s1, %s735
      $region112: #{t5_forward.7} parent=103 // pred_fallthru
        _
      // Predicated region
      $region113: #{t5_forward.7} parent=103 // pred_check
        %p737 = pneg %p116
      $region114: #{t5_forward.7} parent=103 // pred_check_branch
        %739 = sbr.rel (%p737) target = $region116
      $region115: #{t5_forward.7} parent=103 // pred_region
        %p740 = scmp.lt.s32.totalorder %s39, 1
        %s741 = scalar_select %p740, %s39, 1
        %s742 = scalar_lea.vmem %s2, %s741
      $region116: #{t5_forward.7} parent=103 // pred_fallthru
        _
      // Predicated region
      $region117: #{t5_forward.7} parent=103 // pred_check
        %p743 = pneg %p142
      $region118: #{t5_forward.7} parent=103 // pred_check_branch
        %745 = sbr.rel (%p743) target = $region120
      $region119: #{t5_forward.7} parent=103 // pred_region
        %p746 = scmp.lt.s32.totalorder %s39, 1
        %s747 = scalar_select %p746, %s39, 1
        %s748 = scalar_lea.vmem %s3, %s747
      $region120: #{t5_forward.7} parent=103 // pred_fallthru
        _
    $region104: #{t5_forward.7} parent=5 // pred_fallthru
      _
    %p749 = scmp.le.s32.totalorder 1, %s32
    %p750 = scmp.lt.s32.totalorder %s32, 3
    %p751 = pnand %p749, %p750
    %p752 = pneg %p751
    // Predicated region
    $region121: #{t5_forward.7} parent=5 // pred_check
      _
    $region122: #{t5_forward.7} parent=5 // pred_check_branch
      %754 = sbr.rel (%p751) target = $region124
    $region123: #{t5_forward.7} parent=5 // pred_region
      %s755 = ssub.s32 %s32, 1
      %p756 = scmp.lt.s32.totalorder %s41, 1
      %s757 = scalar_select %p756, %s41, 1
      %s758 = smul.addr %s757, 8
      %s759 = scalar_lea.vmem %s0, %s758
      %p760 = pneg %p70
      %p761 = pneg %p67
      %p762 = scmp.lt.s32.totalorder %s41, 1
      %s763 = scalar_select %p762, %s41, 1
      %s764 = smul.addr %s763, 8
      %s765 = scalar_lea.vmem %s1, %s764
      %p766 = pneg %p96
      %p767 = pneg %p93
      %p768 = scmp.lt.s32.totalorder %s41, 1
      %s769 = scalar_select %p768, %s41, 1
      %s770 = scalar_lea.vmem %s2, %s769
      %p771 = pneg %p122
      %p772 = pneg %p119
      %p773 = scmp.lt.s32.totalorder %s41, 1
      %s774 = scalar_select %p773, %s41, 1
      %s775 = scalar_lea.vmem %s3, %s774
      %p776 = pneg %p148
      %p777 = pneg %p145
      %p778 = pneg %p169
      %p779 = pneg %p166
      %p780 = pneg %p190
      %p781 = pneg %p187
      %p782 = pneg %p211
      %p783 = pneg %p208
      %p784 = pneg %p232
      %p785 = pneg %p229
      %p786 = pneg %p253
      %p787 = pneg %p250
      %p788 = pneg %p274
      %p789 = pneg %p271
      %p790 = pneg %p295
      %p791 = pneg %p292
      %p792 = pneg %p316
      %p793 = pneg %p313
      %p794 = pneg %p337
      %p795 = pneg %p334
      %p796 = pneg %p358
      %p797 = pneg %p355
      %p798 = pneg %p379
      %p799 = pneg %p376
      %p800 = pneg %p400
      %p801 = pneg %p397
      %p802 = pneg %p421
      %p803 = pneg %p418
      %p804 = pneg %p442
      %p805 = pneg %p439
      %p806 = pneg %p463
      %p807 = pneg %p460
      %p808 = pneg %p484
      %p809 = pneg %p481
      %p810 = pneg %p505
      %p811 = pneg %p502
      %p812 = pneg %p526
      %p813 = pneg %p523
      %p814 = pneg %p547
      %p815 = pneg %p544
      %p816 = pneg %p568
      %p817 = pneg %p565
      %p818 = pneg %p589
      %p819 = pneg %p586
      %p820 = pneg %p610
      %p821 = pneg %p607
      %p822 = pneg %p638
      %p823 = pneg %p635
      %p824 = scmp.lt.s32.totalorder %s41, 1
      %s825 = scalar_select %p824, %s41, 1
      %p826 = scmp.lt.s32.totalorder %s42, 0
      %s827 = scalar_select %p826, %s42, 0
      %s828 = sadd.s32 %s827, %s825
      %s829 = smul.addr %s828, 8
      %s830 = scalar_lea.vmem %s26, %s829
      %p831 = scmp.lt.s32.totalorder %s41, 1
      %s832 = scalar_select %p831, %s41, 1
      %s833 = smul.addr %s832, 8
      %s834 = scalar_lea.vmem %s0, %s833
      %p835 = scmp.lt.s32.totalorder %s41, 1
      %s836 = scalar_select %p835, %s41, 1
      %s837 = smul.addr %s836, 8
      %s838 = scalar_lea.vmem %s1, %s837
      %p839 = scmp.lt.s32.totalorder %s41, 1
      %s840 = scalar_select %p839, %s41, 1
      %s841 = scalar_lea.vmem %s2, %s840
      %p842 = scmp.lt.s32.totalorder %s41, 1
      %s843 = scalar_select %p842, %s41, 1
      %s844 = scalar_lea.vmem %s3, %s843
      %p845 = scmp.lt.s32.totalorder %s41, 1
      %s846 = scalar_select %p845, %s41, 1
      %p847 = scmp.lt.s32.totalorder %s42, 0
      %s848 = scalar_select %p847, %s42, 0
      %s849 = sadd.s32 %s848, %s846
      %s850 = smul.addr %s849, 8
      %s851 = scalar_lea.vmem %s26, %s850
      %s853 = smul.u32 %s42, 8
      %v854 = vld [vmem:[%s834] sm:$0xff]
      %v855 = vpack.c.bf16 %v854, %v854
      %s856 = scalar_lea.vmem %s834, %s853
      %v857 = vld [vmem:[%s856] sm:$0xff]
      %v858 = vld [vmem:[%s838] sm:$0xff]
      %v859 = vpack.c.bf16 %v858, %v858
      %v860 = vld [vmem:[%s841] sm:$0x1]
      %v861 = vld [vmem:[%s844] sm:$0x1]
      %v862 = vld [vmem:[%s6] sm:$0xf]
      %v863 = vld [vmem:[%s6 + $0x4] sm:$0xf]
      %v864 = vld [vmem:[%s6 + $0x8] sm:$0xf]
      %v865 = vld [vmem:[%s6 + $0xc] sm:$0xf]
      %v866 = vld [vmem:[%s7] sm:$0x1]
      %v868 = vlaneseq
      %v869 = vshrl.u32 %v868, 7
      %v870 = vsub.s32 0, %v869
      %v871 = vrot.slane %v866, %v870
      %v877 = vunpack.c.l.b16 %v862
      %v878 = vunpack.c.l.b16 %v863
      %v879 = vunpack.c.l.b16 %v864
      %v880 = vunpack.c.l.b16 %v865
      %v881 = vpack.c.b16 %v878, %v877
      %v882 = vpack.c.b16 %v880, %v879
      %vm885 = vcmask 261120
      %v887 = vsel %vm885, %v855, 0
      %889 = vmatprep.subr.bf16.mxu0 0
      %890 = vmatpush1.bf16.msra.mxu0 %v881
      %891 = vmatprep.subr.bf16.mxu0 0
      %892 = vmatpush1.bf16.msra.mxu0 %v882
      %893 = vmatprep.subr.bf16.mxu0 0
      %894 = vmatpush1.bf16.msra.mxu0 0
      %895 = vmatprep.subr.bf16.mxu0 0
      %896 = vmatpush1.bf16.msra.mxu0 0
      %897 = vmatprep.subr.bf16.mxu0 0
      %898 = vmatpush1.bf16.msra.mxu0 0
      %899 = vmatprep.subr.bf16.mxu0 0
      %900 = vmatpush1.bf16.msra.mxu0 0
      %901 = vmatprep.subr.bf16.mxu0 0
      %902 = vmatpush1.bf16.msra.mxu0 0
      %903 = vmatprep.subr.bf16.mxu0 0
      %904 = vmatpush1.bf16.msra.mxu0 0
      %905 = vmatprep.subr.bf16.mxu0 0
      %906 = vmatpush1.bf16.msra.mxu0 0
      %907 = vmatprep.subr.bf16.mxu0 0
      %908 = vmatpush1.bf16.msra.mxu0 0
      %909 = vmatprep.subr.bf16.mxu0 0
      %910 = vmatpush1.bf16.msra.mxu0 0
      %911 = vmatprep.subr.bf16.mxu0 0
      %912 = vmatpush1.bf16.msra.mxu0 0
      %913 = vmatprep.subr.bf16.mxu0 0
      %914 = vmatpush1.bf16.msra.mxu0 0
      %915 = vmatprep.subr.bf16.mxu0 0
      %916 = vmatpush1.bf16.msra.mxu0 0
      %917 = vmatprep.subr.bf16.mxu0 0
      %918 = vmatpush1.bf16.msra.mxu0 0
      %919 = vmatprep.subr.bf16.mxu0 0
      %920 = vmatpush1.bf16.msra.mxu0 0
      %921 = vmatprep.mubr.bf16.mxu0 0
      %922 = vmatmul.mubr.bf16.gmra.mrb[0].mxu0 %v887
      %v923 = vpop.f32.mrb[0].mxu0
      %v924 = vadd.f32 %v871, %v923
      %v925 = vpop.f32.mrb[0].mxu0
      %v926 = vpop.f32.mrb[0].mxu0
      %v927 = vpop.f32.mrb[0].mxu0
      %928 = vdwg.mxu0
      %v929 = vpack.c.bf16 %v857, %v857
      %v930 = vld [vmem:[%s4] sm:$0xf]
      %v931 = vld [vmem:[%s4 + $0x4] sm:$0xf]
      %v932 = vld [vmem:[%s4 + $0x8] sm:$0xf]
      %v933 = vld [vmem:[%s4 + $0xc] sm:$0xf]
      %v934 = vld [vmem:[%s5] sm:$0x1]
      %v936 = vlaneseq
      %v937 = vshrl.u32 %v936, 7
      %v938 = vsub.s32 0, %v937
      %v939 = vrot.slane %v934, %v938
      %v945 = vunpack.c.l.b16 %v930
      %v946 = vunpack.c.l.b16 %v931
      %v947 = vunpack.c.l.b16 %v932
      %v948 = vunpack.c.l.b16 %v933
      %v949 = vpack.c.b16 %v946, %v945
      %v950 = vpack.c.b16 %v948, %v947
      %v954 = vsel %vm885, %v929, 0
      %956 = vmatprep.subr.bf16.mxu0 0
      %957 = vmatpush1.bf16.msra.mxu0 %v949
      %958 = vmatprep.subr.bf16.mxu0 0
      %959 = vmatpush1.bf16.msra.mxu0 %v950
      %960 = vmatprep.subr.bf16.mxu0 0
      %961 = vmatpush1.bf16.msra.mxu0 0
      %962 = vmatprep.subr.bf16.mxu0 0
      %963 = vmatpush1.bf16.msra.mxu0 0
      %964 = vmatprep.subr.bf16.mxu0 0
      %965 = vmatpush1.bf16.msra.mxu0 0
      %966 = vmatprep.subr.bf16.mxu0 0
      %967 = vmatpush1.bf16.msra.mxu0 0
      %968 = vmatprep.subr.bf16.mxu0 0
      %969 = vmatpush1.bf16.msra.mxu0 0
      %970 = vmatprep.subr.bf16.mxu0 0
      %971 = vmatpush1.bf16.msra.mxu0 0
      %972 = vmatprep.subr.bf16.mxu0 0
      %973 = vmatpush1.bf16.msra.mxu0 0
      %974 = vmatprep.subr.bf16.mxu0 0
      %975 = vmatpush1.bf16.msra.mxu0 0
      %976 = vmatprep.subr.bf16.mxu0 0
      %977 = vmatpush1.bf16.msra.mxu0 0
      %978 = vmatprep.subr.bf16.mxu0 0
      %979 = vmatpush1.bf16.msra.mxu0 0
      %980 = vmatprep.subr.bf16.mxu0 0
      %981 = vmatpush1.bf16.msra.mxu0 0
      %982 = vmatprep.subr.bf16.mxu0 0
      %983 = vmatpush1.bf16.msra.mxu0 0
      %984 = vmatprep.subr.bf16.mxu0 0
      %985 = vmatpush1.bf16.msra.mxu0 0
      %986 = vmatprep.subr.bf16.mxu0 0
      %987 = vmatpush1.bf16.msra.mxu0 0
      %988 = vmatprep.mubr.bf16.mxu0 0
      %989 = vmatmul.mubr.bf16.gmra.mrb[0].mxu0 %v954
      %v990 = vpop.f32.mrb[0].mxu0
      %v991 = vadd.f32 %v939, %v990
      %v992 = vpop.f32.mrb[0].mxu0
      %v993 = vpop.f32.mrb[0].mxu0
      %v994 = vpop.f32.mrb[0].mxu0
      %995 = vdwg.mxu0
      %996 = vxpose.xlu0.b32.start [1/16] %v924, 128
      %997 = vxpose.xlu0.b32.cont [2/16] 0.0, 128
      %998 = vxpose.xlu0.b32.cont [3/16] 0.0, 128
      %999 = vxpose.xlu0.b32.cont [4/16] 0.0, 128
      %1000 = vxpose.xlu0.b32.cont [5/16] 0.0, 128
      %1001 = vxpose.xlu0.b32.cont [6/16] 0.0, 128
      %1002 = vxpose.xlu0.b32.cont [7/16] 0.0, 128
      %1003 = vxpose.xlu0.b32.cont [8/16] 0.0, 128
      %1004 = vxpose.xlu0.b32.cont [9/16] 0.0, 128
      %1005 = vxpose.xlu0.b32.cont [10/16] 0.0, 128
      %1006 = vxpose.xlu0.b32.cont [11/16] 0.0, 128
      %1007 = vxpose.xlu0.b32.cont [12/16] 0.0, 128
      %1008 = vxpose.xlu0.b32.cont [13/16] 0.0, 128
      %1009 = vxpose.xlu0.b32.cont [14/16] 0.0, 128
      %1010 = vxpose.xlu0.b32.cont [15/16] 0.0, 128
      %1011 = vxpose.xlu0.b32.end [16/16] 0.0, 128
      %v1012 = vpop.trf.xlu0
      %v1013 = vpop.trf.xlu0
      %v1014 = vpop.trf.xlu0
      %v1015 = vpop.trf.xlu0
      %v1016 = vpop.trf.xlu0
      %v1017 = vpop.trf.xlu0
      %v1018 = vpop.trf.xlu0
      %v1019 = vpop.trf.xlu0
      %v1020 = vpop.trf.xlu0
      %v1021 = vpop.trf.xlu0
      %v1022 = vpop.trf.xlu0
      %v1023 = vpop.trf.xlu0
      %v1024 = vpop.trf.xlu0
      %v1025 = vpop.trf.xlu0
      %v1026 = vpop.trf.xlu0
      %v1027 = vpop.trf.xlu0
      %v1028 = vpack.c.bf16 %v1013, %v1012
      %v1029 = vpack.c.bf16 %v1015, %v1014
      %v1030 = vmul.f32 %v991, 0.35355338
      %v1031 = vpack.c.bf16 %v1030, %v1030
      %v1032 = vpack.c.bf16 %v924, %v924
      %v1034 = vlaneseq
      %v1035 = vshrl.u32 %v1034, 7
      %v1036 = vsub.s32 0, %v1035
      %v1037 = vrot.slane %v860, %v1036
      %vm1039 = vcmask 64512
      %v1041 = vsel %vm1039, %v1031, 0
      %vm1043 = vcmask 1043456
      %v1045 = vsel %vm1043, %v1028, 0
      %1047 = vmatprep.subr.bf16.mxu0 0
      %1048 = vmatpush1.bf16.msra.mxu0 %v1045
      %1049 = vmatprep.subr.bf16.mxu0 0
      %1050 = vmatpush1.bf16.msra.mxu0 0
      %1051 = vmatprep.subr.bf16.mxu0 0
      %1052 = vmatpush1.bf16.msra.mxu0 0
      %1053 = vmatprep.subr.bf16.mxu0 0
      %1054 = vmatpush1.bf16.msra.mxu0 0
      %1055 = vmatprep.subr.bf16.mxu0 0
      %1056 = vmatpush1.bf16.msra.mxu0 0
      %1057 = vmatprep.subr.bf16.mxu0 0
      %1058 = vmatpush1.bf16.msra.mxu0 0
      %1059 = vmatprep.subr.bf16.mxu0 0
      %1060 = vmatpush1.bf16.msra.mxu0 0
      %1061 = vmatprep.subr.bf16.mxu0 0
      %1062 = vmatpush1.bf16.msra.mxu0 0
      %1063 = vmatprep.subr.bf16.mxu0 0
      %1064 = vmatpush1.bf16.msra.mxu0 0
      %1065 = vmatprep.subr.bf16.mxu0 0
      %1066 = vmatpush1.bf16.msra.mxu0 0
      %1067 = vmatprep.subr.bf16.mxu0 0
      %1068 = vmatpush1.bf16.msra.mxu0 0
      %1069 = vmatprep.subr.bf16.mxu0 0
      %1070 = vmatpush1.bf16.msra.mxu0 0
      %1071 = vmatprep.subr.bf16.mxu0 0
      %1072 = vmatpush1.bf16.msra.mxu0 0
      %1073 = vmatprep.subr.bf16.mxu0 0
      %1074 = vmatpush1.bf16.msra.mxu0 0
      %1075 = vmatprep.subr.bf16.mxu0 0
      %1076 = vmatpush1.bf16.msra.mxu0 0
      %1077 = vmatprep.subr.bf16.mxu0 0
      %1078 = vmatpush1.bf16.msra.mxu0 0
      %1079 = vmatprep.mubr.bf16.mxu0 0
      %1080 = vmatmul.mubr.bf16.gmra.mrb[0].mxu0 %v1041
      %v1081 = vpop.f32.mrb[0].mxu0
      %v1082 = vadd.f32 %v1037, %v1081
      %v1083 = vpop.f32.mrb[0].mxu0
      %v1084 = vpop.f32.mrb[0].mxu0
      %v1085 = vpop.f32.mrb[0].mxu0
      %1086 = vdwg.mxu0
      %v1087 = vsel %vm1039, %v1082, -inf
      %1088 = vmax.xlane.f32.xlu0 %v1087
      %v1089 = vpop.xlane.xlu0 %1088
      %v1090 = vsub.f32 %v1082, %v1089
      %v1091 = vmul.f32 %v1090, 1.442695
      %v1092 = vpow.pop %v1091
      %v1093 = vsel %vm1039, %v1092, 0.0
      %1094 = vadd.xlane.f32.xlu0 %v1093
      %v1095 = vpop.xlane.xlu0 %1094
      %v1096 = vpack.c.bf16 %v1092, %v1092
      %1098 = vrot.lane.b32.xlu0 %v1032, 96
      %v1099 = vpop.permute.xlu0 %1098
      %v1101 = vsel %vm1039, %v1096, 0
      %v1104 = vsel %vm1043, %v1099, 0
      %1106 = vmatprep.subr.bf16.mxu0 0
      %1107 = vmatpush1.bf16.msra.mxu0 %v1104
      %1108 = vmatprep.subr.bf16.mxu0 0
      %1109 = vmatpush1.bf16.msra.mxu0 0
      %1110 = vmatprep.subr.bf16.mxu0 0
      %1111 = vmatpush1.bf16.msra.mxu0 0
      %1112 = vmatprep.subr.bf16.mxu0 0
      %1113 = vmatpush1.bf16.msra.mxu0 0
      %1114 = vmatprep.subr.bf16.mxu0 0
      %1115 = vmatpush1.bf16.msra.mxu0 0
      %1116 = vmatprep.subr.bf16.mxu0 0
      %1117 = vmatpush1.bf16.msra.mxu0 0
      %1118 = vmatprep.subr.bf16.mxu0 0
      %1119 = vmatpush1.bf16.msra.mxu0 0
      %1120 = vmatprep.subr.bf16.mxu0 0
      %1121 = vmatpush1.bf16.msra.mxu0 0
      %1122 = vmatprep.subr.bf16.mxu0 0
      %1123 = vmatpush1.bf16.msra.mxu0 0
      %1124 = vmatprep.subr.bf16.mxu0 0
      %1125 = vmatpush1.bf16.msra.mxu0 0
      %1126 = vmatprep.subr.bf16.mxu0 0
      %1127 = vmatpush1.bf16.msra.mxu0 0
      %1128 = vmatprep.subr.bf16.mxu0 0
      %1129 = vmatpush1.bf16.msra.mxu0 0
      %1130 = vmatprep.subr.bf16.mxu0 0
      %1131 = vmatpush1.bf16.msra.mxu0 0
      %1132 = vmatprep.subr.bf16.mxu0 0
      %1133 = vmatpush1.bf16.msra.mxu0 0
      %1134 = vmatprep.subr.bf16.mxu0 0
      %1135 = vmatpush1.bf16.msra.mxu0 0
      %1136 = vmatprep.subr.bf16.mxu0 0
      %1137 = vmatpush1.bf16.msra.mxu0 0
      %1138 = vmatprep.mubr.bf16.mxu0 0
      %1139 = vmatmul.mubr.bf16.gmra.mrb[0].mxu0 %v1101
      %v1140 = vpop.f32.mrb[0].mxu0
      %v1141 = vadd.f32 0.0, %v1140
      %v1142 = vpop.f32.mrb[0].mxu0
      %v1143 = vpop.f32.mrb[0].mxu0
      %v1144 = vpop.f32.mrb[0].mxu0
      %1145 = vdwg.mxu0
      %v1146 = vrcp.pop %v1095
      %v1147 = vmul.f32 %v1141, %v1146
      %1149 = vrot.lane.b32.xlu0 %v1031, 120
      %v1150 = vpop.permute.xlu0 %1149
      %v1152 = vrot.slane %v1028, 4
      %v1154 = vsel %vm1039, %v1150, 0
      %v1157 = vsel %vm1043, %v1152, 0
      %1159 = vmatprep.subr.bf16.mxu0 0
      %1160 = vmatpush1.bf16.msra.mxu0 %v1157
      %1161 = vmatprep.subr.bf16.mxu0 0
      %1162 = vmatpush1.bf16.msra.mxu0 0
      %1163 = vmatprep.subr.bf16.mxu0 0
      %1164 = vmatpush1.bf16.msra.mxu0 0
      %1165 = vmatprep.subr.bf16.mxu0 0
      %1166 = vmatpush1.bf16.msra.mxu0 0
      %1167 = vmatprep.subr.bf16.mxu0 0
      %1168 = vmatpush1.bf16.msra.mxu0 0
      %1169 = vmatprep.subr.bf16.mxu0 0
      %1170 = vmatpush1.bf16.msra.mxu0 0
      %1171 = vmatprep.subr.bf16.mxu0 0
      %1172 = vmatpush1.bf16.msra.mxu0 0
      %1173 = vmatprep.subr.bf16.mxu0 0
      %1174 = vmatpush1.bf16.msra.mxu0 0
      %1175 = vmatprep.subr.bf16.mxu0 0
      %1176 = vmatpush1.bf16.msra.mxu0 0
      %1177 = vmatprep.subr.bf16.mxu0 0
      %1178 = vmatpush1.bf16.msra.mxu0 0
      %1179 = vmatprep.subr.bf16.mxu0 0
      %1180 = vmatpush1.bf16.msra.mxu0 0
      %1181 = vmatprep.subr.bf16.mxu0 0
      %1182 = vmatpush1.bf16.msra.mxu0 0
      %1183 = vmatprep.subr.bf16.mxu0 0
      %1184 = vmatpush1.bf16.msra.mxu0 0
      %1185 = vmatprep.subr.bf16.mxu0 0
      %1186 = vmatpush1.bf16.msra.mxu0 0
      %1187 = vmatprep.subr.bf16.mxu0 0
      %1188 = vmatpush1.bf16.msra.mxu0 0
      %1189 = vmatprep.subr.bf16.mxu0 0
      %1190 = vmatpush1.bf16.msra.mxu0 0
      %1191 = vmatprep.mubr.bf16.mxu0 0
      %1192 = vmatmul.mubr.bf16.gmra.mrb[0].mxu0 %v1154
      %v1193 = vpop.f32.mrb[0].mxu0
      %v1194 = vadd.f32 %v1037, %v1193
      %v1195 = vpop.f32.mrb[0].mxu0
      %v1196 = vpop.f32.mrb[0].mxu0
      %v1197 = vpop.f32.mrb[0].mxu0
      %1198 = vdwg.mxu0
      %v1199 = vsel %vm1039, %v1194, -inf
      %1200 = vmax.xlane.f32.xlu0 %v1199
      %v1201 = vpop.xlane.xlu0 %1200
      %v1202 = vsub.f32 %v1194, %v1201
      %v1203 = vmul.f32 %v1202, 1.442695
      %v1204 = vpow.pop %v1203
      %v1205 = vsel %vm1039, %v1204, 0.0
      %1206 = vadd.xlane.f32.xlu0 %v1205
      %v1207 = vpop.xlane.xlu0 %1206
      %v1208 = vpack.c.bf16 %v1204, %v1204
      %1209 = vrot.lane.b32.xlu0 %v1032, 88
      %v1210 = vpop.permute.xlu0 %1209
      %v1212 = vsel %vm1039, %v1208, 0
      %v1215 = vsel %vm1043, %v1210, 0
      %1217 = vmatprep.subr.bf16.mxu0 0
      %1218 = vmatpush1.bf16.msra.mxu0 %v1215
      %1219 = vmatprep.subr.bf16.mxu0 0
      %1220 = vmatpush1.bf16.msra.mxu0 0
      %1221 = vmatprep.subr.bf16.mxu0 0
      %1222 = vmatpush1.bf16.msra.mxu0 0
      %1223 = vmatprep.subr.bf16.mxu0 0
      %1224 = vmatpush1.bf16.msra.mxu0 0
      %1225 = vmatprep.subr.bf16.mxu0 0
      %1226 = vmatpush1.bf16.msra.mxu0 0
      %1227 = vmatprep.subr.bf16.mxu0 0
      %1228 = vmatpush1.bf16.msra.mxu0 0
      %1229 = vmatprep.subr.bf16.mxu0 0
      %1230 = vmatpush1.bf16.msra.mxu0 0
      %1231 = vmatprep.subr.bf16.mxu0 0
      %1232 = vmatpush1.bf16.msra.mxu0 0
      %1233 = vmatprep.subr.bf16.mxu0 0
      %1234 = vmatpush1.bf16.msra.mxu0 0
      %1235 = vmatprep.subr.bf16.mxu0 0
      %1236 = vmatpush1.bf16.msra.mxu0 0
      %1237 = vmatprep.subr.bf16.mxu0 0
      %1238 = vmatpush1.bf16.msra.mxu0 0
      %1239 = vmatprep.subr.bf16.mxu0 0
      %1240 = vmatpush1.bf16.msra.mxu0 0
      %1241 = vmatprep.subr.bf16.mxu0 0
      %1242 = vmatpush1.bf16.msra.mxu0 0
      %1243 = vmatprep.subr.bf16.mxu0 0
      %1244 = vmatpush1.bf16.msra.mxu0 0
      %1245 = vmatprep.subr.bf16.mxu0 0
      %1246 = vmatpush1.bf16.msra.mxu0 0
      %1247 = vmatprep.subr.bf16.mxu0 0
      %1248 = vmatpush1.bf16.msra.mxu0 0
      %1249 = vmatprep.mubr.bf16.mxu0 0
      %1250 = vmatmul.mubr.bf16.gmra.mrb[0].mxu0 %v1212
      %v1251 = vpop.f32.mrb[0].mxu0
      %v1252 = vadd.f32 0.0, %v1251
      %v1253 = vpop.f32.mrb[0].mxu0
      %v1254 = vpop.f32.mrb[0].mxu0
      %v1255 = vpop.f32.mrb[0].mxu0
      %1256 = vdwg.mxu0
      %v1257 = vrcp.pop %v1207
      %v1258 = vmul.f32 %v1252, %v1257
      %1259 = vrot.lane.b32.xlu0 %v1031, 112
      %v1260 = vpop.permute.xlu0 %1259
      %v1262 = vsel %vm1039, %v1260, 0
      %v1265 = vsel %vm1043, %v1029, 0
      %1267 = vmatprep.subr.bf16.mxu0 0
      %1268 = vmatpush1.bf16.msra.mxu0 %v1265
      %1269 = vmatprep.subr.bf16.mxu0 0
      %1270 = vmatpush1.bf16.msra.mxu0 0
      %1271 = vmatprep.subr.bf16.mxu0 0
      %1272 = vmatpush1.bf16.msra.mxu0 0
      %1273 = vmatprep.subr.bf16.mxu0 0
      %1274 = vmatpush1.bf16.msra.mxu0 0
      %1275 = vmatprep.subr.bf16.mxu0 0
      %1276 = vmatpush1.bf16.msra.mxu0 0
      %1277 = vmatprep.subr.bf16.mxu0 0
      %1278 = vmatpush1.bf16.msra.mxu0 0
      %1279 = vmatprep.subr.bf16.mxu0 0
      %1280 = vmatpush1.bf16.msra.mxu0 0
      %1281 = vmatprep.subr.bf16.mxu0 0
      %1282 = vmatpush1.bf16.msra.mxu0 0
      %1283 = vmatprep.subr.bf16.mxu0 0
      %1284 = vmatpush1.bf16.msra.mxu0 0
      %1285 = vmatprep.subr.bf16.mxu0 0
      %1286 = vmatpush1.bf16.msra.mxu0 0
      %1287 = vmatprep.subr.bf16.mxu0 0
      %1288 = vmatpush1.bf16.msra.mxu0 0
      %1289 = vmatprep.subr.bf16.mxu0 0
      %1290 = vmatpush1.bf16.msra.mxu0 0
      %1291 = vmatprep.subr.bf16.mxu0 0
      %1292 = vmatpush1.bf16.msra.mxu0 0
      %1293 = vmatprep.subr.bf16.mxu0 0
      %1294 = vmatpush1.bf16.msra.mxu0 0
      %1295 = vmatprep.subr.bf16.mxu0 0
      %1296 = vmatpush1.bf16.msra.mxu0 0
      %1297 = vmatprep.subr.bf16.mxu0 0
      %1298 = vmatpush1.bf16.msra.mxu0 0
      %1299 = vmatprep.mubr.bf16.mxu0 0
      %1300 = vmatmul.mubr.bf16.gmra.mrb[0].mxu0 %v1262
      %v1301 = vpop.f32.mrb[0].mxu0
      %v1302 = vadd.f32 %v1037, %v1301
      %v1303 = vpop.f32.mrb[0].mxu0
      %v1304 = vpop.f32.mrb[0].mxu0
      %v1305 = vpop.f32.mrb[0].mxu0
      %1306 = vdwg.mxu0
      %v1307 = vsel %vm1039, %v1302, -inf
      %1308 = vmax.xlane.f32.xlu0 %v1307
      %v1309 = vpop.xlane.xlu0 %1308
      %v1310 = vsub.f32 %v1302, %v1309
      %v1311 = vmul.f32 %v1310, 1.442695
      %v1312 = vpow.pop %v1311
      %v1313 = vsel %vm1039, %v1312, 0.0
      %1314 = vadd.xlane.f32.xlu0 %v1313
      %v1315 = vpop.xlane.xlu0 %1314
      %v1316 = vpack.c.bf16 %v1312, %v1312
      %1317 = vrot.lane.b32.xlu0 %v1032, 80
      %v1318 = vpop.permute.xlu0 %1317
      %v1320 = vsel %vm1039, %v1316, 0
      %v1323 = vsel %vm1043, %v1318, 0
      %1325 = vmatprep.subr.bf16.mxu0 0
      %1326 = vmatpush1.bf16.msra.mxu0 %v1323
      %1327 = vmatprep.subr.bf16.mxu0 0
      %1328 = vmatpush1.bf16.msra.mxu0 0
      %1329 = vmatprep.subr.bf16.mxu0 0
      %1330 = vmatpush1.bf16.msra.mxu0 0
      %1331 = vmatprep.subr.bf16.mxu0 0
      %1332 = vmatpush1.bf16.msra.mxu0 0
      %1333 = vmatprep.subr.bf16.mxu0 0
      %1334 = vmatpush1.bf16.msra.mxu0 0
      %1335 = vmatprep.subr.bf16.mxu0 0
      %1336 = vmatpush1.bf16.msra.mxu0 0
      %1337 = vmatprep.subr.bf16.mxu0 0
      %1338 = vmatpush1.bf16.msra.mxu0 0
      %1339 = vmatprep.subr.bf16.mxu0 0
      %1340 = vmatpush1.bf16.msra.mxu0 0
      %1341 = vmatprep.subr.bf16.mxu0 0
      %1342 = vmatpush1.bf16.msra.mxu0 0
      %1343 = vmatprep.subr.bf16.mxu0 0
      %1344 = vmatpush1.bf16.msra.mxu0 0
      %1345 = vmatprep.subr.bf16.mxu0 0
      %1346 = vmatpush1.bf16.msra.mxu0 0
      %1347 = vmatprep.subr.bf16.mxu0 0
      %1348 = vmatpush1.bf16.msra.mxu0 0
      %1349 = vmatprep.subr.bf16.mxu0 0
      %1350 = vmatpush1.bf16.msra.mxu0 0
      %1351 = vmatprep.subr.bf16.mxu0 0
      %1352 = vmatpush1.bf16.msra.mxu0 0
      %1353 = vmatprep.subr.bf16.mxu0 0
      %1354 = vmatpush1.bf16.msra.mxu0 0
      %1355 = vmatprep.subr.bf16.mxu0 0
      %1356 = vmatpush1.bf16.msra.mxu0 0
      %1357 = vmatprep.mubr.bf16.mxu0 0
      %1358 = vmatmul.mubr.bf16.gmra.mrb[0].mxu0 %v1320
      %v1359 = vpop.f32.mrb[0].mxu0
      %v1360 = vadd.f32 0.0, %v1359
      %v1361 = vpop.f32.mrb[0].mxu0
      %v1362 = vpop.f32.mrb[0].mxu0
      %v1363 = vpop.f32.mrb[0].mxu0
      %1364 = vdwg.mxu0
      %v1365 = vrcp.pop %v1315
      %v1366 = vmul.f32 %v1360, %v1365
      %1367 = vrot.lane.b32.xlu0 %v1031, 104
      %v1368 = vpop.permute.xlu0 %1367
      %v1370 = vrot.slane %v1029, 4
      %v1372 = vsel %vm1039, %v1368, 0
      %v1375 = vsel %vm1043, %v1370, 0
      %1377 = vmatprep.subr.bf16.mxu0 0
      %1378 = vmatpush1.bf16.msra.mxu0 %v1375
      %1379 = vmatprep.subr.bf16.mxu0 0
      %1380 = vmatpush1.bf16.msra.mxu0 0
      %1381 = vmatprep.subr.bf16.mxu0 0
      %1382 = vmatpush1.bf16.msra.mxu0 0
      %1383 = vmatprep.subr.bf16.mxu0 0
      %1384 = vmatpush1.bf16.msra.mxu0 0
      %1385 = vmatprep.subr.bf16.mxu0 0
      %1386 = vmatpush1.bf16.msra.mxu0 0
      %1387 = vmatprep.subr.bf16.mxu0 0
      %1388 = vmatpush1.bf16.msra.mxu0 0
      %1389 = vmatprep.subr.bf16.mxu0 0
      %1390 = vmatpush1.bf16.msra.mxu0 0
      %1391 = vmatprep.subr.bf16.mxu0 0
      %1392 = vmatpush1.bf16.msra.mxu0 0
      %1393 = vmatprep.subr.bf16.mxu0 0
      %1394 = vmatpush1.bf16.msra.mxu0 0
      %1395 = vmatprep.subr.bf16.mxu0 0
      %1396 = vmatpush1.bf16.msra.mxu0 0
      %1397 = vmatprep.subr.bf16.mxu0 0
      %1398 = vmatpush1.bf16.msra.mxu0 0
      %1399 = vmatprep.subr.bf16.mxu0 0
      %1400 = vmatpush1.bf16.msra.mxu0 0
      %1401 = vmatprep.subr.bf16.mxu0 0
      %1402 = vmatpush1.bf16.msra.mxu0 0
      %1403 = vmatprep.subr.bf16.mxu0 0
      %1404 = vmatpush1.bf16.msra.mxu0 0
      %1405 = vmatprep.subr.bf16.mxu0 0
      %1406 = vmatpush1.bf16.msra.mxu0 0
      %1407 = vmatprep.subr.bf16.mxu0 0
      %1408 = vmatpush1.bf16.msra.mxu0 0
      %1409 = vmatprep.mubr.bf16.mxu0 0
      %1410 = vmatmul.mubr.bf16.gmra.mrb[0].mxu0 %v1372
      %v1411 = vpop.f32.mrb[0].mxu0
      %v1412 = vadd.f32 %v1037, %v1411
      %v1413 = vpop.f32.mrb[0].mxu0
      %v1414 = vpop.f32.mrb[0].mxu0
      %v1415 = vpop.f32.mrb[0].mxu0
      %1416 = vdwg.mxu0
      %v1417 = vsel %vm1039, %v1412, -inf
      %1418 = vmax.xlane.f32.xlu0 %v1417
      %v1419 = vpop.xlane.xlu0 %1418
      %v1420 = vsub.f32 %v1412, %v1419
      %v1421 = vmul.f32 %v1420, 1.442695
      %v1422 = vpow.pop %v1421
      %v1423 = vsel %vm1039, %v1422, 0.0
      %1424 = vadd.xlane.f32.xlu0 %v1423
      %v1425 = vpop.xlane.xlu0 %1424
      %v1426 = vpack.c.bf16 %v1422, %v1422
      %1427 = vrot.lane.b32.xlu0 %v1032, 72
      %v1428 = vpop.permute.xlu0 %1427
      %v1430 = vsel %vm1039, %v1426, 0
      %v1433 = vsel %vm1043, %v1428, 0
      %1435 = vmatprep.subr.bf16.mxu0 0
      %1436 = vmatpush1.bf16.msra.mxu0 %v1433
      %1437 = vmatprep.subr.bf16.mxu0 0
      %1438 = vmatpush1.bf16.msra.mxu0 0
      %1439 = vmatprep.subr.bf16.mxu0 0
      %1440 = vmatpush1.bf16.msra.mxu0 0
      %1441 = vmatprep.subr.bf16.mxu0 0
      %1442 = vmatpush1.bf16.msra.mxu0 0
      %1443 = vmatprep.subr.bf16.mxu0 0
      %1444 = vmatpush1.bf16.msra.mxu0 0
      %1445 = vmatprep.subr.bf16.mxu0 0
      %1446 = vmatpush1.bf16.msra.mxu0 0
      %1447 = vmatprep.subr.bf16.mxu0 0
      %1448 = vmatpush1.bf16.msra.mxu0 0
      %1449 = vmatprep.subr.bf16.mxu0 0
      %1450 = vmatpush1.bf16.msra.mxu0 0
      %1451 = vmatprep.subr.bf16.mxu0 0
      %1452 = vmatpush1.bf16.msra.mxu0 0
      %1453 = vmatprep.subr.bf16.mxu0 0
      %1454 = vmatpush1.bf16.msra.mxu0 0
      %1455 = vmatprep.subr.bf16.mxu0 0
      %1456 = vmatpush1.bf16.msra.mxu0 0
      %1457 = vmatprep.subr.bf16.mxu0 0
      %1458 = vmatpush1.bf16.msra.mxu0 0
      %1459 = vmatprep.subr.bf16.mxu0 0
      %1460 = vmatpush1.bf16.msra.mxu0 0
      %1461 = vmatprep.subr.bf16.mxu0 0
      %1462 = vmatpush1.bf16.msra.mxu0 0
      %1463 = vmatprep.subr.bf16.mxu0 0
      %1464 = vmatpush1.bf16.msra.mxu0 0
      %1465 = vmatprep.subr.bf16.mxu0 0
      %1466 = vmatpush1.bf16.msra.mxu0 0
      %1467 = vmatprep.mubr.bf16.mxu0 0
      %1468 = vmatmul.mubr.bf16.gmra.mrb[0].mxu0 %v1430
      %v1469 = vpop.f32.mrb[0].mxu0
      %v1470 = vadd.f32 0.0, %v1469
      %v1471 = vpop.f32.mrb[0].mxu0
      %v1472 = vpop.f32.mrb[0].mxu0
      %v1473 = vpop.f32.mrb[0].mxu0
      %1474 = vdwg.mxu0
      %v1475 = vrcp.pop %v1425
      %v1476 = vmul.f32 %v1470, %v1475
      %1478 = vrot.lane.b32.xlu0 %v1258, 8
      %v1479 = vpop.permute.xlu0 %1478
      %1482 = vrot.lane.b32.xlu0 %v1366, 16
      %v1483 = vpop.permute.xlu0 %1482
      %1486 = vrot.lane.b32.xlu0 %v1476, 24
      %v1487 = vpop.permute.xlu0 %1486
      %v1489 = vsel %vm1039, %v1147, %v1479
      %vm1490 = vcmask 130048
      %v1491 = vsel %vm1490, %v1489, %v1483
      %vm1492 = vcmask 195584
      %v1493 = vsel %vm1492, %v1491, %v1487
      %v1494 = vpack.c.bf16 %v1493, %v1493
      %v1495 = vld [vmem:[%s8] sm:$0xf]
      %v1496 = vld [vmem:[%s8 + $0x4] sm:$0xf]
      %v1497 = vld [vmem:[%s8 + $0x8] sm:$0xf]
      %v1498 = vld [vmem:[%s8 + $0xc] sm:$0xf]
      %v1499 = vld [vmem:[%s9] sm:$0x1]
      %v1501 = vlaneseq
      %v1502 = vshrl.u32 %v1501, 7
      %v1503 = vsub.s32 0, %v1502
      %v1504 = vrot.slane %v1499, %v1503
      %v1510 = vunpack.c.l.b16 %v1495
      %v1511 = vunpack.c.l.b16 %v1496
      %v1512 = vunpack.c.l.b16 %v1497
      %v1513 = vunpack.c.l.b16 %v1498
      %v1514 = vpack.c.b16 %v1511, %v1510
      %v1515 = vpack.c.b16 %v1513, %v1512
      %v1519 = vsel %vm885, %v1494, 0
      %1521 = vmatprep.subr.bf16.mxu0 0
      %1522 = vmatpush1.bf16.msra.mxu0 %v1514
      %1523 = vmatprep.subr.bf16.mxu0 0
      %1524 = vmatpush1.bf16.msra.mxu0 %v1515
      %1525 = vmatprep.subr.bf16.mxu0 0
      %1526 = vmatpush1.bf16.msra.mxu0 0
      %1527 = vmatprep.subr.bf16.mxu0 0
      %1528 = vmatpush1.bf16.msra.mxu0 0
      %1529 = vmatprep.subr.bf16.mxu0 0
      %1530 = vmatpush1.bf16.msra.mxu0 0
      %1531 = vmatprep.subr.bf16.mxu0 0
      %1532 = vmatpush1.bf16.msra.mxu0 0
      %1533 = vmatprep.subr.bf16.mxu0 0
      %1534 = vmatpush1.bf16.msra.mxu0 0
      %1535 = vmatprep.subr.bf16.mxu0 0
      %1536 = vmatpush1.bf16.msra.mxu0 0
      %1537 = vmatprep.subr.bf16.mxu0 0
      %1538 = vmatpush1.bf16.msra.mxu0 0
      %1539 = vmatprep.subr.bf16.mxu0 0
      %1540 = vmatpush1.bf16.msra.mxu0 0
      %1541 = vmatprep.subr.bf16.mxu0 0
      %1542 = vmatpush1.bf16.msra.mxu0 0
      %1543 = vmatprep.subr.bf16.mxu0 0
      %1544 = vmatpush1.bf16.msra.mxu0 0
      %1545 = vmatprep.subr.bf16.mxu0 0
      %1546 = vmatpush1.bf16.msra.mxu0 0
      %1547 = vmatprep.subr.bf16.mxu0 0
      %1548 = vmatpush1.bf16.msra.mxu0 0
      %1549 = vmatprep.subr.bf16.mxu0 0
      %1550 = vmatpush1.bf16.msra.mxu0 0
      %1551 = vmatprep.subr.bf16.mxu0 0
      %1552 = vmatpush1.bf16.msra.mxu0 0
      %1553 = vmatprep.mubr.bf16.mxu0 0
      %1554 = vmatmul.mubr.bf16.gmra.mrb[0].mxu0 %v1519
      %v1555 = vpop.f32.mrb[0].mxu0
      %v1556 = vadd.f32 %v1504, %v1555
      %v1557 = vpop.f32.mrb[0].mxu0
      %v1558 = vpop.f32.mrb[0].mxu0
      %v1559 = vpop.f32.mrb[0].mxu0
      %1560 = vdwg.mxu0
      %v1561 = vadd.f32 %v857, %v1556
      %v1562 = vld [vmem:[%s10] sm:$0x1]
      %v1563 = vld [vmem:[%s11] sm:$0x1]
      %v1564 = vsel %vm885, %v1561, 0.0
      %1565 = vadd.xlane.f32.xlu0 %v1564
      %v1566 = vpop.xlane.xlu0 %1565
      %v1567 = vrcp.pop 32.0
      %v1568 = vmul.f32 %v1566, %v1567
      %v1569 = vsub.f32 %v1561, %v1568
      %v1570 = vmul.f32 %v1569, %v1569
      %v1571 = vsel %vm885, %v1570, 0.0
      %1572 = vadd.xlane.f32.xlu0 %v1571
      %v1573 = vpop.xlane.xlu0 %1572
      %v1574 = vmul.f32 %v1573, %v1567
      %v1575 = vadd.f32 %v1574, 1e-05
      %v1576 = vrsqrt.pop %v1575
      %v1577 = vmul.f32 %v1569, %v1576
      %v1579 = vlaneseq
      %v1580 = vshrl.u32 %v1579, 7
      %v1581 = vsub.s32 0, %v1580
      %v1582 = vrot.slane %v1562, %v1581
      %v1584 = vmul.f32 %v1577, %v1582
      %v1586 = vlaneseq
      %v1587 = vshrl.u32 %v1586, 7
      %v1588 = vsub.s32 0, %v1587
      %v1589 = vrot.slane %v1563, %v1588
      %v1591 = vadd.f32 %v1584, %v1589
      %v1592 = vld [vmem:[%s14] sm:$0xf]
      %v1593 = vld [vmem:[%s14 + $0x4] sm:$0xf]
      %v1594 = vld [vmem:[%s14 + $0x8] sm:$0xf]
      %v1595 = vld [vmem:[%s14 + $0xc] sm:$0xf]
      %v1596 = vld [vmem:[%s15] sm:$0x1]
      %v1598 = vlaneseq
      %v1599 = vshrl.u32 %v1598, 7
      %v1600 = vsub.s32 0, %v1599
      %v1601 = vrot.slane %v1596, %v1600
      %v1607 = vunpack.c.l.b16 %v1592
      %v1608 = vunpack.c.l.b16 %v1593
      %v1609 = vunpack.c.l.b16 %v1594
      %v1610 = vunpack.c.l.b16 %v1595
      %v1611 = vpack.c.b16 %v1608, %v1607
      %v1612 = vpack.c.b16 %v1610, %v1609
      %v1616 = vsel %vm885, %v859, 0
      %1618 = vmatprep.subr.bf16.mxu0 0
      %1619 = vmatpush1.bf16.msra.mxu0 %v1611
      %1620 = vmatprep.subr.bf16.mxu0 0
      %1621 = vmatpush1.bf16.msra.mxu0 %v1612
      %1622 = vmatprep.subr.bf16.mxu0 0
      %1623 = vmatpush1.bf16.msra.mxu0 0
      %1624 = vmatprep.subr.bf16.mxu0 0
      %1625 = vmatpush1.bf16.msra.mxu0 0
      %1626 = vmatprep.subr.bf16.mxu0 0
      %1627 = vmatpush1.bf16.msra.mxu0 0
      %1628 = vmatprep.subr.bf16.mxu0 0
      %1629 = vmatpush1.bf16.msra.mxu0 0
      %1630 = vmatprep.subr.bf16.mxu0 0
      %1631 = vmatpush1.bf16.msra.mxu0 0
      %1632 = vmatprep.subr.bf16.mxu0 0
      %1633 = vmatpush1.bf16.msra.mxu0 0
      %1634 = vmatprep.subr.bf16.mxu0 0
      %1635 = vmatpush1.bf16.msra.mxu0 0
      %1636 = vmatprep.subr.bf16.mxu0 0
      %1637 = vmatpush1.bf16.msra.mxu0 0
      %1638 = vmatprep.subr.bf16.mxu0 0
      %1639 = vmatpush1.bf16.msra.mxu0 0
      %1640 = vmatprep.subr.bf16.mxu0 0
      %1641 = vmatpush1.bf16.msra.mxu0 0
      %1642 = vmatprep.subr.bf16.mxu0 0
      %1643 = vmatpush1.bf16.msra.mxu0 0
      %1644 = vmatprep.subr.bf16.mxu0 0
      %1645 = vmatpush1.bf16.msra.mxu0 0
      %1646 = vmatprep.subr.bf16.mxu0 0
      %1647 = vmatpush1.bf16.msra.mxu0 0
      %1648 = vmatprep.subr.bf16.mxu0 0
      %1649 = vmatpush1.bf16.msra.mxu0 0
      %1650 = vmatprep.mubr.bf16.mxu0 0
      %1651 = vmatmul.mubr.bf16.gmra.mrb[0].mxu0 %v1616
      %v1652 = vpop.f32.mrb[0].mxu0
      %v1653 = vadd.f32 %v1601, %v1652
      %v1654 = vpop.f32.mrb[0].mxu0
      %v1655 = vpop.f32.mrb[0].mxu0
      %v1656 = vpop.f32.mrb[0].mxu0
      %1657 = vdwg.mxu0
      %v1658 = vpack.c.bf16 %v1591, %v1591
      %v1659 = vld [vmem:[%s12] sm:$0xf]
      %v1660 = vld [vmem:[%s12 + $0x4] sm:$0xf]
      %v1661 = vld [vmem:[%s12 + $0x8] sm:$0xf]
      %v1662 = vld [vmem:[%s12 + $0xc] sm:$0xf]
      %v1663 = vld [vmem:[%s13] sm:$0x1]
      %v1665 = vlaneseq
      %v1666 = vshrl.u32 %v1665, 7
      %v1667 = vsub.s32 0, %v1666
      %v1668 = vrot.slane %v1663, %v1667
      %v1674 = vunpack.c.l.b16 %v1659
      %v1675 = vunpack.c.l.b16 %v1660
      %v1676 = vunpack.c.l.b16 %v1661
      %v1677 = vunpack.c.l.b16 %v1662
      %v1678 = vpack.c.b16 %v1675, %v1674
      %v1679 = vpack.c.b16 %v1677, %v1676
      %v1683 = vsel %vm885, %v1658, 0
      %1685 = vmatprep.subr.bf16.mxu0 0
      %1686 = vmatpush1.bf16.msra.mxu0 %v1678
      %1687 = vmatprep.subr.bf16.mxu0 0
      %1688 = vmatpush1.bf16.msra.mxu0 %v1679
      %1689 = vmatprep.subr.bf16.mxu0 0
      %1690 = vmatpush1.bf16.msra.mxu0 0
      %1691 = vmatprep.subr.bf16.mxu0 0
      %1692 = vmatpush1.bf16.msra.mxu0 0
      %1693 = vmatprep.subr.bf16.mxu0 0
      %1694 = vmatpush1.bf16.msra.mxu0 0
      %1695 = vmatprep.subr.bf16.mxu0 0
      %1696 = vmatpush1.bf16.msra.mxu0 0
      %1697 = vmatprep.subr.bf16.mxu0 0
      %1698 = vmatpush1.bf16.msra.mxu0 0
      %1699 = vmatprep.subr.bf16.mxu0 0
      %1700 = vmatpush1.bf16.msra.mxu0 0
      %1701 = vmatprep.subr.bf16.mxu0 0
      %1702 = vmatpush1.bf16.msra.mxu0 0
      %1703 = vmatprep.subr.bf16.mxu0 0
      %1704 = vmatpush1.bf16.msra.mxu0 0
      %1705 = vmatprep.subr.bf16.mxu0 0
      %1706 = vmatpush1.bf16.msra.mxu0 0
      %1707 = vmatprep.subr.bf16.mxu0 0
      %1708 = vmatpush1.bf16.msra.mxu0 0
      %1709 = vmatprep.subr.bf16.mxu0 0
      %1710 = vmatpush1.bf16.msra.mxu0 0
      %1711 = vmatprep.subr.bf16.mxu0 0
      %1712 = vmatpush1.bf16.msra.mxu0 0
      %1713 = vmatprep.subr.bf16.mxu0 0
      %1714 = vmatpush1.bf16.msra.mxu0 0
      %1715 = vmatprep.subr.bf16.mxu0 0
      %1716 = vmatpush1.bf16.msra.mxu0 0
      %1717 = vmatprep.mubr.bf16.mxu0 0
      %1718 = vmatmul.mubr.bf16.gmra.mrb[0].mxu0 %v1683
      %v1719 = vpop.f32.mrb[0].mxu0
      %v1720 = vadd.f32 %v1668, %v1719
      %v1721 = vpop.f32.mrb[0].mxu0
      %v1722 = vpop.f32.mrb[0].mxu0
      %v1723 = vpop.f32.mrb[0].mxu0
      %1724 = vdwg.mxu0
      %1725 = vxpose.xlu0.b32.start [1/16] %v1653, 128
      %1726 = vxpose.xlu0.b32.cont [2/16] 0.0, 128
      %1727 = vxpose.xlu0.b32.cont [3/16] 0.0, 128
      %1728 = vxpose.xlu0.b32.cont [4/16] 0.0, 128
      %1729 = vxpose.xlu0.b32.cont [5/16] 0.0, 128
      %1730 = vxpose.xlu0.b32.cont [6/16] 0.0, 128
      %1731 = vxpose.xlu0.b32.cont [7/16] 0.0, 128
      %1732 = vxpose.xlu0.b32.cont [8/16] 0.0, 128
      %1733 = vxpose.xlu0.b32.cont [9/16] 0.0, 128
      %1734 = vxpose.xlu0.b32.cont [10/16] 0.0, 128
      %1735 = vxpose.xlu0.b32.cont [11/16] 0.0, 128
      %1736 = vxpose.xlu0.b32.cont [12/16] 0.0, 128
      %1737 = vxpose.xlu0.b32.cont [13/16] 0.0, 128
      %1738 = vxpose.xlu0.b32.cont [14/16] 0.0, 128
      %1739 = vxpose.xlu0.b32.cont [15/16] 0.0, 128
      %1740 = vxpose.xlu0.b32.end [16/16] 0.0, 128
      %v1741 = vpop.trf.xlu0
      %v1742 = vpop.trf.xlu0
      %v1743 = vpop.trf.xlu0
      %v1744 = vpop.trf.xlu0
      %v1745 = vpop.trf.xlu0
      %v1746 = vpop.trf.xlu0
      %v1747 = vpop.trf.xlu0
      %v1748 = vpop.trf.xlu0
      %v1749 = vpop.trf.xlu0
      %v1750 = vpop.trf.xlu0
      %v1751 = vpop.trf.xlu0
      %v1752 = vpop.trf.xlu0
      %v1753 = vpop.trf.xlu0
      %v1754 = vpop.trf.xlu0
      %v1755 = vpop.trf.xlu0
      %v1756 = vpop.trf.xlu0
      %v1757 = vpack.c.bf16 %v1742, %v1741
      %v1758 = vpack.c.bf16 %v1744, %v1743
      %v1759 = vmul.f32 %v1720, 0.35355338
      %v1760 = vpack.c.bf16 %v1759, %v1759
      %v1761 = vpack.c.bf16 %v1653, %v1653
      %v1763 = vlaneseq
      %v1764 = vshrl.u32 %v1763, 7
      %v1765 = vsub.s32 0, %v1764
      %v1766 = vrot.slane %v861, %v1765
      %v1769 = vsel %vm1039, %v1760, 0
      %v1772 = vsel %vm1043, %v1757, 0
      %1774 = vmatprep.subr.bf16.mxu0 0
      %1775 = vmatpush1.bf16.msra.mxu0 %v1772
      %1776 = vmatprep.subr.bf16.mxu0 0
      %1777 = vmatpush1.bf16.msra.mxu0 0
      %1778 = vmatprep.subr.bf16.mxu0 0
      %1779 = vmatpush1.bf16.msra.mxu0 0
      %1780 = vmatprep.subr.bf16.mxu0 0
      %1781 = vmatpush1.bf16.msra.mxu0 0
      %1782 = vmatprep.subr.bf16.mxu0 0
      %1783 = vmatpush1.bf16.msra.mxu0 0
      %1784 = vmatprep.subr.bf16.mxu0 0
      %1785 = vmatpush1.bf16.msra.mxu0 0
      %1786 = vmatprep.subr.bf16.mxu0 0
      %1787 = vmatpush1.bf16.msra.mxu0 0
      %1788 = vmatprep.subr.bf16.mxu0 0
      %1789 = vmatpush1.bf16.msra.mxu0 0
      %1790 = vmatprep.subr.bf16.mxu0 0
      %1791 = vmatpush1.bf16.msra.mxu0 0
      %1792 = vmatprep.subr.bf16.mxu0 0
      %1793 = vmatpush1.bf16.msra.mxu0 0
      %1794 = vmatprep.subr.bf16.mxu0 0
      %1795 = vmatpush1.bf16.msra.mxu0 0
      %1796 = vmatprep.subr.bf16.mxu0 0
      %1797 = vmatpush1.bf16.msra.mxu0 0
      %1798 = vmatprep.subr.bf16.mxu0 0
      %1799 = vmatpush1.bf16.msra.mxu0 0
      %1800 = vmatprep.subr.bf16.mxu0 0
      %1801 = vmatpush1.bf16.msra.mxu0 0
      %1802 = vmatprep.subr.bf16.mxu0 0
      %1803 = vmatpush1.bf16.msra.mxu0 0
      %1804 = vmatprep.subr.bf16.mxu0 0
      %1805 = vmatpush1.bf16.msra.mxu0 0
      %1806 = vmatprep.mubr.bf16.mxu0 0
      %1807 = vmatmul.mubr.bf16.gmra.mrb[0].mxu0 %v1769
      %v1808 = vpop.f32.mrb[0].mxu0
      %v1809 = vadd.f32 %v1766, %v1808
      %v1810 = vpop.f32.mrb[0].mxu0
      %v1811 = vpop.f32.mrb[0].mxu0
      %v1812 = vpop.f32.mrb[0].mxu0
      %1813 = vdwg.mxu0
      %v1814 = vsel %vm1039, %v1809, -inf
      %1815 = vmax.xlane.f32.xlu0 %v1814
      %v1816 = vpop.xlane.xlu0 %1815
      %v1817 = vsub.f32 %v1809, %v1816
      %v1818 = vmul.f32 %v1817, 1.442695
      %v1819 = vpow.pop %v1818
      %v1820 = vsel %vm1039, %v1819, 0.0
      %1821 = vadd.xlane.f32.xlu0 %v1820
      %v1822 = vpop.xlane.xlu0 %1821
      %v1823 = vpack.c.bf16 %v1819, %v1819
      %1825 = vrot.lane.b32.xlu0 %v1761, 96
      %v1826 = vpop.permute.xlu0 %1825
      %v1828 = vsel %vm1039, %v1823, 0
      %v1831 = vsel %vm1043, %v1826, 0
      %1833 = vmatprep.subr.bf16.mxu0 0
      %1834 = vmatpush1.bf16.msra.mxu0 %v1831
      %1835 = vmatprep.subr.bf16.mxu0 0
      %1836 = vmatpush1.bf16.msra.mxu0 0
      %1837 = vmatprep.subr.bf16.mxu0 0
      %1838 = vmatpush1.bf16.msra.mxu0 0
      %1839 = vmatprep.subr.bf16.mxu0 0
      %1840 = vmatpush1.bf16.msra.mxu0 0
      %1841 = vmatprep.subr.bf16.mxu0 0
      %1842 = vmatpush1.bf16.msra.mxu0 0
      %1843 = vmatprep.subr.bf16.mxu0 0
      %1844 = vmatpush1.bf16.msra.mxu0 0
      %1845 = vmatprep.subr.bf16.mxu0 0
      %1846 = vmatpush1.bf16.msra.mxu0 0
      %1847 = vmatprep.subr.bf16.mxu0 0
      %1848 = vmatpush1.bf16.msra.mxu0 0
      %1849 = vmatprep.subr.bf16.mxu0 0
      %1850 = vmatpush1.bf16.msra.mxu0 0
      %1851 = vmatprep.subr.bf16.mxu0 0
      %1852 = vmatpush1.bf16.msra.mxu0 0
      %1853 = vmatprep.subr.bf16.mxu0 0
      %1854 = vmatpush1.bf16.msra.mxu0 0
      %1855 = vmatprep.subr.bf16.mxu0 0
      %1856 = vmatpush1.bf16.msra.mxu0 0
      %1857 = vmatprep.subr.bf16.mxu0 0
      %1858 = vmatpush1.bf16.msra.mxu0 0
      %1859 = vmatprep.subr.bf16.mxu0 0
      %1860 = vmatpush1.bf16.msra.mxu0 0
      %1861 = vmatprep.subr.bf16.mxu0 0
      %1862 = vmatpush1.bf16.msra.mxu0 0
      %1863 = vmatprep.subr.bf16.mxu0 0
      %1864 = vmatpush1.bf16.msra.mxu0 0
      %1865 = vmatprep.mubr.bf16.mxu0 0
      %1866 = vmatmul.mubr.bf16.gmra.mrb[0].mxu0 %v1828
      %v1867 = vpop.f32.mrb[0].mxu0
      %v1868 = vadd.f32 0.0, %v1867
      %v1869 = vpop.f32.mrb[0].mxu0
      %v1870 = vpop.f32.mrb[0].mxu0
      %v1871 = vpop.f32.mrb[0].mxu0
      %1872 = vdwg.mxu0
      %v1873 = vrcp.pop %v1822
      %v1874 = vmul.f32 %v1868, %v1873
      %1876 = vrot.lane.b32.xlu0 %v1760, 120
      %v1877 = vpop.permute.xlu0 %1876
      %v1879 = vrot.slane %v1757, 4
      %v1881 = vsel %vm1039, %v1877, 0
      %v1884 = vsel %vm1043, %v1879, 0
      %1886 = vmatprep.subr.bf16.mxu0 0
      %1887 = vmatpush1.bf16.msra.mxu0 %v1884
      %1888 = vmatprep.subr.bf16.mxu0 0
      %1889 = vmatpush1.bf16.msra.mxu0 0
      %1890 = vmatprep.subr.bf16.mxu0 0
      %1891 = vmatpush1.bf16.msra.mxu0 0
      %1892 = vmatprep.subr.bf16.mxu0 0
      %1893 = vmatpush1.bf16.msra.mxu0 0
      %1894 = vmatprep.subr.bf16.mxu0 0
      %1895 = vmatpush1.bf16.msra.mxu0 0
      %1896 = vmatprep.subr.bf16.mxu0 0
      %1897 = vmatpush1.bf16.msra.mxu0 0
      %1898 = vmatprep.subr.bf16.mxu0 0
      %1899 = vmatpush1.bf16.msra.mxu0 0
      %1900 = vmatprep.subr.bf16.mxu0 0
      %1901 = vmatpush1.bf16.msra.mxu0 0
      %1902 = vmatprep.subr.bf16.mxu0 0
      %1903 = vmatpush1.bf16.msra.mxu0 0
      %1904 = vmatprep.subr.bf16.mxu0 0
      %1905 = vmatpush1.bf16.msra.mxu0 0
      %1906 = vmatprep.subr.bf16.mxu0 0
      %1907 = vmatpush1.bf16.msra.mxu0 0
      %1908 = vmatprep.subr.bf16.mxu0 0
      %1909 = vmatpush1.bf16.msra.mxu0 0
      %1910 = vmatprep.subr.bf16.mxu0 0
      %1911 = vmatpush1.bf16.msra.mxu0 0
      %1912 = vmatprep.subr.bf16.mxu0 0
      %1913 = vmatpush1.bf16.msra.mxu0 0
      %1914 = vmatprep.subr.bf16.mxu0 0
      %1915 = vmatpush1.bf16.msra.mxu0 0
      %1916 = vmatprep.subr.bf16.mxu0 0
      %1917 = vmatpush1.bf16.msra.mxu0 0
      %1918 = vmatprep.mubr.bf16.mxu0 0
      %1919 = vmatmul.mubr.bf16.gmra.mrb[0].mxu0 %v1881
      %v1920 = vpop.f32.mrb[0].mxu0
      %v1921 = vadd.f32 %v1766, %v1920
      %v1922 = vpop.f32.mrb[0].mxu0
      %v1923 = vpop.f32.mrb[0].mxu0
      %v1924 = vpop.f32.mrb[0].mxu0
      %1925 = vdwg.mxu0
      %v1926 = vsel %vm1039, %v1921, -inf
      %1927 = vmax.xlane.f32.xlu0 %v1926
      %v1928 = vpop.xlane.xlu0 %1927
      %v1929 = vsub.f32 %v1921, %v1928
      %v1930 = vmul.f32 %v1929, 1.442695
      %v1931 = vpow.pop %v1930
      %v1932 = vsel %vm1039, %v1931, 0.0
      %1933 = vadd.xlane.f32.xlu0 %v1932
      %v1934 = vpop.xlane.xlu0 %1933
      %v1935 = vpack.c.bf16 %v1931, %v1931
      %1936 = vrot.lane.b32.xlu0 %v1761, 88
      %v1937 = vpop.permute.xlu0 %1936
      %v1939 = vsel %vm1039, %v1935, 0
      %v1942 = vsel %vm1043, %v1937, 0
      %1944 = vmatprep.subr.bf16.mxu0 0
      %1945 = vmatpush1.bf16.msra.mxu0 %v1942
      %1946 = vmatprep.subr.bf16.mxu0 0
      %1947 = vmatpush1.bf16.msra.mxu0 0
      %1948 = vmatprep.subr.bf16.mxu0 0
      %1949 = vmatpush1.bf16.msra.mxu0 0
      %1950 = vmatprep.subr.bf16.mxu0 0
      %1951 = vmatpush1.bf16.msra.mxu0 0
      %1952 = vmatprep.subr.bf16.mxu0 0
      %1953 = vmatpush1.bf16.msra.mxu0 0
      %1954 = vmatprep.subr.bf16.mxu0 0
      %1955 = vmatpush1.bf16.msra.mxu0 0
      %1956 = vmatprep.subr.bf16.mxu0 0
      %1957 = vmatpush1.bf16.msra.mxu0 0
      %1958 = vmatprep.subr.bf16.mxu0 0
      %1959 = vmatpush1.bf16.msra.mxu0 0
      %1960 = vmatprep.subr.bf16.mxu0 0
      %1961 = vmatpush1.bf16.msra.mxu0 0
      %1962 = vmatprep.subr.bf16.mxu0 0
      %1963 = vmatpush1.bf16.msra.mxu0 0
      %1964 = vmatprep.subr.bf16.mxu0 0
      %1965 = vmatpush1.bf16.msra.mxu0 0
      %1966 = vmatprep.subr.bf16.mxu0 0
      %1967 = vmatpush1.bf16.msra.mxu0 0
      %1968 = vmatprep.subr.bf16.mxu0 0
      %1969 = vmatpush1.bf16.msra.mxu0 0
      %1970 = vmatprep.subr.bf16.mxu0 0
      %1971 = vmatpush1.bf16.msra.mxu0 0
      %1972 = vmatprep.subr.bf16.mxu0 0
      %1973 = vmatpush1.bf16.msra.mxu0 0
      %1974 = vmatprep.subr.bf16.mxu0 0
      %1975 = vmatpush1.bf16.msra.mxu0 0
      %1976 = vmatprep.mubr.bf16.mxu0 0
      %1977 = vmatmul.mubr.bf16.gmra.mrb[0].mxu0 %v1939
      %v1978 = vpop.f32.mrb[0].mxu0
      %v1979 = vadd.f32 0.0, %v1978
      %v1980 = vpop.f32.mrb[0].mxu0
      %v1981 = vpop.f32.mrb[0].mxu0
      %v1982 = vpop.f32.mrb[0].mxu0
      %1983 = vdwg.mxu0
      %v1984 = vrcp.pop %v1934
      %v1985 = vmul.f32 %v1979, %v1984
      %1986 = vrot.lane.b32.xlu0 %v1760, 112
      %v1987 = vpop.permute.xlu0 %1986
      %v1989 = vsel %vm1039, %v1987, 0
      %v1992 = vsel %vm1043, %v1758, 0
      %1994 = vmatprep.subr.bf16.mxu0 0
      %1995 = vmatpush1.bf16.msra.mxu0 %v1992
      %1996 = vmatprep.subr.bf16.mxu0 0
      %1997 = vmatpush1.bf16.msra.mxu0 0
      %1998 = vmatprep.subr.bf16.mxu0 0
      %1999 = vmatpush1.bf16.msra.mxu0 0
      %2000 = vmatprep.subr.bf16.mxu0 0
      %2001 = vmatpush1.bf16.msra.mxu0 0
      %2002 = vmatprep.subr.bf16.mxu0 0
      %2003 = vmatpush1.bf16.msra.mxu0 0
      %2004 = vmatprep.subr.bf16.mxu0 0
      %2005 = vmatpush1.bf16.msra.mxu0 0
      %2006 = vmatprep.subr.bf16.mxu0 0
      %2007 = vmatpush1.bf16.msra.mxu0 0
      %2008 = vmatprep.subr.bf16.mxu0 0
      %2009 = vmatpush1.bf16.msra.mxu0 0
      %2010 = vmatprep.subr.bf16.mxu0 0
      %2011 = vmatpush1.bf16.msra.mxu0 0
      %2012 = vmatprep.subr.bf16.mxu0 0
      %2013 = vmatpush1.bf16.msra.mxu0 0
      %2014 = vmatprep.subr.bf16.mxu0 0
      %2015 = vmatpush1.bf16.msra.mxu0 0
      %2016 = vmatprep.subr.bf16.mxu0 0
      %2017 = vmatpush1.bf16.msra.mxu0 0
      %2018 = vmatprep.subr.bf16.mxu0 0
      %2019 = vmatpush1.bf16.msra.mxu0 0
      %2020 = vmatprep.subr.bf16.mxu0 0
      %2021 = vmatpush1.bf16.msra.mxu0 0
      %2022 = vmatprep.subr.bf16.mxu0 0
      %2023 = vmatpush1.bf16.msra.mxu0 0
      %2024 = vmatprep.subr.bf16.mxu0 0
      %2025 = vmatpush1.bf16.msra.mxu0 0
      %2026 = vmatprep.mubr.bf16.mxu0 0
      %2027 = vmatmul.mubr.bf16.gmra.mrb[0].mxu0 %v1989
      %v2028 = vpop.f32.mrb[0].mxu0
      %v2029 = vadd.f32 %v1766, %v2028
      %v2030 = vpop.f32.mrb[0].mxu0
      %v2031 = vpop.f32.mrb[0].mxu0
      %v2032 = vpop.f32.mrb[0].mxu0
      %2033 = vdwg.mxu0
      %v2034 = vsel %vm1039, %v2029, -inf
      %2035 = vmax.xlane.f32.xlu0 %v2034
      %v2036 = vpop.xlane.xlu0 %2035
      %v2037 = vsub.f32 %v2029, %v2036
      %v2038 = vmul.f32 %v2037, 1.442695
      %v2039 = vpow.pop %v2038
      %v2040 = vsel %vm1039, %v2039, 0.0
      %2041 = vadd.xlane.f32.xlu0 %v2040
      %v2042 = vpop.xlane.xlu0 %2041
      %v2043 = vpack.c.bf16 %v2039, %v2039
      %2044 = vrot.lane.b32.xlu0 %v1761, 80
      %v2045 = vpop.permute.xlu0 %2044
      %v2047 = vsel %vm1039, %v2043, 0
      %v2050 = vsel %vm1043, %v2045, 0
      %2052 = vmatprep.subr.bf16.mxu0 0
      %2053 = vmatpush1.bf16.msra.mxu0 %v2050
      %2054 = vmatprep.subr.bf16.mxu0 0
      %2055 = vmatpush1.bf16.msra.mxu0 0
      %2056 = vmatprep.subr.bf16.mxu0 0
      %2057 = vmatpush1.bf16.msra.mxu0 0
      %2058 = vmatprep.subr.bf16.mxu0 0
      %2059 = vmatpush1.bf16.msra.mxu0 0
      %2060 = vmatprep.subr.bf16.mxu0 0
      %2061 = vmatpush1.bf16.msra.mxu0 0
      %2062 = vmatprep.subr.bf16.mxu0 0
      %2063 = vmatpush1.bf16.msra.mxu0 0
      %2064 = vmatprep.subr.bf16.mxu0 0
      %2065 = vmatpush1.bf16.msra.mxu0 0
      %2066 = vmatprep.subr.bf16.mxu0 0
      %2067 = vmatpush1.bf16.msra.mxu0 0
      %2068 = vmatprep.subr.bf16.mxu0 0
      %2069 = vmatpush1.bf16.msra.mxu0 0
      %2070 = vmatprep.subr.bf16.mxu0 0
      %2071 = vmatpush1.bf16.msra.mxu0 0
      %2072 = vmatprep.subr.bf16.mxu0 0
      %2073 = vmatpush1.bf16.msra.mxu0 0
      %2074 = vmatprep.subr.bf16.mxu0 0
      %2075 = vmatpush1.bf16.msra.mxu0 0
      %2076 = vmatprep.subr.bf16.mxu0 0
      %2077 = vmatpush1.bf16.msra.mxu0 0
      %2078 = vmatprep.subr.bf16.mxu0 0
      %2079 = vmatpush1.bf16.msra.mxu0 0
      %2080 = vmatprep.subr.bf16.mxu0 0
      %2081 = vmatpush1.bf16.msra.mxu0 0
      %2082 = vmatprep.subr.bf16.mxu0 0
      %2083 = vmatpush1.bf16.msra.mxu0 0
      %2084 = vmatprep.mubr.bf16.mxu0 0
      %2085 = vmatmul.mubr.bf16.gmra.mrb[0].mxu0 %v2047
      %v2086 = vpop.f32.mrb[0].mxu0
      %v2087 = vadd.f32 0.0, %v2086
      %v2088 = vpop.f32.mrb[0].mxu0
      %v2089 = vpop.f32.mrb[0].mxu0
      %v2090 = vpop.f32.mrb[0].mxu0
      %2091 = vdwg.mxu0
      %v2092 = vrcp.pop %v2042
      %v2093 = vmul.f32 %v2087, %v2092
      %2094 = vrot.lane.b32.xlu0 %v1760, 104
      %v2095 = vpop.permute.xlu0 %2094
      %v2097 = vrot.slane %v1758, 4
      %v2099 = vsel %vm1039, %v2095, 0
      %v2102 = vsel %vm1043, %v2097, 0
      %2104 = vmatprep.subr.bf16.mxu0 0
      %2105 = vmatpush1.bf16.msra.mxu0 %v2102
      %2106 = vmatprep.subr.bf16.mxu0 0
      %2107 = vmatpush1.bf16.msra.mxu0 0
      %2108 = vmatprep.subr.bf16.mxu0 0
      %2109 = vmatpush1.bf16.msra.mxu0 0
      %2110 = vmatprep.subr.bf16.mxu0 0
      %2111 = vmatpush1.bf16.msra.mxu0 0
      %2112 = vmatprep.subr.bf16.mxu0 0
      %2113 = vmatpush1.bf16.msra.mxu0 0
      %2114 = vmatprep.subr.bf16.mxu0 0
      %2115 = vmatpush1.bf16.msra.mxu0 0
      %2116 = vmatprep.subr.bf16.mxu0 0
      %2117 = vmatpush1.bf16.msra.mxu0 0
      %2118 = vmatprep.subr.bf16.mxu0 0
      %2119 = vmatpush1.bf16.msra.mxu0 0
      %2120 = vmatprep.subr.bf16.mxu0 0
      %2121 = vmatpush1.bf16.msra.mxu0 0
      %2122 = vmatprep.subr.bf16.mxu0 0
      %2123 = vmatpush1.bf16.msra.mxu0 0
      %2124 = vmatprep.subr.bf16.mxu0 0
      %2125 = vmatpush1.bf16.msra.mxu0 0
      %2126 = vmatprep.subr.bf16.mxu0 0
      %2127 = vmatpush1.bf16.msra.mxu0 0
      %2128 = vmatprep.subr.bf16.mxu0 0
      %2129 = vmatpush1.bf16.msra.mxu0 0
      %2130 = vmatprep.subr.bf16.mxu0 0
      %2131 = vmatpush1.bf16.msra.mxu0 0
      %2132 = vmatprep.subr.bf16.mxu0 0
      %2133 = vmatpush1.bf16.msra.mxu0 0
      %2134 = vmatprep.subr.bf16.mxu0 0
      %2135 = vmatpush1.bf16.msra.mxu0 0
      %2136 = vmatprep.mubr.bf16.mxu0 0
      %2137 = vmatmul.mubr.bf16.gmra.mrb[0].mxu0 %v2099
      %v2138 = vpop.f32.mrb[0].mxu0
      %v2139 = vadd.f32 %v1766, %v2138
      %v2140 = vpop.f32.mrb[0].mxu0
      %v2141 = vpop.f32.mrb[0].mxu0
      %v2142 = vpop.f32.mrb[0].mxu0
      %2143 = vdwg.mxu0
      %v2144 = vsel %vm1039, %v2139, -inf
      %2145 = vmax.xlane.f32.xlu0 %v2144
      %v2146 = vpop.xlane.xlu0 %2145
      %v2147 = vsub.f32 %v2139, %v2146
      %v2148 = vmul.f32 %v2147, 1.442695
      %v2149 = vpow.pop %v2148
      %v2150 = vsel %vm1039, %v2149, 0.0
      %2151 = vadd.xlane.f32.xlu0 %v2150
      %v2152 = vpop.xlane.xlu0 %2151
      %v2153 = vpack.c.bf16 %v2149, %v2149
      %2154 = vrot.lane.b32.xlu0 %v1761, 72
      %v2155 = vpop.permute.xlu0 %2154
      %v2157 = vsel %vm1039, %v2153, 0
      %v2160 = vsel %vm1043, %v2155, 0
      %2162 = vmatprep.subr.bf16.mxu0 0
      %2163 = vmatpush1.bf16.msra.mxu0 %v2160
      %2164 = vmatprep.subr.bf16.mxu0 0
      %2165 = vmatpush1.bf16.msra.mxu0 0
      %2166 = vmatprep.subr.bf16.mxu0 0
      %2167 = vmatpush1.bf16.msra.mxu0 0
      %2168 = vmatprep.subr.bf16.mxu0 0
      %2169 = vmatpush1.bf16.msra.mxu0 0
      %2170 = vmatprep.subr.bf16.mxu0 0
      %2171 = vmatpush1.bf16.msra.mxu0 0
      %2172 = vmatprep.subr.bf16.mxu0 0
      %2173 = vmatpush1.bf16.msra.mxu0 0
      %2174 = vmatprep.subr.bf16.mxu0 0
      %2175 = vmatpush1.bf16.msra.mxu0 0
      %2176 = vmatprep.subr.bf16.mxu0 0
      %2177 = vmatpush1.bf16.msra.mxu0 0
      %2178 = vmatprep.subr.bf16.mxu0 0
      %2179 = vmatpush1.bf16.msra.mxu0 0
      %2180 = vmatprep.subr.bf16.mxu0 0
      %2181 = vmatpush1.bf16.msra.mxu0 0
      %2182 = vmatprep.subr.bf16.mxu0 0
      %2183 = vmatpush1.bf16.msra.mxu0 0
      %2184 = vmatprep.subr.bf16.mxu0 0
      %2185 = vmatpush1.bf16.msra.mxu0 0
      %2186 = vmatprep.subr.bf16.mxu0 0
      %2187 = vmatpush1.bf16.msra.mxu0 0
      %2188 = vmatprep.subr.bf16.mxu0 0
      %2189 = vmatpush1.bf16.msra.mxu0 0
      %2190 = vmatprep.subr.bf16.mxu0 0
      %2191 = vmatpush1.bf16.msra.mxu0 0
      %2192 = vmatprep.subr.bf16.mxu0 0
      %2193 = vmatpush1.bf16.msra.mxu0 0
      %2194 = vmatprep.mubr.bf16.mxu0 0
      %2195 = vmatmul.mubr.bf16.gmra.mrb[0].mxu0 %v2157
      %v2196 = vpop.f32.mrb[0].mxu0
      %v2197 = vadd.f32 0.0, %v2196
      %v2198 = vpop.f32.mrb[0].mxu0
      %v2199 = vpop.f32.mrb[0].mxu0
      %v2200 = vpop.f32.mrb[0].mxu0
      %2201 = vdwg.mxu0
      %v2202 = vrcp.pop %v2152
      %v2203 = vmul.f32 %v2197, %v2202
      %2205 = vrot.lane.b32.xlu0 %v1985, 8
      %v2206 = vpop.permute.xlu0 %2205
      %2209 = vrot.lane.b32.xlu0 %v2093, 16
      %v2210 = vpop.permute.xlu0 %2209
      %2213 = vrot.lane.b32.xlu0 %v2203, 24
      %v2214 = vpop.permute.xlu0 %2213
      %v2216 = vsel %vm1039, %v1874, %v2206
      %v2217 = vsel %vm1490, %v2216, %v2210
      %v2218 = vsel %vm1492, %v2217, %v2214
      %v2219 = vpack.c.bf16 %v2218, %v2218
      %v2220 = vld [vmem:[%s16] sm:$0xf]
      %v2221 = vld [vmem:[%s16 + $0x4] sm:$0xf]
      %v2222 = vld [vmem:[%s16 + $0x8] sm:$0xf]
      %v2223 = vld [vmem:[%s16 + $0xc] sm:$0xf]
      %v2224 = vld [vmem:[%s17] sm:$0x1]
      %v2226 = vlaneseq
      %v2227 = vshrl.u32 %v2226, 7
      %v2228 = vsub.s32 0, %v2227
      %v2229 = vrot.slane %v2224, %v2228
      %v2235 = vunpack.c.l.b16 %v2220
      %v2236 = vunpack.c.l.b16 %v2221
      %v2237 = vunpack.c.l.b16 %v2222
      %v2238 = vunpack.c.l.b16 %v2223
      %v2239 = vpack.c.b16 %v2236, %v2235
      %v2240 = vpack.c.b16 %v2238, %v2237
      %v2244 = vsel %vm885, %v2219, 0
      %2246 = vmatprep.subr.bf16.mxu0 0
      %2247 = vmatpush1.bf16.msra.mxu0 %v2239
      %2248 = vmatprep.subr.bf16.mxu0 0
      %2249 = vmatpush1.bf16.msra.mxu0 %v2240
      %2250 = vmatprep.subr.bf16.mxu0 0
      %2251 = vmatpush1.bf16.msra.mxu0 0
      %2252 = vmatprep.subr.bf16.mxu0 0
      %2253 = vmatpush1.bf16.msra.mxu0 0
      %2254 = vmatprep.subr.bf16.mxu0 0
      %2255 = vmatpush1.bf16.msra.mxu0 0
      %2256 = vmatprep.subr.bf16.mxu0 0
      %2257 = vmatpush1.bf16.msra.mxu0 0
      %2258 = vmatprep.subr.bf16.mxu0 0
      %2259 = vmatpush1.bf16.msra.mxu0 0
      %2260 = vmatprep.subr.bf16.mxu0 0
      %2261 = vmatpush1.bf16.msra.mxu0 0
      %2262 = vmatprep.subr.bf16.mxu0 0
      %2263 = vmatpush1.bf16.msra.mxu0 0
      %2264 = vmatprep.subr.bf16.mxu0 0
      %2265 = vmatpush1.bf16.msra.mxu0 0
      %2266 = vmatprep.subr.bf16.mxu0 0
      %2267 = vmatpush1.bf16.msra.mxu0 0
      %2268 = vmatprep.subr.bf16.mxu0 0
      %2269 = vmatpush1.bf16.msra.mxu0 0
      %2270 = vmatprep.subr.bf16.mxu0 0
      %2271 = vmatpush1.bf16.msra.mxu0 0
      %2272 = vmatprep.subr.bf16.mxu0 0
      %2273 = vmatpush1.bf16.msra.mxu0 0
      %2274 = vmatprep.subr.bf16.mxu0 0
      %2275 = vmatpush1.bf16.msra.mxu0 0
      %2276 = vmatprep.subr.bf16.mxu0 0
      %2277 = vmatpush1.bf16.msra.mxu0 0
      %2278 = vmatprep.mubr.bf16.mxu0 0
      %2279 = vmatmul.mubr.bf16.gmra.mrb[0].mxu0 %v2244
      %v2280 = vpop.f32.mrb[0].mxu0
      %v2281 = vadd.f32 %v2229, %v2280
      %v2282 = vpop.f32.mrb[0].mxu0
      %v2283 = vpop.f32.mrb[0].mxu0
      %v2284 = vpop.f32.mrb[0].mxu0
      %2285 = vdwg.mxu0
      %v2286 = vadd.f32 %v1591, %v2281
      %v2287 = vld [vmem:[%s18] sm:$0x1]
      %v2288 = vld [vmem:[%s19] sm:$0x1]
      %v2289 = vsel %vm885, %v2286, 0.0
      %2290 = vadd.xlane.f32.xlu0 %v2289
      %v2291 = vpop.xlane.xlu0 %2290
      %v2292 = vmul.f32 %v2291, %v1567
      %v2293 = vsub.f32 %v2286, %v2292
      %v2294 = vmul.f32 %v2293, %v2293
      %v2295 = vsel %vm885, %v2294, 0.0
      %2296 = vadd.xlane.f32.xlu0 %v2295
      %v2297 = vpop.xlane.xlu0 %2296
      %v2298 = vmul.f32 %v2297, %v1567
      %v2299 = vadd.f32 %v2298, 1e-05
      %v2300 = vrsqrt.pop %v2299
      %v2301 = vmul.f32 %v2293, %v2300
      %v2303 = vlaneseq
      %v2304 = vshrl.u32 %v2303, 7
      %v2305 = vsub.s32 0, %v2304
      %v2306 = vrot.slane %v2287, %v2305
      %v2308 = vmul.f32 %v2301, %v2306
      %v2310 = vlaneseq
      %v2311 = vshrl.u32 %v2310, 7
      %v2312 = vsub.s32 0, %v2311
      %v2313 = vrot.slane %v2288, %v2312
      %v2315 = vadd.f32 %v2308, %v2313
      %v2316 = vpack.c.bf16 %v2315, %v2315
      %v2317 = vld [vmem:[%s20] sm:$0xf]
      %v2318 = vld [vmem:[%s20 + $0x4] sm:$0xf]
      %v2319 = vld [vmem:[%s20 + $0x8] sm:$0xf]
      %v2320 = vld [vmem:[%s20 + $0xc] sm:$0xf]
      %v2321 = vld [vmem:[%s21] sm:$0x1]
      %v2323 = vlaneseq
      %v2324 = vshrl.u32 %v2323, 7
      %v2325 = vsub.s32 0, %v2324
      %v2326 = vrot.slane %v2321, %v2325
      %v2332 = vunpack.c.l.b16 %v2317
      %v2333 = vunpack.c.l.b16 %v2318
      %v2334 = vunpack.c.l.b16 %v2319
      %v2335 = vunpack.c.l.b16 %v2320
      %v2336 = vpack.c.b16 %v2333, %v2332
      %v2337 = vpack.c.b16 %v2335, %v2334
      %v2341 = vsel %vm885, %v2316, 0
      %2343 = vmatprep.subr.bf16.mxu0 0
      %2344 = vmatpush1.bf16.msra.mxu0 %v2336
      %2345 = vmatprep.subr.bf16.mxu0 0
      %2346 = vmatpush1.bf16.msra.mxu0 %v2337
      %2347 = vmatprep.subr.bf16.mxu0 0
      %2348 = vmatpush1.bf16.msra.mxu0 0
      %2349 = vmatprep.subr.bf16.mxu0 0
      %2350 = vmatpush1.bf16.msra.mxu0 0
      %2351 = vmatprep.subr.bf16.mxu0 0
      %2352 = vmatpush1.bf16.msra.mxu0 0
      %2353 = vmatprep.subr.bf16.mxu0 0
      %2354 = vmatpush1.bf16.msra.mxu0 0
      %2355 = vmatprep.subr.bf16.mxu0 0
      %2356 = vmatpush1.bf16.msra.mxu0 0
      %2357 = vmatprep.subr.bf16.mxu0 0
      %2358 = vmatpush1.bf16.msra.mxu0 0
      %2359 = vmatprep.subr.bf16.mxu0 0
      %2360 = vmatpush1.bf16.msra.mxu0 0
      %2361 = vmatprep.subr.bf16.mxu0 0
      %2362 = vmatpush1.bf16.msra.mxu0 0
      %2363 = vmatprep.subr.bf16.mxu0 0
      %2364 = vmatpush1.bf16.msra.mxu0 0
      %2365 = vmatprep.subr.bf16.mxu0 0
      %2366 = vmatpush1.bf16.msra.mxu0 0
      %2367 = vmatprep.subr.bf16.mxu0 0
      %2368 = vmatpush1.bf16.msra.mxu0 0
      %2369 = vmatprep.subr.bf16.mxu0 0
      %2370 = vmatpush1.bf16.msra.mxu0 0
      %2371 = vmatprep.subr.bf16.mxu0 0
      %2372 = vmatpush1.bf16.msra.mxu0 0
      %2373 = vmatprep.subr.bf16.mxu0 0
      %2374 = vmatpush1.bf16.msra.mxu0 0
      %2375 = vmatprep.mubr.bf16.mxu0 0
      %2376 = vmatmul.mubr.bf16.gmra.mrb[0].mxu0 %v2341
      %v2377 = vpop.f32.mrb[0].mxu0
      %v2378 = vadd.f32 %v2326, %v2377
      %v2379 = vpop.f32.mrb[0].mxu0
      %v2380 = vpop.f32.mrb[0].mxu0
      %v2381 = vpop.f32.mrb[0].mxu0
      %2382 = vdwg.mxu0
      %v2383 = vmax.f32 %v2378, 0.0
      %v2384 = vpack.c.bf16 %v2383, %v2383
      %v2385 = vld [vmem:[%s22] sm:$0xf]
      %v2386 = vld [vmem:[%s22 + $0x4] sm:$0xf]
      %v2387 = vld [vmem:[%s22 + $0x8] sm:$0xf]
      %v2388 = vld [vmem:[%s22 + $0xc] sm:$0xf]
      %v2389 = vld [vmem:[%s22 + $0x10] sm:$0xf]
      %v2390 = vld [vmem:[%s22 + $0x14] sm:$0xf]
      %v2391 = vld [vmem:[%s22 + $0x18] sm:$0xf]
      %v2392 = vld [vmem:[%s22 + $0x1c] sm:$0xf]
      %v2393 = vld [vmem:[%s23] sm:$0x1]
      %v2395 = vlaneseq
      %v2396 = vshrl.u32 %v2395, 7
      %v2397 = vsub.s32 0, %v2396
      %v2398 = vrot.slane %v2393, %v2397
      %v2408 = vunpack.c.l.b16 %v2385
      %v2409 = vunpack.c.l.b16 %v2386
      %v2410 = vunpack.c.l.b16 %v2387
      %v2411 = vunpack.c.l.b16 %v2388
      %v2412 = vunpack.c.l.b16 %v2389
      %v2413 = vunpack.c.l.b16 %v2390
      %v2414 = vunpack.c.l.b16 %v2391
      %v2415 = vunpack.c.l.b16 %v2392
      %v2416 = vpack.c.b16 %v2409, %v2408
      %v2417 = vpack.c.b16 %v2411, %v2410
      %v2418 = vpack.c.b16 %v2413, %v2412
      %v2419 = vpack.c.b16 %v2415, %v2414
      %vm2424 = vcmask 523264
      %v2426 = vsel %vm2424, %v2384, 0
      %2428 = vmatprep.subr.bf16.mxu0 0
      %2429 = vmatpush1.bf16.msra.mxu0 %v2416
      %2430 = vmatprep.subr.bf16.mxu0 0
      %2431 = vmatpush1.bf16.msra.mxu0 %v2417
      %2432 = vmatprep.subr.bf16.mxu0 0
      %2433 = vmatpush1.bf16.msra.mxu0 %v2418
      %2434 = vmatprep.subr.bf16.mxu0 0
      %2435 = vmatpush1.bf16.msra.mxu0 %v2419
      %2436 = vmatprep.subr.bf16.mxu0 0
      %2437 = vmatpush1.bf16.msra.mxu0 0
      %2438 = vmatprep.subr.bf16.mxu0 0
      %2439 = vmatpush1.bf16.msra.mxu0 0
      %2440 = vmatprep.subr.bf16.mxu0 0
      %2441 = vmatpush1.bf16.msra.mxu0 0
      %2442 = vmatprep.subr.bf16.mxu0 0
      %2443 = vmatpush1.bf16.msra.mxu0 0
      %2444 = vmatprep.subr.bf16.mxu0 0
      %2445 = vmatpush1.bf16.msra.mxu0 0
      %2446 = vmatprep.subr.bf16.mxu0 0
      %2447 = vmatpush1.bf16.msra.mxu0 0
      %2448 = vmatprep.subr.bf16.mxu0 0
      %2449 = vmatpush1.bf16.msra.mxu0 0
      %2450 = vmatprep.subr.bf16.mxu0 0
      %2451 = vmatpush1.bf16.msra.mxu0 0
      %2452 = vmatprep.subr.bf16.mxu0 0
      %2453 = vmatpush1.bf16.msra.mxu0 0
      %2454 = vmatprep.subr.bf16.mxu0 0
      %2455 = vmatpush1.bf16.msra.mxu0 0
      %2456 = vmatprep.subr.bf16.mxu0 0
      %2457 = vmatpush1.bf16.msra.mxu0 0
      %2458 = vmatprep.subr.bf16.mxu0 0
      %2459 = vmatpush1.bf16.msra.mxu0 0
      %2460 = vmatprep.mubr.bf16.mxu0 0
      %2461 = vmatmul.mubr.bf16.gmra.mrb[0].mxu0 %v2426
      %v2462 = vpop.f32.mrb[0].mxu0
      %v2463 = vadd.f32 %v2398, %v2462
      %v2464 = vpop.f32.mrb[0].mxu0
      %v2465 = vpop.f32.mrb[0].mxu0
      %v2466 = vpop.f32.mrb[0].mxu0
      %2467 = vdwg.mxu0
      %v2468 = vadd.f32 %v2315, %v2463
      %v2469 = vld [vmem:[%s24] sm:$0x1]
      %v2470 = vld [vmem:[%s25] sm:$0x1]
      %v2471 = vsel %vm885, %v2468, 0.0
      %2472 = vadd.xlane.f32.xlu0 %v2471
      %v2473 = vpop.xlane.xlu0 %2472
      %v2474 = vmul.f32 %v2473, %v1567
      %v2475 = vsub.f32 %v2468, %v2474
      %v2476 = vmul.f32 %v2475, %v2475
      %v2477 = vsel %vm885, %v2476, 0.0
      %2478 = vadd.xlane.f32.xlu0 %v2477
      %v2479 = vpop.xlane.xlu0 %2478
      %v2480 = vmul.f32 %v2479, %v1567
      %v2481 = vadd.f32 %v2480, 1e-05
      %v2482 = vrsqrt.pop %v2481
      %v2483 = vmul.f32 %v2475, %v2482
      %v2485 = vlaneseq
      %v2486 = vshrl.u32 %v2485, 7
      %v2487 = vsub.s32 0, %v2486
      %v2488 = vrot.slane %v2469, %v2487
      %v2490 = vmul.f32 %v2483, %v2488
      %v2492 = vlaneseq
      %v2493 = vshrl.u32 %v2492, 7
      %v2494 = vsub.s32 0, %v2493
      %v2495 = vrot.slane %v2470, %v2494
      %v2497 = vadd.f32 %v2490, %v2495
      %2498 = vst.msk [vmem:[%s851] sm:$0xff] %vm885, %v2497
      %p2499 = scmp.lt.s32.totalorder %s41, 1
      %s2500 = scalar_select %p2499, %s41, 1
      %p2501 = scmp.lt.s32.totalorder %s42, 0
      %s2502 = scalar_select %p2501, %s42, 0
      %s2503 = sadd.s32 %s2502, %s2500
      %s2504 = smul.addr %s2503, 8
      %s2505 = scalar_lea.vmem %s26, %s2504
      // Predicated region
      $region125: #{t5_forward.7} parent=123 // pred_check
        %p2506 = pneg %p635
      $region126: #{t5_forward.7} parent=123 // pred_check_branch
        %2508 = sbr.rel (%p2506) target = $region128
      $region127: #{t5_forward.7} parent=123 // pred_region
        _
      $region128: #{t5_forward.7} parent=123 // pred_fallthru
        _
    $region124: #{t5_forward.7} parent=5 // pred_fallthru
      _
    %p2509 = scmp.le.s32.totalorder 2, %s32
    // Predicated region
    $region129: #{t5_forward.7} parent=5 // pred_check
      %p2510 = pneg %p2509
    $region130: #{t5_forward.7} parent=5 // pred_check_branch
      %2512 = sbr.rel (%p2510) target = $region132
    $region131: #{t5_forward.7} parent=5 // pred_region
      %s2513 = ssub.s32 %s32, 2
      // Predicated region
      $region133: #{t5_forward.7} parent=131 // pred_check
        %p2514 = pneg %p641
      $region134: #{t5_forward.7} parent=131 // pred_check_branch
        %2516 = sbr.rel (%p2514) target = $region136
      $region135: #{t5_forward.7} parent=131 // pred_region
        %p2517 = scmp.lt.s32.totalorder %s43, 1
        %s2518 = scalar_select %p2517, %s43, 1
        %p2519 = scmp.lt.s32.totalorder %s44, 0
        %s2520 = scalar_select %p2519, %s44, 0
        %s2521 = sadd.s32 %s2520, %s2518
        %s2522 = smul.addr %s2521, 8
        %s2523 = scalar_lea.vmem %s26, %s2522
      $region136: #{t5_forward.7} parent=131 // pred_fallthru
        _
    $region132: #{t5_forward.7} parent=5 // pred_fallthru
      _
  $region6: #{t5_forward.7} parent=0 // loop_footer
    %s36 = sadd.s32 1, %s32
  $region7: #{t5_forward.7} parent=0 // loop_footer_branch
    %31 = sbr.rel target = $region3
  $region8: #{t5_forward.7} parent=0 // loop_exit
    _

</llo_original>
